<compile_context>
chip_gen: v5e
topology: v5e:2x2
jax: 0.10.0
libtpu: 0.0.40
codegen_flags: <defaults>
</compile_context>

<pallas_src>
import math
import functools

import jax
import jax.numpy as jnp
from jax import lax
from jax.experimental import pallas as pl
from jax.experimental.pallas import tpu as pltpu

_INV_SQRT2 = 1.0 / math.sqrt(2.0)


def _convnext_kernel(xp_ref, dw_w_ref, dw_b_ref, g_ref, beta_ref,
                     w1_ref, b1_ref, w2_ref, b2_ref, o_ref, *,
                     kernel_size: int, tile_t: int, tile_t_halo: int,
                     eps: float, matmul_dtype, approximate_gelu: bool):
    """Grid = (batch, time_tile). Each step computes a (TT, C) slab of the output.

    xp_ref   : (1, T + halo8, C)  zero-padded input (channels-last, full batch row)
    dw_w_ref : (K, C)             depthwise conv weight (per-tap, per-channel)
    dw_b_ref : (1, C)             depthwise conv bias
    g_ref    : (1, C)             LayerNorm gamma
    beta_ref : (1, C)             LayerNorm beta
    w1_ref   : (C, H)             pwconv1 weight^T (matmul_dtype, e.g. bf16)
    b1_ref   : (1, H)             pwconv1 bias (f32)
    w2_ref   : (H, C)             pwconv2 weight^T (matmul_dtype)
    b2_ref   : (1, C)             pwconv2 bias (f32)
    o_ref    : (1, TT, C)         output time tile
    """
    K = kernel_size
    pad = K // 2
    TT = tile_t
    TTP = tile_t_halo
    C = o_ref.shape[2]

    t0 = pl.program_id(1) * TT
    if TT % 8 == 0:
        t0 = pl.multiple_of(t0, 8)

    # Aligned (TTP, C) tile including the conv halo (TTP is 8-aligned when TT is).
    xpt = xp_ref[0, pl.ds(t0, TTP), :].astype(jnp.float32)

    # Depthwise "same" conv along T: acc[t] = b + sum_k xpt[t + k] * w[k].
    # pltpu.roll keeps the per-tap shift on the XLU slot instead of materializing
    # K sublane-misaligned copies; the trailing [:TT] slice is 8-aligned.
    w_taps = dw_w_ref[...].astype(jnp.float32)                       # (K, C)
    acc = jnp.broadcast_to(dw_b_ref[0].astype(jnp.float32), (TT, C))
    res = None
    for k in range(K):                                               # K static -> unrolled
        shifted = xpt if k == 0 else pltpu.roll(xpt, shift=TTP - k, axis=0)
        tap = shifted[:TT, :]
        acc = acc + tap * w_taps[k, :]
        if k == pad:
            res = tap                                                # un-convolved input

    # LayerNorm over channels (f32 elementwise math on all generations).
    mean = jnp.mean(acc, axis=-1, keepdims=True)
    centered = acc - mean
    var = jnp.mean(centered * centered, axis=-1, keepdims=True)
    xn = centered * lax.rsqrt(var + eps)
    xn = xn * g_ref[0].astype(jnp.float32) + beta_ref[0].astype(jnp.float32)

    # Pointwise expansion -> GELU -> pointwise reduction (MXU, bf16 operands / f32 accum).
    h = jnp.dot(xn.astype(matmul_dtype), w1_ref[...],
                preferred_element_type=jnp.float32) + b1_ref[0].astype(jnp.float32)
    if approximate_gelu:
        h = jax.nn.gelu(h, approximate=True)            # tanh GELU on the EUP (opt-in)
    else:
        h = 0.5 * h * (1.0 + lax.erf(h * _INV_SQRT2))   # exact erf = torch nn.GELU()
    y = jnp.dot(h.astype(matmul_dtype), w2_ref[...],
                preferred_element_type=jnp.float32) + b2_ref[0].astype(jnp.float32)

    # Residual. TODO(synk): DropPath (stochastic depth) is identity at drop_path=0.0 / eval.
    o_ref[0] = (res + y).astype(o_ref.dtype)


def _pick_time_tile(T: int, tile_t):
    if tile_t is not None:
        if T % tile_t != 0:
            raise ValueError(f"tile_t={tile_t} must divide T={T}")
        return tile_t
    best = None
    for tt in range(8, min(T, 512) + 1, 8):   # largest 8-multiple divisor of T, <= 512
        if T % tt == 0:
            best = tt
    return best if best is not None else T


def convnext_block_1d_btc(x_btc, params, *, kernel_size: int = 7, eps: float = 1e-5,
                          tile_t=None, matmul_dtype=jnp.bfloat16,
                          approximate_gelu: bool = False):
    """Channels-last entry point: x_btc (B, T, C) -> (B, T, C).

    Keeping the surrounding model channels-last avoids the two full-tensor HBM
    transposes the PyTorch (B, C, T) layout would force around the kernel.
    """
    B, T, C = x_btc.shape
    K = kernel_size
    if K % 2 != 1:
        raise ValueError("kernel_size must be odd to match Conv1d(padding=K//2) semantics")
    pad_l = K // 2
    halo8 = -(-(K - 1) // 8) * 8              # conv halo rounded up to a sublane multiple
    TT = _pick_time_tile(T, tile_t)
    TTP = TT + halo8
    NT = T // TT
    Tp = T + halo8

    # Zero "same"-padding of the time axis; the right side is over-padded so every
    # in-kernel halo read [t0, t0+TTP) is 8-aligned and in bounds.
    # TODO(synk): fold this pad into the kernel (masked halo read) to save one HBM pass.
    x_pad = jnp.pad(x_btc, ((0, 0), (pad_l, halo8 - pad_l), (0, 0)))

    H = params["w1"].shape[1]
    w1 = params["w1"].astype(matmul_dtype)    # bf16 operands -> full-rate MXU, f32 accum
    w2 = params["w2"].astype(matmul_dtype)

    kernel = functools.partial(
        _convnext_kernel, kernel_size=K, tile_t=TT, tile_t_halo=TTP, eps=eps,
        matmul_dtype=matmul_dtype, approximate_gelu=approximate_gelu)

    w_itemsize = jnp.dtype(matmul_dtype).itemsize
    f32 = 4
    # Rough per-step VMEM budget: double-buffered I/O + resident weights + f32 intermediates.
    vmem_est = (2 * Tp * C * f32 + 2 * TT * C * f32
                + 2 * w_itemsize * (C * H + H * C)
                + 2 * f32 * (K * C + 4 * C + H)
                + (TTP * C + 4 * TT * C + 2 * TT * H) * f32)
    # Keep below v7x's 64 MiB physical VMEM; shrink tile_t for large configs on v7x.
    vmem_limit = int(min(max(2 * vmem_est, 32 * 1024 * 1024), 64 * 1024 * 1024))

    cost = pl.CostEstimate(
        flops=int(B * T * (4 * C * H + 2 * K * C + 12 * C + 8 * H)),
        transcendentals=int(B * T * H),
        bytes_accessed=int((Tp + T) * B * C * f32
                           + (C * H + H * C) * w_itemsize
                           + (K * C + 4 * C + H) * f32),
    )

    out = pl.pallas_call(
        kernel,
        out_shape=jax.ShapeDtypeStruct((B, T, C), x_btc.dtype),
        grid=(B, NT),
        in_specs=[
            pl.BlockSpec((1, Tp, C), lambda b, t: (b, 0, 0)),   # padded input (per-batch row)
            pl.BlockSpec((K, C), lambda b, t: (0, 0)),          # dw conv weight
            pl.BlockSpec((1, C), lambda b, t: (0, 0)),          # dw conv bias
            pl.BlockSpec((1, C), lambda b, t: (0, 0)),          # LN gamma
            pl.BlockSpec((1, C), lambda b, t: (0, 0)),          # LN beta
            # TODO(synk): single-buffer the resident weights (pipeline_mode=pl.Buffered(1))
            # on v7x to reclaim VMEM for a larger time tile.
            pl.BlockSpec((C, H), lambda b, t: (0, 0)),          # pwconv1 weight^T (bf16)
            pl.BlockSpec((1, H), lambda b, t: (0, 0)),          # pwconv1 bias
            pl.BlockSpec((H, C), lambda b, t: (0, 0)),          # pwconv2 weight^T (bf16)
            pl.BlockSpec((1, C), lambda b, t: (0, 0)),          # pwconv2 bias
        ],
        out_specs=pl.BlockSpec((1, TT, C), lambda b, t: (b, t, 0)),
        compiler_params=pltpu.CompilerParams(
            dimension_semantics=("parallel", "parallel"),       # megacore splits B x T-tiles
            vmem_limit_bytes=vmem_limit),
        cost_estimate=cost,
    )(x_pad, params["dw_w"], params["dw_b"], params["gamma"], params["beta"],
      w1, params["b1"], w2, params["b2"])
    return out


def convnext_block_1d(x, params, **kwargs):
    """PyTorch-layout entry point: x (B, C, T) -> (B, C, T)."""
    out_btc = convnext_block_1d_btc(jnp.transpose(x, (0, 2, 1)), params, **kwargs)
    return jnp.transpose(out_btc, (0, 2, 1))


def init_params(key, dim: int, kernel_size: int = 7, expansion: int = 4):
    """Deterministic synthetic parameters matching the nn.Module shapes."""
    hidden = expansion * dim
    ks = jax.random.split(key, 6)
    # nn.Conv1d(dim, dim, K, groups=dim): weight (dim, 1, K) -> stored as (K, dim)
    dw_w = 0.1 * jax.random.normal(ks[0], (kernel_size, dim), jnp.float32)
    dw_b = 0.1 * jax.random.normal(ks[1], (1, dim), jnp.float32)
    gamma = jnp.ones((1, dim), jnp.float32)
    beta = jnp.zeros((1, dim), jnp.float32)
    # nn.Linear(dim, hidden): weight (hidden, dim) -> stored transposed (dim, hidden)
    w1 = 0.1 * jax.random.normal(ks[2], (dim, hidden), jnp.float32)
    b1 = 0.1 * jax.random.normal(ks[3], (1, hidden), jnp.float32)
    # nn.Linear(hidden, dim): weight (dim, hidden) -> stored transposed (hidden, dim)
    w2 = 0.1 * jax.random.normal(ks[4], (hidden, dim), jnp.float32)
    b2 = 0.1 * jax.random.normal(ks[5], (1, dim), jnp.float32)
    return dict(dw_w=dw_w, dw_b=dw_b, gamma=gamma, beta=beta,
                w1=w1, b1=b1, w2=w2, b2=b2)


def _reference(x, params, kernel_size=7, eps=1e-5, matmul_dtype=None):
    """Pure-JAX reference of the PyTorch forward pass.

    matmul_dtype=None -> exact f32 matmuls (HIGHEST precision); otherwise the
    pointwise-matmul operands are cast to matmul_dtype to mirror the kernel's
    bf16-operand / f32-accumulate MXU contract.
    """
    B, C, T = x.shape
    K = kernel_size
    pad = K // 2
    x_btc = jnp.transpose(x, (0, 2, 1))
    xp = jnp.pad(x_btc, ((0, 0), (pad, K - 1 - pad), (0, 0)))
    conv = params["dw_b"][0] + sum(
        xp[:, k:k + T, :] * params["dw_w"][k] for k in range(K))
    mean = jnp.mean(conv, axis=-1, keepdims=True)
    var = jnp.mean((conv - mean) ** 2, axis=-1, keepdims=True)
    xn = (conv - mean) / jnp.sqrt(var + eps) * params["gamma"][0] + params["beta"][0]

    def mm(a, b):
        if matmul_dtype is None:
            return jnp.dot(a, b, precision=lax.Precision.HIGHEST,
                           preferred_element_type=jnp.float32)
        return jnp.dot(a.astype(matmul_dtype), b.astype(matmul_dtype),
                       preferred_element_type=jnp.float32)

    h = mm(xn, params["w1"]) + params["b1"][0]
    h = 0.5 * h * (1.0 + lax.erf(h / math.sqrt(2.0)))
    out = mm(h, params["w2"]) + params["b2"][0]
    return x + jnp.transpose(out, (0, 2, 1))


if __name__ == "__main__":
    # Small but lane-dense config: C is a multiple of 128 so channels map densely
    # onto the lane axis; tile_t=64 exercises the time-tiled grid (2 tiles / batch row).
    B, C, T = 2, 128, 128
    K, EXP = 7, 4

    key = jax.random.PRNGKey(0)
    kx, kp = jax.random.split(key)
    x = jax.random.normal(kx, (B, C, T), jnp.float32)    # PyTorch (B, C, T) layout
    params = init_params(kp, C, kernel_size=K, expansion=EXP)

    out = convnext_block_1d(x, params, kernel_size=K, tile_t=64)
    out = jax.block_until_ready(out)
    assert out.shape == (B, C, T)

    # Kernel-logic check: reference with the same bf16-operand / f32-accum matmul contract.
    ref_bf16 = _reference(x, params, kernel_size=K, matmul_dtype=jnp.bfloat16)
    assert jnp.allclose(out, ref_bf16, atol=1e-2, rtol=1e-2), "mismatch vs bf16 reference"

    # Sanity bound against the exact f32 reference (tolerance = bf16 quantization noise).
    ref_f32 = _reference(x, params, kernel_size=K)
    assert jnp.allclose(out, ref_f32, atol=1.5e-1, rtol=1e-1), "mismatch vs f32 reference"

    print("KERNEL_OK")
</pallas_src>

<mosaic_0001>
module attributes {stable_mosaic.version = 11 : i64} {
  func.func @_convnext_kernel(%arg0: i32, %arg1: i32, %arg2: memref<1x136x128xf32, #tpu.memory_space<vmem>>, %arg3: memref<7x128xf32, #tpu.memory_space<vmem>>, %arg4: memref<1x128xf32, #tpu.memory_space<vmem>>, %arg5: memref<1x128xf32, #tpu.memory_space<vmem>>, %arg6: memref<1x128xf32, #tpu.memory_space<vmem>>, %arg7: memref<128x512xbf16, #tpu.memory_space<vmem>>, %arg8: memref<1x512xf32, #tpu.memory_space<vmem>>, %arg9: memref<512x128xbf16, #tpu.memory_space<vmem>>, %arg10: memref<1x128xf32, #tpu.memory_space<vmem>>, %arg11: memref<1x64x128xf32, #tpu.memory_space<vmem>>) attributes {dimension_semantics = [#tpu.dimension_semantics<parallel>, #tpu.dimension_semantics<parallel>], iteration_bounds = array<i64: 2, 2>, scalar_prefetch = 0 : i64, scratch_operands = 0 : i64, tpu.core_type = #tpu.core_type<tc>, window_params = [{transform_indices = @transform_0, window_bounds = array<i64: 1, 136, 128>}, {pipeline_mode = #tpu.pipeline_mode<synchronous>, transform_indices = @transform_1, window_bounds = array<i64: 7, 128>}, {pipeline_mode = #tpu.pipeline_mode<synchronous>, transform_indices = @transform_2, window_bounds = array<i64: 1, 128>}, {pipeline_mode = #tpu.pipeline_mode<synchronous>, transform_indices = @transform_3, window_bounds = array<i64: 1, 128>}, {pipeline_mode = #tpu.pipeline_mode<synchronous>, transform_indices = @transform_4, window_bounds = array<i64: 1, 128>}, {pipeline_mode = #tpu.pipeline_mode<synchronous>, transform_indices = @transform_5, window_bounds = array<i64: 128, 512>}, {pipeline_mode = #tpu.pipeline_mode<synchronous>, transform_indices = @transform_6, window_bounds = array<i64: 1, 512>}, {pipeline_mode = #tpu.pipeline_mode<synchronous>, transform_indices = @transform_7, window_bounds = array<i64: 512, 128>}, {pipeline_mode = #tpu.pipeline_mode<synchronous>, transform_indices = @transform_8, window_bounds = array<i64: 1, 128>}, {transform_indices = @transform_9, window_bounds = array<i64: 1, 64, 128>}]} {
    %c64_i32 = arith.constant 64 : i32
    %0 = arith.muli %arg1, %c64_i32 : i32
    %1 = tpu.assume_multiple %0, 8 : i32
    %c0 = arith.constant 0 : index
    %2 = arith.index_cast %1 : i32 to index
    %c0_0 = arith.constant 0 : index
    %3 = vector.load %arg2[%c0, %2, %c0_0] : memref<1x136x128xf32, #tpu.memory_space<vmem>>, vector<1x72x128xf32>
    %4 = vector.shape_cast %3 : vector<1x72x128xf32> to vector<72x128xf32>
    %c0_1 = arith.constant 0 : index
    %c0_2 = arith.constant 0 : index
    %5 = vector.load %arg3[%c0_1, %c0_2] : memref<7x128xf32, #tpu.memory_space<vmem>>, vector<7x128xf32>
    %c0_3 = arith.constant 0 : index
    %c0_4 = arith.constant 0 : index
    %6 = vector.load %arg4[%c0_3, %c0_4] : memref<1x128xf32, #tpu.memory_space<vmem>>, vector<1x128xf32>
    %7 = vector.shape_cast %6 : vector<1x128xf32> to vector<128xf32>
    %8 = vector.shape_cast %7 : vector<128xf32> to vector<1x128xf32>
    %9 = vector.broadcast %8 : vector<1x128xf32> to vector<64x128xf32>
    %10 = vector.extract_strided_slice %4 {offsets = [0, 0], sizes = [64, 128], strides = [1, 1]} : vector<72x128xf32> to vector<64x128xf32>
    %11 = vector.extract_strided_slice %5 {offsets = [0, 0], sizes = [1, 128], strides = [1, 1]} : vector<7x128xf32> to vector<1x128xf32>
    %12 = vector.shape_cast %11 : vector<1x128xf32> to vector<128xf32>
    %13 = vector.shape_cast %12 : vector<128xf32> to vector<1x128xf32>
    %14 = vector.broadcast %13 : vector<1x128xf32> to vector<64x128xf32>
    %15 = arith.mulf %10, %14 : vector<64x128xf32>
    %16 = arith.addf %9, %15 : vector<64x128xf32>
    %c71_i32 = arith.constant 71 : i32
    %17 = tpu.dynamic_rotate %4 by %c71_i32 dim 0 : vector<72x128xf32>, i32 -> vector<72x128xf32>
    %18 = vector.extract_strided_slice %17 {offsets = [0, 0], sizes = [64, 128], strides = [1, 1]} : vector<72x128xf32> to vector<64x128xf32>
    %19 = vector.extract_strided_slice %5 {offsets = [1, 0], sizes = [1, 128], strides = [1, 1]} : vector<7x128xf32> to vector<1x128xf32>
    %20 = vector.shape_cast %19 : vector<1x128xf32> to vector<128xf32>
    %21 = vector.shape_cast %20 : vector<128xf32> to vector<1x128xf32>
    %22 = vector.broadcast %21 : vector<1x128xf32> to vector<64x128xf32>
    %23 = arith.mulf %18, %22 : vector<64x128xf32>
    %24 = arith.addf %16, %23 : vector<64x128xf32>
    %c70_i32 = arith.constant 70 : i32
    %25 = tpu.dynamic_rotate %4 by %c70_i32 dim 0 : vector<72x128xf32>, i32 -> vector<72x128xf32>
    %26 = vector.extract_strided_slice %25 {offsets = [0, 0], sizes = [64, 128], strides = [1, 1]} : vector<72x128xf32> to vector<64x128xf32>
    %27 = vector.extract_strided_slice %5 {offsets = [2, 0], sizes = [1, 128], strides = [1, 1]} : vector<7x128xf32> to vector<1x128xf32>
    %28 = vector.shape_cast %27 : vector<1x128xf32> to vector<128xf32>
    %29 = vector.shape_cast %28 : vector<128xf32> to vector<1x128xf32>
    %30 = vector.broadcast %29 : vector<1x128xf32> to vector<64x128xf32>
    %31 = arith.mulf %26, %30 : vector<64x128xf32>
    %32 = arith.addf %24, %31 : vector<64x128xf32>
    %c69_i32 = arith.constant 69 : i32
    %33 = tpu.dynamic_rotate %4 by %c69_i32 dim 0 : vector<72x128xf32>, i32 -> vector<72x128xf32>
    %34 = vector.extract_strided_slice %33 {offsets = [0, 0], sizes = [64, 128], strides = [1, 1]} : vector<72x128xf32> to vector<64x128xf32>
    %35 = vector.extract_strided_slice %5 {offsets = [3, 0], sizes = [1, 128], strides = [1, 1]} : vector<7x128xf32> to vector<1x128xf32>
    %36 = vector.shape_cast %35 : vector<1x128xf32> to vector<128xf32>
    %37 = vector.shape_cast %36 : vector<128xf32> to vector<1x128xf32>
    %38 = vector.broadcast %37 : vector<1x128xf32> to vector<64x128xf32>
    %39 = arith.mulf %34, %38 : vector<64x128xf32>
    %40 = arith.addf %32, %39 : vector<64x128xf32>
    %c68_i32 = arith.constant 68 : i32
    %41 = tpu.dynamic_rotate %4 by %c68_i32 dim 0 : vector<72x128xf32>, i32 -> vector<72x128xf32>
    %42 = vector.extract_strided_slice %41 {offsets = [0, 0], sizes = [64, 128], strides = [1, 1]} : vector<72x128xf32> to vector<64x128xf32>
    %43 = vector.extract_strided_slice %5 {offsets = [4, 0], sizes = [1, 128], strides = [1, 1]} : vector<7x128xf32> to vector<1x128xf32>
    %44 = vector.shape_cast %43 : vector<1x128xf32> to vector<128xf32>
    %45 = vector.shape_cast %44 : vector<128xf32> to vector<1x128xf32>
    %46 = vector.broadcast %45 : vector<1x128xf32> to vector<64x128xf32>
    %47 = arith.mulf %42, %46 : vector<64x128xf32>
    %48 = arith.addf %40, %47 : vector<64x128xf32>
    %c67_i32 = arith.constant 67 : i32
    %49 = tpu.dynamic_rotate %4 by %c67_i32 dim 0 : vector<72x128xf32>, i32 -> vector<72x128xf32>
    %50 = vector.extract_strided_slice %49 {offsets = [0, 0], sizes = [64, 128], strides = [1, 1]} : vector<72x128xf32> to vector<64x128xf32>
    %51 = vector.extract_strided_slice %5 {offsets = [5, 0], sizes = [1, 128], strides = [1, 1]} : vector<7x128xf32> to vector<1x128xf32>
    %52 = vector.shape_cast %51 : vector<1x128xf32> to vector<128xf32>
    %53 = vector.shape_cast %52 : vector<128xf32> to vector<1x128xf32>
    %54 = vector.broadcast %53 : vector<1x128xf32> to vector<64x128xf32>
    %55 = arith.mulf %50, %54 : vector<64x128xf32>
    %56 = arith.addf %48, %55 : vector<64x128xf32>
    %c66_i32 = arith.constant 66 : i32
    %57 = tpu.dynamic_rotate %4 by %c66_i32 dim 0 : vector<72x128xf32>, i32 -> vector<72x128xf32>
    %58 = vector.extract_strided_slice %57 {offsets = [0, 0], sizes = [64, 128], strides = [1, 1]} : vector<72x128xf32> to vector<64x128xf32>
    %59 = vector.extract_strided_slice %5 {offsets = [6, 0], sizes = [1, 128], strides = [1, 1]} : vector<7x128xf32> to vector<1x128xf32>
    %60 = vector.shape_cast %59 : vector<1x128xf32> to vector<128xf32>
    %61 = vector.shape_cast %60 : vector<128xf32> to vector<1x128xf32>
    %62 = vector.broadcast %61 : vector<1x128xf32> to vector<64x128xf32>
    %63 = arith.mulf %58, %62 : vector<64x128xf32>
    %64 = arith.addf %56, %63 : vector<64x128xf32>
    %cst = arith.constant dense<0.000000e+00> : vector<64xf32>
    %65 = vector.multi_reduction <add>, %64, %cst [1] : vector<64x128xf32> to vector<64xf32>
    %66 = vector.shape_cast %65 : vector<64xf32> to vector<64x1xf32>
    %cst_5 = arith.constant 1.280000e+02 : f32
    %67 = vector.broadcast %cst_5 : f32 to vector<64x1xf32>
    %68 = arith.divf %66, %67 : vector<64x1xf32>
    %69 = vector.broadcast %68 : vector<64x1xf32> to vector<64x128xf32>
    %70 = arith.subf %64, %69 : vector<64x128xf32>
    %71 = arith.mulf %70, %70 : vector<64x128xf32>
    %cst_6 = arith.constant dense<0.000000e+00> : vector<64xf32>
    %72 = vector.multi_reduction <add>, %71, %cst_6 [1] : vector<64x128xf32> to vector<64xf32>
    %73 = vector.shape_cast %72 : vector<64xf32> to vector<64x1xf32>
    %cst_7 = arith.constant 1.280000e+02 : f32
    %74 = vector.broadcast %cst_7 : f32 to vector<64x1xf32>
    %75 = arith.divf %73, %74 : vector<64x1xf32>
    %cst_8 = arith.constant 9.99999974E-6 : f32
    %76 = vector.broadcast %cst_8 : f32 to vector<64x1xf32>
    %77 = arith.addf %75, %76 : vector<64x1xf32>
    %78 = math.rsqrt %77 : vector<64x1xf32>
    %79 = vector.broadcast %78 : vector<64x1xf32> to vector<64x128xf32>
    %80 = arith.mulf %70, %79 : vector<64x128xf32>
    %c0_9 = arith.constant 0 : index
    %c0_10 = arith.constant 0 : index
    %81 = vector.load %arg5[%c0_9, %c0_10] : memref<1x128xf32, #tpu.memory_space<vmem>>, vector<1x128xf32>
    %82 = vector.shape_cast %81 : vector<1x128xf32> to vector<128xf32>
    %83 = vector.shape_cast %82 : vector<128xf32> to vector<1x128xf32>
    %84 = vector.broadcast %83 : vector<1x128xf32> to vector<64x128xf32>
    %85 = arith.mulf %80, %84 : vector<64x128xf32>
    %c0_11 = arith.constant 0 : index
    %c0_12 = arith.constant 0 : index
    %86 = vector.load %arg6[%c0_11, %c0_12] : memref<1x128xf32, #tpu.memory_space<vmem>>, vector<1x128xf32>
    %87 = vector.shape_cast %86 : vector<1x128xf32> to vector<128xf32>
    %88 = vector.shape_cast %87 : vector<128xf32> to vector<1x128xf32>
    %89 = vector.broadcast %88 : vector<1x128xf32> to vector<64x128xf32>
    %90 = arith.addf %85, %89 : vector<64x128xf32>
    %91 = arith.truncf %90 : vector<64x128xf32> to vector<64x128xbf16>
    %c0_13 = arith.constant 0 : index
    %c0_14 = arith.constant 0 : index
    %92 = vector.load %arg7[%c0_13, %c0_14] : memref<128x512xbf16, #tpu.memory_space<vmem>>, vector<128x512xbf16>
    %cst_15 = arith.constant dense<0.000000e+00> : vector<64x512xf32>
    %93 = tpu.matmul %91, %92, %cst_15 {dimension_numbers = #tpu.dot_dimension_numbers<[1], [0], [0], [1], [0, 0, 1, 1], [], []>} : vector<64x128xbf16>, vector<128x512xbf16>, vector<64x512xf32> -> vector<64x512xf32>
    %c0_16 = arith.constant 0 : index
    %c0_17 = arith.constant 0 : index
    %94 = vector.load %arg8[%c0_16, %c0_17] : memref<1x512xf32, #tpu.memory_space<vmem>>, vector<1x512xf32>
    %95 = vector.shape_cast %94 : vector<1x512xf32> to vector<512xf32>
    %96 = vector.shape_cast %95 : vector<512xf32> to vector<1x512xf32>
    %97 = vector.broadcast %96 : vector<1x512xf32> to vector<64x512xf32>
    %98 = arith.addf %93, %97 : vector<64x512xf32>
    %cst_18 = arith.constant 5.000000e-01 : f32
    %99 = vector.broadcast %cst_18 : f32 to vector<64x512xf32>
    %100 = arith.mulf %99, %98 : vector<64x512xf32>
    %cst_19 = arith.constant 0.707106769 : f32
    %101 = vector.broadcast %cst_19 : f32 to vector<64x512xf32>
    %102 = arith.mulf %98, %101 : vector<64x512xf32>
    %103 = math.erf %102 : vector<64x512xf32>
    %cst_20 = arith.constant 1.000000e+00 : f32
    %104 = vector.broadcast %cst_20 : f32 to vector<64x512xf32>
    %105 = arith.addf %104, %103 : vector<64x512xf32>
    %106 = arith.mulf %100, %105 : vector<64x512xf32>
    %107 = arith.truncf %106 : vector<64x512xf32> to vector<64x512xbf16>
    %c0_21 = arith.constant 0 : index
    %c0_22 = arith.constant 0 : index
    %108 = vector.load %arg9[%c0_21, %c0_22] : memref<512x128xbf16, #tpu.memory_space<vmem>>, vector<512x128xbf16>
    %cst_23 = arith.constant dense<0.000000e+00> : vector<64x128xf32>
    %109 = tpu.matmul %107, %108, %cst_23 {dimension_numbers = #tpu.dot_dimension_numbers<[1], [0], [0], [1], [0, 0, 1, 1], [], []>} : vector<64x512xbf16>, vector<512x128xbf16>, vector<64x128xf32> -> vector<64x128xf32>
    %c0_24 = arith.constant 0 : index
    %c0_25 = arith.constant 0 : index
    %110 = vector.load %arg10[%c0_24, %c0_25] : memref<1x128xf32, #tpu.memory_space<vmem>>, vector<1x128xf32>
    %111 = vector.shape_cast %110 : vector<1x128xf32> to vector<128xf32>
    %112 = vector.shape_cast %111 : vector<128xf32> to vector<1x128xf32>
    %113 = vector.broadcast %112 : vector<1x128xf32> to vector<64x128xf32>
    %114 = arith.addf %109, %113 : vector<64x128xf32>
    %115 = arith.addf %34, %114 : vector<64x128xf32>
    %c0_26 = arith.constant 0 : index
    %c0_27 = arith.constant 0 : index
    %c0_28 = arith.constant 0 : index
    %116 = vector.load %arg11[%c0_26, %c0_27, %c0_28] : memref<1x64x128xf32, #tpu.memory_space<vmem>>, vector<1x64x128xf32>
    %117 = vector.shape_cast %116 : vector<1x64x128xf32> to vector<64x128xf32>
    %118 = vector.shape_cast %115 : vector<64x128xf32> to vector<1x64x128xf32>
    tpu.vector_store %arg11[%c0_26, %c0_27, %c0_28], %118 {strides = array<i32>} : memref<1x64x128xf32, #tpu.memory_space<vmem>>, vector<1x64x128xf32>,
    return
  }
  func.func @transform_0(%arg0: i32, %arg1: i32) -> (i32, i32, i32) {
    %c0_i32 = arith.constant 0 : i32
    %c0_i32_0 = arith.constant 0 : i32
    %c0_i32_1 = arith.constant 0 : i32
    return %arg0, %c0_i32, %c0_i32_0 : i32, i32, i32
  }
  func.func @transform_1(%arg0: i32, %arg1: i32) -> (i32, i32) {
    %c0_i32 = arith.constant 0 : i32
    %c0_i32_0 = arith.constant 0 : i32
    %c0_i32_1 = arith.constant 0 : i32
    return %c0_i32, %c0_i32_0 : i32, i32
  }
  func.func @transform_2(%arg0: i32, %arg1: i32) -> (i32, i32) {
    %c0_i32 = arith.constant 0 : i32
    %c0_i32_0 = arith.constant 0 : i32
    %c0_i32_1 = arith.constant 0 : i32
    return %c0_i32, %c0_i32_0 : i32, i32
  }
  func.func @transform_3(%arg0: i32, %arg1: i32) -> (i32, i32) {
    %c0_i32 = arith.constant 0 : i32
    %c0_i32_0 = arith.constant 0 : i32
    %c0_i32_1 = arith.constant 0 : i32
    return %c0_i32, %c0_i32_0 : i32, i32
  }
  func.func @transform_4(%arg0: i32, %arg1: i32) -> (i32, i32) {
    %c0_i32 = arith.constant 0 : i32
    %c0_i32_0 = arith.constant 0 : i32
    %c0_i32_1 = arith.constant 0 : i32
    return %c0_i32, %c0_i32_0 : i32, i32
  }
  func.func @transform_5(%arg0: i32, %arg1: i32) -> (i32, i32) {
    %c0_i32 = arith.constant 0 : i32
    %c0_i32_0 = arith.constant 0 : i32
    %c0_i32_1 = arith.constant 0 : i32
    return %c0_i32, %c0_i32_0 : i32, i32
  }
  func.func @transform_6(%arg0: i32, %arg1: i32) -> (i32, i32) {
    %c0_i32 = arith.constant 0 : i32
    %c0_i32_0 = arith.constant 0 : i32
    %c0_i32_1 = arith.constant 0 : i32
    return %c0_i32, %c0_i32_0 : i32, i32
  }
  func.func @transform_7(%arg0: i32, %arg1: i32) -> (i32, i32) {
    %c0_i32 = arith.constant 0 : i32
    %c0_i32_0 = arith.constant 0 : i32
    %c0_i32_1 = arith.constant 0 : i32
    return %c0_i32, %c0_i32_0 : i32, i32
  }
  func.func @transform_8(%arg0: i32, %arg1: i32) -> (i32, i32) {
    %c0_i32 = arith.constant 0 : i32
    %c0_i32_0 = arith.constant 0 : i32
    %c0_i32_1 = arith.constant 0 : i32
    return %c0_i32, %c0_i32_0 : i32, i32
  }
  func.func @transform_9(%arg0: i32, %arg1: i32) -> (i32, i32, i32) {
    %c0_i32 = arith.constant 0 : i32
    %c0_i32_0 = arith.constant 0 : i32
    return %arg0, %arg1, %c0_i32 : i32, i32, i32
  }
}

</mosaic_0001>

<llo_original>
// kernel: tpu_custom_call.1
$region0: #{tpu_custom_call.1}
  #allocation0 [shape = 'u32[]', space=smem, size = 0x4, offset = 0x4, fixed_abs, tag = 'smem constant byte address 0x4 - core index']
  #allocation1 [shape = 'u32[72,128]{1,0:T(1,128)}', space=vmem, size = 0x9000, scoped, tag = 'internal scratch']
  %s0 = inlined_call_operand.hbm [shape: f32[2,136,128], index: 0, kind: input, shape index: {}]
  %s1 = inlined_call_operand.hbm [shape: f32[7,128], index: 1, kind: input, shape index: {}]
  %s2 = inlined_call_operand.vmem [shape: f32[1,128], index: 2, kind: input, shape index: {}]
  %s3 = inlined_call_operand.hbm [shape: f32[1,128], index: 3, kind: input, shape index: {}]
  %s4 = inlined_call_operand.hbm [shape: f32[1,128], index: 4, kind: input, shape index: {}]
  %s5 = inlined_call_operand.hbm [shape: bf16[128,512], index: 5, kind: input, shape index: {}]
  %s6 = inlined_call_operand.vmem [shape: f32[1,512], index: 6, kind: input, shape index: {}]
  %s7 = inlined_call_operand.hbm [shape: bf16[512,128], index: 7, kind: input, shape index: {}]
  %s8 = inlined_call_operand.vmem [shape: f32[1,128], index: 8, kind: input, shape index: {}]
  %s9 = inlined_call_operand.hbm [shape: f32[2,128,128], index: 9, kind: output, shape index: {}]
  %s10 = sld [smem:[#allocation0]]
  $region93: #{tpu_custom_call.1} parent=0
    _
  %s12 = ssub.s32 1, %s10
  %s13 = scalar_select 0, %s12, %s10
  $region1: #{tpu_custom_call.1} parent=0
    #allocation2 [shape = 'u8[139264]{0}', space=vmem, size = 0x22000, scoped, tag = 'input window, operand 0']
    #allocation3 [shape = 's32[2]{0}', space=sflag, size = 0x8, scoped, tag = 'scoped memory for tpu_custom_call.1']
    #allocation4 [shape = 's32[2]{0}', space=sflag, size = 0x8, scoped, tag = 'scoped memory for tpu_custom_call.1']
    #allocation5 [shape = 'u8[4096]{0}', space=vmem, size = 0x1000, scoped, tag = 'input window, operand 1, single buffered']
    #allocation6 [shape = 's32[1]{0}', space=sflag, size = 0x4, scoped, tag = 'scoped memory for tpu_custom_call.1']
    #allocation7 [shape = 'u8[512]{0}', space=vmem, size = 0x400, scoped, tag = 'input window, operand 3, single buffered']
    #allocation8 [shape = 'u8[512]{0}', space=vmem, size = 0x400, scoped, tag = 'input window, operand 4, single buffered']
    #allocation9 [shape = 's32[1]{0}', space=sflag, size = 0x4, scoped, tag = 'scoped memory for tpu_custom_call.1']
    #allocation10 [shape = 'u8[131072]{0}', space=vmem, size = 0x20000, scoped, tag = 'input window, operand 5, single buffered']
    #allocation11 [shape = 'u8[131072]{0}', space=vmem, size = 0x20000, scoped, tag = 'input window, operand 7, single buffered']
    #allocation12 [shape = 's32[1]{0}', space=sflag, size = 0x4, scoped, tag = 'scoped memory for tpu_custom_call.1']
    #allocation13 [shape = 'u8[65536]{0}', space=vmem, size = 0x10000, scoped, tag = 'output window, operand 0']
    %14 = vsyncpa [#allocation3], 0
    %s15 = scalar_lea.sflag [#allocation3], 1
    %16 = vsyncpa %s15, 0
    %17 = vsyncpa [#allocation6], 0
    %18 = vsyncpa [#allocation9], 0
    %19 = vsyncpa [#allocation12], 0
    %20 = vsyncpa [#allocation4], 0
    %s21 = scalar_lea.sflag [#allocation4], 1
    %22 = vsyncpa %s21, 0
    loop: start=0, step=1, limit=6
    $region2: #{tpu_custom_call.1} parent=1 // loop_pre_header
      _
    $region3: #{tpu_custom_call.1} parent=1 // loop_header
      %s24 = sphi 0, %s28
      %p25 = scmp.ge.s32.totalorder %s24, 6
      %s31 = sphi 0, %s43
      %s32 = sphi 0, %s39
      %s33 = sphi 0, %s31
      %s34 = sphi 0, %s32
      %s35 = sphi 0, %s33
      %s36 = sphi 0, %s34
      %s46 = sphi 0, %s48
      %s49 = sphi 0, %s46
      %s50 = sphi 0, %s49
      %s66 = sphi 0, %s50
      %s70 = sphi 0, %s70
      %s72 = sphi 0, %s70
      %s73 = sphi 0, %s72
      %s87 = sphi 0, %s73
      %s91 = sphi 0, %s91
      %s93 = sphi 0, %s91
      %s94 = sphi 0, %s93
      %s108 = sphi 0, %s94
      %s112 = sphi 0, %s112
      %s114 = sphi 0, %s112
      %s115 = sphi 0, %s114
      %s129 = sphi 0, %s115
      %s133 = sphi 0, %s133
      %s135 = sphi 0, %s133
      %s136 = sphi 0, %s135
      %s150 = sphi 0, %s136
      %s154 = sphi 0, %s154
      %s156 = sphi 0, %s154
      %s157 = sphi 0, %s156
      %s171 = sphi 0, %s157
      %s175 = sphi 0, %s175
      %s177 = sphi 0, %s175
      %s178 = sphi 0, %s177
      %s192 = sphi 0, %s178
      %s196 = sphi 0, %s196
      %s198 = sphi 0, %s196
      %s199 = sphi 0, %s198
      %s213 = sphi 0, %s199
      %s217 = sphi 0, %s217
      %s219 = sphi 0, %s217
      %s220 = sphi 0, %s219
      %s234 = sphi 0, %s220
      %s242 = sphi 0, %s244
      %s245 = sphi 0, %s242
      %s246 = sphi 0, %s245
      %s262 = sphi 0, %s246
    $region4: #{tpu_custom_call.1} parent=1 // loop_header_branch
      %27 = sbr.rel (%p25) target = $region8
    $region5: #{tpu_custom_call.1} parent=1 // loop_body
      %s29 = ssub.s32 %s24, 1
      %s30 = ssub.s32 %s24, 2
      %s37 = sadd.s32 1, %s32
      %p38 = scmp.ge.s32.totalorder %s37, 2
      %s39 = scalar_select %p38, 0, %s37
      %s40 = sadd.s32 1, %s31
      %s41 = scalar_select %p38, %s40, %s31
      %p42 = scmp.ge.s32.totalorder %s41, 2
      %s43 = scalar_select %p42, 0, %s41
      %s44 = ssub.s32 %s31, %s43
      %p45 = scmp.eq.s32.totalorder %s44, 0
      %s47 = sadd.s32 %s46, 1
      %s48 = scalar_select %p45, %s46, %s47
      %p51 = pneg %p45
      %p52 = scmp.eq.s32.totalorder %s24, 3
      %p53 = por %p51, %p52
      %p54 = scmp.ne.s32.totalorder %s46, %s49
      %p55 = scmp.eq.s32.totalorder %s24, 0
      %p56 = por %p54, %p55
      %p57 = scmp.ne.s32.totalorder %s46, %s49
      %p58 = scmp.eq.s32.totalorder %s29, 3
      %p59 = por %p57, %p58
      %p60 = scmp.ne.s32.totalorder %s49, %s50
      %p61 = scmp.eq.s32.totalorder %s29, 0
      %p62 = por %p60, %p61
      %p63 = scmp.ne.s32.totalorder %s49, %s50
      %p64 = scmp.eq.s32.totalorder %s30, 3
      %p65 = por %p63, %p64
      %p67 = scmp.ne.s32.totalorder %s50, %s66
      %p68 = scmp.eq.s32.totalorder %s30, 0
      %p69 = por %p67, %p68
      %s71 = sadd.s32 %s70, 1
      %p74 = scmp.eq.s32.totalorder %s24, 3
      %p75 = scmp.ne.s32.totalorder %s70, %s72
      %p76 = scmp.eq.s32.totalorder %s24, 0
      %p77 = por %p75, %p76
      %p78 = scmp.ne.s32.totalorder %s70, %s72
      %p79 = scmp.eq.s32.totalorder %s29, 3
      %p80 = por %p78, %p79
      %p81 = scmp.ne.s32.totalorder %s72, %s73
      %p82 = scmp.eq.s32.totalorder %s29, 0
      %p83 = por %p81, %p82
      %p84 = scmp.ne.s32.totalorder %s72, %s73
      %p85 = scmp.eq.s32.totalorder %s30, 3
      %p86 = por %p84, %p85
      %p88 = scmp.ne.s32.totalorder %s73, %s87
      %p89 = scmp.eq.s32.totalorder %s30, 0
      %p90 = por %p88, %p89
      %s92 = sadd.s32 %s91, 1
      %p95 = scmp.eq.s32.totalorder %s24, 3
      %p96 = scmp.ne.s32.totalorder %s91, %s93
      %p97 = scmp.eq.s32.totalorder %s24, 0
      %p98 = por %p96, %p97
      %p99 = scmp.ne.s32.totalorder %s91, %s93
      %p100 = scmp.eq.s32.totalorder %s29, 3
      %p101 = por %p99, %p100
      %p102 = scmp.ne.s32.totalorder %s93, %s94
      %p103 = scmp.eq.s32.totalorder %s29, 0
      %p104 = por %p102, %p103
      %p105 = scmp.ne.s32.totalorder %s93, %s94
      %p106 = scmp.eq.s32.totalorder %s30, 3
      %p107 = por %p105, %p106
      %p109 = scmp.ne.s32.totalorder %s94, %s108
      %p110 = scmp.eq.s32.totalorder %s30, 0
      %p111 = por %p109, %p110
      %s113 = sadd.s32 %s112, 1
      %p116 = scmp.eq.s32.totalorder %s24, 3
      %p117 = scmp.ne.s32.totalorder %s112, %s114
      %p118 = scmp.eq.s32.totalorder %s24, 0
      %p119 = por %p117, %p118
      %p120 = scmp.ne.s32.totalorder %s112, %s114
      %p121 = scmp.eq.s32.totalorder %s29, 3
      %p122 = por %p120, %p121
      %p123 = scmp.ne.s32.totalorder %s114, %s115
      %p124 = scmp.eq.s32.totalorder %s29, 0
      %p125 = por %p123, %p124
      %p126 = scmp.ne.s32.totalorder %s114, %s115
      %p127 = scmp.eq.s32.totalorder %s30, 3
      %p128 = por %p126, %p127
      %p130 = scmp.ne.s32.totalorder %s115, %s129
      %p131 = scmp.eq.s32.totalorder %s30, 0
      %p132 = por %p130, %p131
      %s134 = sadd.s32 %s133, 1
      %p137 = scmp.eq.s32.totalorder %s24, 3
      %p138 = scmp.ne.s32.totalorder %s133, %s135
      %p139 = scmp.eq.s32.totalorder %s24, 0
      %p140 = por %p138, %p139
      %p141 = scmp.ne.s32.totalorder %s133, %s135
      %p142 = scmp.eq.s32.totalorder %s29, 3
      %p143 = por %p141, %p142
      %p144 = scmp.ne.s32.totalorder %s135, %s136
      %p145 = scmp.eq.s32.totalorder %s29, 0
      %p146 = por %p144, %p145
      %p147 = scmp.ne.s32.totalorder %s135, %s136
      %p148 = scmp.eq.s32.totalorder %s30, 3
      %p149 = por %p147, %p148
      %p151 = scmp.ne.s32.totalorder %s136, %s150
      %p152 = scmp.eq.s32.totalorder %s30, 0
      %p153 = por %p151, %p152
      %s155 = sadd.s32 %s154, 1
      %p158 = scmp.eq.s32.totalorder %s24, 3
      %p159 = scmp.ne.s32.totalorder %s154, %s156
      %p160 = scmp.eq.s32.totalorder %s24, 0
      %p161 = por %p159, %p160
      %p162 = scmp.ne.s32.totalorder %s154, %s156
      %p163 = scmp.eq.s32.totalorder %s29, 3
      %p164 = por %p162, %p163
      %p165 = scmp.ne.s32.totalorder %s156, %s157
      %p166 = scmp.eq.s32.totalorder %s29, 0
      %p167 = por %p165, %p166
      %p168 = scmp.ne.s32.totalorder %s156, %s157
      %p169 = scmp.eq.s32.totalorder %s30, 3
      %p170 = por %p168, %p169
      %p172 = scmp.ne.s32.totalorder %s157, %s171
      %p173 = scmp.eq.s32.totalorder %s30, 0
      %p174 = por %p172, %p173
      %s176 = sadd.s32 %s175, 1
      %p179 = scmp.eq.s32.totalorder %s24, 3
      %p180 = scmp.ne.s32.totalorder %s175, %s177
      %p181 = scmp.eq.s32.totalorder %s24, 0
      %p182 = por %p180, %p181
      %p183 = scmp.ne.s32.totalorder %s175, %s177
      %p184 = scmp.eq.s32.totalorder %s29, 3
      %p185 = por %p183, %p184
      %p186 = scmp.ne.s32.totalorder %s177, %s178
      %p187 = scmp.eq.s32.totalorder %s29, 0
      %p188 = por %p186, %p187
      %p189 = scmp.ne.s32.totalorder %s177, %s178
      %p190 = scmp.eq.s32.totalorder %s30, 3
      %p191 = por %p189, %p190
      %p193 = scmp.ne.s32.totalorder %s178, %s192
      %p194 = scmp.eq.s32.totalorder %s30, 0
      %p195 = por %p193, %p194
      %s197 = sadd.s32 %s196, 1
      %p200 = scmp.eq.s32.totalorder %s24, 3
      %p201 = scmp.ne.s32.totalorder %s196, %s198
      %p202 = scmp.eq.s32.totalorder %s24, 0
      %p203 = por %p201, %p202
      %p204 = scmp.ne.s32.totalorder %s196, %s198
      %p205 = scmp.eq.s32.totalorder %s29, 3
      %p206 = por %p204, %p205
      %p207 = scmp.ne.s32.totalorder %s198, %s199
      %p208 = scmp.eq.s32.totalorder %s29, 0
      %p209 = por %p207, %p208
      %p210 = scmp.ne.s32.totalorder %s198, %s199
      %p211 = scmp.eq.s32.totalorder %s30, 3
      %p212 = por %p210, %p211
      %p214 = scmp.ne.s32.totalorder %s199, %s213
      %p215 = scmp.eq.s32.totalorder %s30, 0
      %p216 = por %p214, %p215
      %s218 = sadd.s32 %s217, 1
      %p221 = scmp.eq.s32.totalorder %s24, 3
      %p222 = scmp.ne.s32.totalorder %s217, %s219
      %p223 = scmp.eq.s32.totalorder %s24, 0
      %p224 = por %p222, %p223
      %p225 = scmp.ne.s32.totalorder %s217, %s219
      %p226 = scmp.eq.s32.totalorder %s29, 3
      %p227 = por %p225, %p226
      %p228 = scmp.ne.s32.totalorder %s219, %s220
      %p229 = scmp.eq.s32.totalorder %s29, 0
      %p230 = por %p228, %p229
      %p231 = scmp.ne.s32.totalorder %s219, %s220
      %p232 = scmp.eq.s32.totalorder %s30, 3
      %p233 = por %p231, %p232
      %p235 = scmp.ne.s32.totalorder %s220, %s234
      %p236 = scmp.eq.s32.totalorder %s30, 0
      %p237 = por %p235, %p236
      %s238 = ssub.s32 %s31, %s43
      %s239 = ssub.s32 %s32, %s39
      %s240 = sor.u32 %s238, %s239
      %p241 = scmp.eq.s32.totalorder %s240, 0
      %s243 = sadd.s32 %s242, 1
      %s244 = scalar_select %p241, %s242, %s243
      %p247 = pneg %p241
      %p248 = scmp.eq.s32.totalorder %s24, 3
      %p249 = por %p247, %p248
      %p250 = scmp.ne.s32.totalorder %s242, %s245
      %p251 = scmp.eq.s32.totalorder %s24, 0
      %p252 = por %p250, %p251
      %p253 = scmp.ne.s32.totalorder %s242, %s245
      %p254 = scmp.eq.s32.totalorder %s29, 3
      %p255 = por %p253, %p254
      %p256 = scmp.ne.s32.totalorder %s245, %s246
      %p257 = scmp.eq.s32.totalorder %s29, 0
      %p258 = por %p256, %p257
      %p259 = scmp.ne.s32.totalorder %s245, %s246
      %p260 = scmp.eq.s32.totalorder %s30, 3
      %p261 = por %p259, %p260
      %p263 = scmp.ne.s32.totalorder %s246, %s262
      %p264 = scmp.eq.s32.totalorder %s30, 0
      %p265 = por %p263, %p264
      %p266 = scmp.le.s32.totalorder 1, %s24
      %p267 = scmp.lt.s32.totalorder %s24, 5
      %p268 = pnand %p266, %p267
      %p269 = pneg %p268
      // Predicated region
      $region9: #{tpu_custom_call.1} parent=5 // pred_check
        _
      $region10: #{tpu_custom_call.1} parent=5 // pred_check_branch
        %271 = sbr.rel (%p268) target = $region12
      $region11: #{tpu_custom_call.1} parent=5 // pred_region
        %s272 = ssub.s32 %s24, 1
        // Predicated region
        $region13: #{tpu_custom_call.1} parent=11 // pred_check
          %p273 = pneg %p83
        $region14: #{tpu_custom_call.1} parent=11 // pred_check_branch
          %275 = sbr.rel (%p273) target = $region16
        $region15: #{tpu_custom_call.1} parent=11 // pred_region
          %277 = vsyncadd [#allocation6], 0
          %s279 = sshll.u32 %s1, 4
          %s280 = int_to_ptr.hbm [resolvable:$true] %s279
          %s281 = sshll.u32 [#allocation5], 4
          %s282 = int_to_ptr.vmem [resolvable:$true] %s281
          %284 = dma.hbm_to_vmem [thread:$0]  %s280, 128, %s282, [#allocation6]
        $region16: #{tpu_custom_call.1} parent=11 // pred_fallthru
          _
        // Predicated region
        $region17: #{tpu_custom_call.1} parent=11 // pred_check
          %p285 = pneg %p104
        $region18: #{tpu_custom_call.1} parent=11 // pred_check_branch
          %287 = sbr.rel (%p285) target = $region20
        $region19: #{tpu_custom_call.1} parent=11 // pred_region
          _
        $region20: #{tpu_custom_call.1} parent=11 // pred_fallthru
          _
        // Predicated region
        $region21: #{tpu_custom_call.1} parent=11 // pred_check
          %p288 = pneg %p125
        $region22: #{tpu_custom_call.1} parent=11 // pred_check_branch
          %290 = sbr.rel (%p288) target = $region24
        $region23: #{tpu_custom_call.1} parent=11 // pred_region
          %292 = vsyncadd [#allocation6], 0
          %s294 = sshll.u32 %s3, 4
          %s295 = int_to_ptr.hbm [resolvable:$true] %s294
          %s296 = sshll.u32 [#allocation7], 4
          %s297 = int_to_ptr.vmem [resolvable:$true] %s296
          %299 = dma.hbm_to_vmem [thread:$0]  %s295, 16, %s297, [#allocation6]
        $region24: #{tpu_custom_call.1} parent=11 // pred_fallthru
          _
        // Predicated region
        $region25: #{tpu_custom_call.1} parent=11 // pred_check
          %p300 = pneg %p146
        $region26: #{tpu_custom_call.1} parent=11 // pred_check_branch
          %302 = sbr.rel (%p300) target = $region28
        $region27: #{tpu_custom_call.1} parent=11 // pred_region
          %304 = vsyncadd [#allocation9], 0
          %s306 = sshll.u32 %s4, 4
          %s307 = int_to_ptr.hbm [resolvable:$true] %s306
          %s308 = sshll.u32 [#allocation8], 4
          %s309 = int_to_ptr.vmem [resolvable:$true] %s308
          %311 = dma.hbm_to_vmem [thread:$0]  %s307, 16, %s309, [#allocation9]
        $region28: #{tpu_custom_call.1} parent=11 // pred_fallthru
          _
        // Predicated region
        $region29: #{tpu_custom_call.1} parent=11 // pred_check
          %p312 = pneg %p167
        $region30: #{tpu_custom_call.1} parent=11 // pred_check_branch
          %314 = sbr.rel (%p312) target = $region32
        $region31: #{tpu_custom_call.1} parent=11 // pred_region
          %316 = vsyncadd [#allocation9], 0
          %s317 = sshll.u32 %s5, 4
          %s318 = int_to_ptr.hbm [resolvable:$true] %s317
          %s319 = sshll.u32 [#allocation10], 4
          %s320 = int_to_ptr.vmem [resolvable:$true] %s319
          %325 = dma.hbm_to_vmem [thread:$0]  %s318, 4096, %s320, [#allocation9], 256, 256, 16
        $region32: #{tpu_custom_call.1} parent=11 // pred_fallthru
          _
        // Predicated region
        $region33: #{tpu_custom_call.1} parent=11 // pred_check
          %p326 = pneg %p188
        $region34: #{tpu_custom_call.1} parent=11 // pred_check_branch
          %328 = sbr.rel (%p326) target = $region36
        $region35: #{tpu_custom_call.1} parent=11 // pred_region
          _
        $region36: #{tpu_custom_call.1} parent=11 // pred_fallthru
          _
        // Predicated region
        $region37: #{tpu_custom_call.1} parent=11 // pred_check
          %p329 = pneg %p209
        $region38: #{tpu_custom_call.1} parent=11 // pred_check_branch
          %331 = sbr.rel (%p329) target = $region40
        $region39: #{tpu_custom_call.1} parent=11 // pred_region
          %333 = vsyncadd [#allocation12], 0
          %s334 = sshll.u32 %s7, 4
          %s335 = int_to_ptr.hbm [resolvable:$true] %s334
          %s336 = sshll.u32 [#allocation11], 4
          %s337 = int_to_ptr.vmem [resolvable:$true] %s336
          %342 = dma.hbm_to_vmem [thread:$0]  %s335, 4096, %s337, [#allocation12], 64, 64, 4
        $region40: #{tpu_custom_call.1} parent=11 // pred_fallthru
          _
        // Predicated region
        $region41: #{tpu_custom_call.1} parent=11 // pred_check
          %p343 = pneg %p230
        $region42: #{tpu_custom_call.1} parent=11 // pred_check_branch
          %345 = sbr.rel (%p343) target = $region44
        $region43: #{tpu_custom_call.1} parent=11 // pred_region
          _
        $region44: #{tpu_custom_call.1} parent=11 // pred_fallthru
          _
      $region12: #{tpu_custom_call.1} parent=5 // pred_fallthru
        _
      %p346 = scmp.lt.s32.totalorder %s24, 4
      // Predicated region
      $region45: #{tpu_custom_call.1} parent=5 // pred_check
        %p347 = pneg %p346
      $region46: #{tpu_custom_call.1} parent=5 // pred_check_branch
        %349 = sbr.rel (%p347) target = $region48
      $region47: #{tpu_custom_call.1} parent=5 // pred_region
        // Predicated region
        $region49: #{tpu_custom_call.1} parent=47 // pred_check
          %p350 = pneg %p56
        $region50: #{tpu_custom_call.1} parent=47 // pred_check_branch
          %352 = sbr.rel (%p350) target = $region52
        $region51: #{tpu_custom_call.1} parent=47 // pred_region
          %s353 = sand.u32 %s46, 1
          %s354 = scalar_lea.sflag [#allocation3], %s353
          %s355 = sand.u32 %s46, 1
          %s356 = smul.addr %s355, 136
          %s357 = scalar_lea.vmem [#allocation2], %s356
          %359 = vsyncadd %s354, 0
          %s360 = smul.addr %s31, 17
          %s361 = smul.addr %s360, 8
          %s362 = scalar_lea.hbm %s0, %s361
          %s363 = sshll.u32 %s362, 4
          %s364 = int_to_ptr.hbm [resolvable:$true] %s363
          %s365 = sshll.u32 %s357, 4
          %s366 = int_to_ptr.vmem [resolvable:$true] %s365
          %371 = dma.hbm_to_vmem [thread:$0]  %s364, 2176, %s366, %s354, 128, 128, 8
        $region52: #{tpu_custom_call.1} parent=47 // pred_fallthru
          _
      $region48: #{tpu_custom_call.1} parent=5 // pred_fallthru
        _
      %p372 = scmp.le.s32.totalorder 1, %s24
      %p373 = scmp.lt.s32.totalorder %s24, 5
      %p374 = pnand %p372, %p373
      %p375 = pneg %p374
      // Predicated region
      $region53: #{tpu_custom_call.1} parent=5 // pred_check
        _
      $region54: #{tpu_custom_call.1} parent=5 // pred_check_branch
        %377 = sbr.rel (%p374) target = $region56
      $region55: #{tpu_custom_call.1} parent=5 // pred_region
        %s378 = ssub.s32 %s24, 1
        %s379 = sand.u32 %s49, 1
        %s380 = scalar_lea.sflag [#allocation3], %s379
        %s381 = sand.u32 %s49, 1
        %s382 = smul.addr %s381, 136
        %s383 = scalar_lea.vmem [#allocation2], %s382
        // Predicated region
        $region57: #{tpu_custom_call.1} parent=55 // pred_check
          %p384 = pneg %p62
        $region58: #{tpu_custom_call.1} parent=55 // pred_check_branch
          %386 = sbr.rel (%p384) target = $region60
        $region59: #{tpu_custom_call.1} parent=55 // pred_region
          %388 = dma.done %s380, 2176
        $region60: #{tpu_custom_call.1} parent=55 // pred_fallthru
          _
        // Predicated region
        $region61: #{tpu_custom_call.1} parent=55 // pred_check
          %p389 = pneg %p83
        $region62: #{tpu_custom_call.1} parent=55 // pred_check_branch
          %391 = sbr.rel (%p389) target = $region64
        $region63: #{tpu_custom_call.1} parent=55 // pred_region
          %393 = dma.done [#allocation6], 128
        $region64: #{tpu_custom_call.1} parent=55 // pred_fallthru
          _
        // Predicated region
        $region65: #{tpu_custom_call.1} parent=55 // pred_check
          %p394 = pneg %p125
        $region66: #{tpu_custom_call.1} parent=55 // pred_check_branch
          %396 = sbr.rel (%p394) target = $region68
        $region67: #{tpu_custom_call.1} parent=55 // pred_region
          %398 = dma.done [#allocation6], 16
        $region68: #{tpu_custom_call.1} parent=55 // pred_fallthru
          _
        // Predicated region
        $region69: #{tpu_custom_call.1} parent=55 // pred_check
          %p399 = pneg %p146
        $region70: #{tpu_custom_call.1} parent=55 // pred_check_branch
          %401 = sbr.rel (%p399) target = $region72
        $region71: #{tpu_custom_call.1} parent=55 // pred_region
          %403 = dma.done [#allocation9], 16
        $region72: #{tpu_custom_call.1} parent=55 // pred_fallthru
          _
        // Predicated region
        $region73: #{tpu_custom_call.1} parent=55 // pred_check
          %p404 = pneg %p167
        $region74: #{tpu_custom_call.1} parent=55 // pred_check_branch
          %406 = sbr.rel (%p404) target = $region76
        $region75: #{tpu_custom_call.1} parent=55 // pred_region
          %408 = dma.done [#allocation9], 4096
        $region76: #{tpu_custom_call.1} parent=55 // pred_fallthru
          _
        // Predicated region
        $region77: #{tpu_custom_call.1} parent=55 // pred_check
          %p409 = pneg %p209
        $region78: #{tpu_custom_call.1} parent=55 // pred_check_branch
          %411 = sbr.rel (%p409) target = $region80
        $region79: #{tpu_custom_call.1} parent=55 // pred_region
          %413 = dma.done [#allocation12], 4096
        $region80: #{tpu_custom_call.1} parent=55 // pred_fallthru
          _
        %s414 = sand.u32 %s49, 1
        %s415 = scalar_lea.sflag [#allocation3], %s414
        %s416 = sand.u32 %s49, 1
        %s417 = smul.addr %s416, 136
        %s418 = scalar_lea.vmem [#allocation2], %s417
        %p419 = pneg %p62
        %p420 = pneg %p59
        %p421 = pneg %p83
        %p422 = pneg %p80
        %p423 = pneg %p104
        %p424 = pneg %p101
        %p425 = pneg %p125
        %p426 = pneg %p122
        %p427 = pneg %p146
        %p428 = pneg %p143
        %p429 = pneg %p167
        %p430 = pneg %p164
        %p431 = pneg %p188
        %p432 = pneg %p185
        %p433 = pneg %p209
        %p434 = pneg %p206
        %p435 = pneg %p230
        %p436 = pneg %p227
        %p437 = pneg %p258
        %p438 = pneg %p255
        %s439 = sand.u32 %s245, 1
        %s440 = scalar_lea.sflag [#allocation4], %s439
        %s441 = sand.u32 %s245, 1
        %s442 = smul.addr %s441, 64
        %s443 = scalar_lea.vmem [#allocation13], %s442
        %s444 = smul.u32 8, %s34
        %s445 = smul.u32 %s34, 64
        %s446 = scalar_lea.vmem %s383, %s445 [#allocation2]
        %v447 = vld [vmem:[%s446] sm:$0xff]
        %v448 = vld [vmem:[%s446 + $0x8] sm:$0xff]
        %v449 = vld [vmem:[%s446 + $0x10] sm:$0xff]
        %v450 = vld [vmem:[%s446 + $0x18] sm:$0xff]
        %v451 = vld [vmem:[%s446 + $0x20] sm:$0xff]
        %v452 = vld [vmem:[%s446 + $0x28] sm:$0xff]
        %v453 = vld [vmem:[%s446 + $0x30] sm:$0xff]
        %v454 = vld [vmem:[%s446 + $0x38] sm:$0xff]
        %v455 = vld [vmem:[%s446 + $0x40] sm:$0xff]
        %v456 = vld [vmem:[#allocation5] sm:$0x7f]
        %v457 = vld [vmem:[%s2] sm:$0x1]
        %v459 = vperm.slane %v457, 0
        %v461 = vperm.slane %v456, 0
        %v462 = vmul.f32 %v447, %v461
        %v463 = vmul.f32 %v448, %v461
        %v464 = vmul.f32 %v449, %v461
        %v465 = vmul.f32 %v450, %v461
        %v466 = vmul.f32 %v451, %v461
        %v467 = vmul.f32 %v452, %v461
        %v468 = vmul.f32 %v453, %v461
        %v469 = vmul.f32 %v454, %v461
        %v470 = vadd.f32 %v459, %v462
        %v471 = vadd.f32 %v459, %v463
        %v472 = vadd.f32 %v459, %v464
        %v473 = vadd.f32 %v459, %v465
        %v474 = vadd.f32 %v459, %v466
        %v475 = vadd.f32 %v459, %v467
        %v476 = vadd.f32 %v459, %v468
        %v477 = vadd.f32 %v459, %v469
        %v478 = vrot.slane %v447, 1
        %v479 = vrot.slane %v448, 1
        %v480 = vrot.slane %v449, 1
        %v481 = vrot.slane %v450, 1
        %v482 = vrot.slane %v451, 1
        %v483 = vrot.slane %v452, 1
        %v484 = vrot.slane %v453, 1
        %v485 = vrot.slane %v454, 1
        %v486 = vrot.slane %v455, 1
        %v487 = vlaneseq
        %v488 = vshrl.u32 %v487, 7
        %vm489 = vcmp.lt.s32.totalorder %v488, 7
        %v490 = vsel %vm489, %v485, %v486
        %v491 = vsel %vm489, %v484, %v485
        %v492 = vsel %vm489, %v483, %v484
        %v493 = vsel %vm489, %v482, %v483
        %v494 = vsel %vm489, %v481, %v482
        %v495 = vsel %vm489, %v480, %v481
        %v496 = vsel %vm489, %v479, %v480
        %v497 = vsel %vm489, %v478, %v479
        %v498 = vperm.slane %v456, 1
        %v499 = vmul.f32 %v497, %v498
        %v500 = vmul.f32 %v496, %v498
        %v501 = vmul.f32 %v495, %v498
        %v502 = vmul.f32 %v494, %v498
        %v503 = vmul.f32 %v493, %v498
        %v504 = vmul.f32 %v492, %v498
        %v505 = vmul.f32 %v491, %v498
        %v506 = vmul.f32 %v490, %v498
        %v507 = vadd.f32 %v470, %v499
        %v508 = vadd.f32 %v471, %v500
        %v509 = vadd.f32 %v472, %v501
        %v510 = vadd.f32 %v473, %v502
        %v511 = vadd.f32 %v474, %v503
        %v512 = vadd.f32 %v475, %v504
        %v513 = vadd.f32 %v476, %v505
        %v514 = vadd.f32 %v477, %v506
        %v515 = vrot.slane %v447, 2
        %v516 = vrot.slane %v448, 2
        %v517 = vrot.slane %v449, 2
        %v518 = vrot.slane %v450, 2
        %v519 = vrot.slane %v451, 2
        %v520 = vrot.slane %v452, 2
        %v521 = vrot.slane %v453, 2
        %v522 = vrot.slane %v454, 2
        %v523 = vrot.slane %v455, 2
        %vm524 = vcmp.lt.s32.totalorder %v488, 6
        %v525 = vsel %vm524, %v522, %v523
        %v526 = vsel %vm524, %v521, %v522
        %v527 = vsel %vm524, %v520, %v521
        %v528 = vsel %vm524, %v519, %v520
        %v529 = vsel %vm524, %v518, %v519
        %v530 = vsel %vm524, %v517, %v518
        %v531 = vsel %vm524, %v516, %v517
        %v532 = vsel %vm524, %v515, %v516
        %v533 = vperm.slane %v456, 2
        %v534 = vmul.f32 %v532, %v533
        %v535 = vmul.f32 %v531, %v533
        %v536 = vmul.f32 %v530, %v533
        %v537 = vmul.f32 %v529, %v533
        %v538 = vmul.f32 %v528, %v533
        %v539 = vmul.f32 %v527, %v533
        %v540 = vmul.f32 %v526, %v533
        %v541 = vmul.f32 %v525, %v533
        %v542 = vadd.f32 %v507, %v534
        %v543 = vadd.f32 %v508, %v535
        %v544 = vadd.f32 %v509, %v536
        %v545 = vadd.f32 %v510, %v537
        %v546 = vadd.f32 %v511, %v538
        %v547 = vadd.f32 %v512, %v539
        %v548 = vadd.f32 %v513, %v540
        %v549 = vadd.f32 %v514, %v541
        %v550 = vrot.slane %v447, 3
        %v551 = vrot.slane %v448, 3
        %v552 = vrot.slane %v449, 3
        %v553 = vrot.slane %v450, 3
        %v554 = vrot.slane %v451, 3
        %v555 = vrot.slane %v452, 3
        %v556 = vrot.slane %v453, 3
        %v557 = vrot.slane %v454, 3
        %v558 = vrot.slane %v455, 3
        %vm559 = vcmp.lt.s32.totalorder %v488, 5
        %v560 = vsel %vm559, %v557, %v558
        %v561 = vsel %vm559, %v556, %v557
        %v562 = vsel %vm559, %v555, %v556
        %v563 = vsel %vm559, %v554, %v555
        %v564 = vsel %vm559, %v553, %v554
        %v565 = vsel %vm559, %v552, %v553
        %v566 = vsel %vm559, %v551, %v552
        %v567 = vsel %vm559, %v550, %v551
        %v568 = vperm.slane %v456, 3
        %v569 = vmul.f32 %v567, %v568
        %v570 = vmul.f32 %v566, %v568
        %v571 = vmul.f32 %v565, %v568
        %v572 = vmul.f32 %v564, %v568
        %v573 = vmul.f32 %v563, %v568
        %v574 = vmul.f32 %v562, %v568
        %v575 = vmul.f32 %v561, %v568
        %v576 = vmul.f32 %v560, %v568
        %v577 = vadd.f32 %v542, %v569
        %v578 = vadd.f32 %v543, %v570
        %v579 = vadd.f32 %v544, %v571
        %v580 = vadd.f32 %v545, %v572
        %v581 = vadd.f32 %v546, %v573
        %v582 = vadd.f32 %v547, %v574
        %v583 = vadd.f32 %v548, %v575
        %v584 = vadd.f32 %v549, %v576
        %v585 = vrot.slane %v447, 4
        %v586 = vrot.slane %v448, 4
        %v587 = vrot.slane %v449, 4
        %v588 = vrot.slane %v450, 4
        %v589 = vrot.slane %v451, 4
        %v590 = vrot.slane %v452, 4
        %v591 = vrot.slane %v453, 4
        %v592 = vrot.slane %v454, 4
        %v593 = vrot.slane %v455, 4
        %vm594 = vcmp.lt.s32.totalorder %v488, 4
        %v595 = vsel %vm594, %v592, %v593
        %v596 = vsel %vm594, %v591, %v592
        %v597 = vsel %vm594, %v590, %v591
        %v598 = vsel %vm594, %v589, %v590
        %v599 = vsel %vm594, %v588, %v589
        %v600 = vsel %vm594, %v587, %v588
        %v601 = vsel %vm594, %v586, %v587
        %v602 = vsel %vm594, %v585, %v586
        %v603 = vperm.slane %v456, 4
        %v604 = vmul.f32 %v602, %v603
        %v605 = vmul.f32 %v601, %v603
        %v606 = vmul.f32 %v600, %v603
        %v607 = vmul.f32 %v599, %v603
        %v608 = vmul.f32 %v598, %v603
        %v609 = vmul.f32 %v597, %v603
        %v610 = vmul.f32 %v596, %v603
        %v611 = vmul.f32 %v595, %v603
        %v612 = vadd.f32 %v577, %v604
        %v613 = vadd.f32 %v578, %v605
        %v614 = vadd.f32 %v579, %v606
        %v615 = vadd.f32 %v580, %v607
        %v616 = vadd.f32 %v581, %v608
        %v617 = vadd.f32 %v582, %v609
        %v618 = vadd.f32 %v583, %v610
        %v619 = vadd.f32 %v584, %v611
        %v620 = vrot.slane %v447, 5
        %v621 = vrot.slane %v448, 5
        %v622 = vrot.slane %v449, 5
        %v623 = vrot.slane %v450, 5
        %v624 = vrot.slane %v451, 5
        %v625 = vrot.slane %v452, 5
        %v626 = vrot.slane %v453, 5
        %v627 = vrot.slane %v454, 5
        %v628 = vrot.slane %v455, 5
        %vm629 = vcmp.lt.s32.totalorder %v488, 3
        %v630 = vsel %vm629, %v627, %v628
        %v631 = vsel %vm629, %v626, %v627
        %v632 = vsel %vm629, %v625, %v626
        %v633 = vsel %vm629, %v624, %v625
        %v634 = vsel %vm629, %v623, %v624
        %v635 = vsel %vm629, %v622, %v623
        %v636 = vsel %vm629, %v621, %v622
        %v637 = vsel %vm629, %v620, %v621
        %v638 = vperm.slane %v456, 5
        %v639 = vmul.f32 %v637, %v638
        %v640 = vmul.f32 %v636, %v638
        %v641 = vmul.f32 %v635, %v638
        %v642 = vmul.f32 %v634, %v638
        %v643 = vmul.f32 %v633, %v638
        %v644 = vmul.f32 %v632, %v638
        %v645 = vmul.f32 %v631, %v638
        %v646 = vmul.f32 %v630, %v638
        %v647 = vadd.f32 %v612, %v639
        %v648 = vadd.f32 %v613, %v640
        %v649 = vadd.f32 %v614, %v641
        %v650 = vadd.f32 %v615, %v642
        %v651 = vadd.f32 %v616, %v643
        %v652 = vadd.f32 %v617, %v644
        %v653 = vadd.f32 %v618, %v645
        %v654 = vadd.f32 %v619, %v646
        %v655 = vrot.slane %v447, 6
        %v656 = vrot.slane %v448, 6
        %v657 = vrot.slane %v449, 6
        %v658 = vrot.slane %v450, 6
        %v659 = vrot.slane %v451, 6
        %v660 = vrot.slane %v452, 6
        %v661 = vrot.slane %v453, 6
        %v662 = vrot.slane %v454, 6
        %v663 = vrot.slane %v455, 6
        %vm664 = vcmp.lt.s32.totalorder %v488, 2
        %v665 = vsel %vm664, %v662, %v663
        %v666 = vsel %vm664, %v661, %v662
        %v667 = vsel %vm664, %v660, %v661
        %v668 = vsel %vm664, %v659, %v660
        %v669 = vsel %vm664, %v658, %v659
        %v670 = vsel %vm664, %v657, %v658
        %v671 = vsel %vm664, %v656, %v657
        %v672 = vsel %vm664, %v655, %v656
        %v673 = vperm.slane %v456, 6
        %v674 = vmul.f32 %v672, %v673
        %v675 = vmul.f32 %v671, %v673
        %v676 = vmul.f32 %v670, %v673
        %v677 = vmul.f32 %v669, %v673
        %v678 = vmul.f32 %v668, %v673
        %v679 = vmul.f32 %v667, %v673
        %v680 = vmul.f32 %v666, %v673
        %v681 = vmul.f32 %v665, %v673
        %v682 = vadd.f32 %v647, %v674
        %v683 = vadd.f32 %v648, %v675
        %v684 = vadd.f32 %v649, %v676
        %v685 = vadd.f32 %v650, %v677
        %v686 = vadd.f32 %v651, %v678
        %v687 = vadd.f32 %v652, %v679
        %v688 = vadd.f32 %v653, %v680
        %v689 = vadd.f32 %v654, %v681
        %690 = vadd.xlane.f32.xlu0 %v682
        %v691 = vpop.xlane.xlu0 %690
        %692 = vadd.xlane.f32.xlu0 %v683
        %v693 = vpop.xlane.xlu0 %692
        %694 = vadd.xlane.f32.xlu0 %v684
        %v695 = vpop.xlane.xlu0 %694
        %696 = vadd.xlane.f32.xlu0 %v685
        %v697 = vpop.xlane.xlu0 %696
        %698 = vadd.xlane.f32.xlu0 %v686
        %v699 = vpop.xlane.xlu0 %698
        %700 = vadd.xlane.f32.xlu0 %v687
        %v701 = vpop.xlane.xlu0 %700
        %702 = vadd.xlane.f32.xlu0 %v688
        %v703 = vpop.xlane.xlu0 %702
        %704 = vadd.xlane.f32.xlu0 %v689
        %v705 = vpop.xlane.xlu0 %704
        %v706 = vrcp.pop 128.0
        %v707 = vmul.f32 128.0, %v706
        %v708 = vsub.f32 1.0, %v707
        %v709 = vmul.f32 %v706, %v708
        %v710 = vadd.f32 %v706, %v709
        %vm711 = vweird.f32 %v706
        %v712 = vsel %vm711, %v706, %v710
        %v713 = vmul.f32 %v691, %v712
        %v714 = vmul.f32 %v693, %v712
        %v715 = vmul.f32 %v695, %v712
        %v716 = vmul.f32 %v697, %v712
        %v717 = vmul.f32 %v699, %v712
        %v718 = vmul.f32 %v701, %v712
        %v719 = vmul.f32 %v703, %v712
        %v720 = vmul.f32 %v705, %v712
        %v721 = vsub.f32 %v682, %v713
        %v722 = vsub.f32 %v683, %v714
        %v723 = vsub.f32 %v684, %v715
        %v724 = vsub.f32 %v685, %v716
        %v725 = vsub.f32 %v686, %v717
        %v726 = vsub.f32 %v687, %v718
        %v727 = vsub.f32 %v688, %v719
        %v728 = vsub.f32 %v689, %v720
        %v729 = vmul.f32 %v721, %v721
        %v730 = vmul.f32 %v722, %v722
        %v731 = vmul.f32 %v723, %v723
        %v732 = vmul.f32 %v724, %v724
        %v733 = vmul.f32 %v725, %v725
        %v734 = vmul.f32 %v726, %v726
        %v735 = vmul.f32 %v727, %v727
        %v736 = vmul.f32 %v728, %v728
        %737 = vadd.xlane.f32.xlu0 %v729
        %v738 = vpop.xlane.xlu0 %737
        %739 = vadd.xlane.f32.xlu0 %v730
        %v740 = vpop.xlane.xlu0 %739
        %741 = vadd.xlane.f32.xlu0 %v731
        %v742 = vpop.xlane.xlu0 %741
        %743 = vadd.xlane.f32.xlu0 %v732
        %v744 = vpop.xlane.xlu0 %743
        %745 = vadd.xlane.f32.xlu0 %v733
        %v746 = vpop.xlane.xlu0 %745
        %747 = vadd.xlane.f32.xlu0 %v734
        %v748 = vpop.xlane.xlu0 %747
        %749 = vadd.xlane.f32.xlu0 %v735
        %v750 = vpop.xlane.xlu0 %749
        %751 = vadd.xlane.f32.xlu0 %v736
        %v752 = vpop.xlane.xlu0 %751
        %v753 = vmul.f32 %v738, %v712
        %v754 = vmul.f32 %v740, %v712
        %v755 = vmul.f32 %v742, %v712
        %v756 = vmul.f32 %v744, %v712
        %v757 = vmul.f32 %v746, %v712
        %v758 = vmul.f32 %v748, %v712
        %v759 = vmul.f32 %v750, %v712
        %v760 = vmul.f32 %v752, %v712
        %v761 = vadd.f32 %v753, 1e-05
        %v762 = vadd.f32 %v754, 1e-05
        %v763 = vadd.f32 %v755, 1e-05
        %v764 = vadd.f32 %v756, 1e-05
        %v765 = vadd.f32 %v757, 1e-05
        %v766 = vadd.f32 %v758, 1e-05
        %v767 = vadd.f32 %v759, 1e-05
        %v768 = vadd.f32 %v760, 1e-05
        %v769 = vrsqrt.pop %v761
        %v770 = vmul.f32 %v769, %v761
        %v771 = vmul.f32 %v770, %v769
        %v772 = vmul.f32 0.5, %v771
        %v773 = vsub.f32 1.5, %v772
        %v774 = vmul.f32 %v769, %v773
        %vm775 = vweird.f32 %v761
        %vm776 = vweird.f32 %v769
        %vm777 = vmor %vm775, %vm776
        %v778 = vsel %vm777, %v769, %v774
        %v779 = vrsqrt.pop %v762
        %v780 = vmul.f32 %v779, %v762
        %v781 = vmul.f32 %v780, %v779
        %v782 = vmul.f32 0.5, %v781
        %v783 = vsub.f32 1.5, %v782
        %v784 = vmul.f32 %v779, %v783
        %vm785 = vweird.f32 %v762
        %vm786 = vweird.f32 %v779
        %vm787 = vmor %vm785, %vm786
        %v788 = vsel %vm787, %v779, %v784
        %v789 = vrsqrt.pop %v763
        %v790 = vmul.f32 %v789, %v763
        %v791 = vmul.f32 %v790, %v789
        %v792 = vmul.f32 0.5, %v791
        %v793 = vsub.f32 1.5, %v792
        %v794 = vmul.f32 %v789, %v793
        %vm795 = vweird.f32 %v763
        %vm796 = vweird.f32 %v789
        %vm797 = vmor %vm795, %vm796
        %v798 = vsel %vm797, %v789, %v794
        %v799 = vrsqrt.pop %v764
        %v800 = vmul.f32 %v799, %v764
        %v801 = vmul.f32 %v800, %v799
        %v802 = vmul.f32 0.5, %v801
        %v803 = vsub.f32 1.5, %v802
        %v804 = vmul.f32 %v799, %v803
        %vm805 = vweird.f32 %v764
        %vm806 = vweird.f32 %v799
        %vm807 = vmor %vm805, %vm806
        %v808 = vsel %vm807, %v799, %v804
        %v809 = vrsqrt.pop %v765
        %v810 = vmul.f32 %v809, %v765
        %v811 = vmul.f32 %v810, %v809
        %v812 = vmul.f32 0.5, %v811
        %v813 = vsub.f32 1.5, %v812
        %v814 = vmul.f32 %v809, %v813
        %vm815 = vweird.f32 %v765
        %vm816 = vweird.f32 %v809
        %vm817 = vmor %vm815, %vm816
        %v818 = vsel %vm817, %v809, %v814
        %v819 = vrsqrt.pop %v766
        %v820 = vmul.f32 %v819, %v766
        %v821 = vmul.f32 %v820, %v819
        %v822 = vmul.f32 0.5, %v821
        %v823 = vsub.f32 1.5, %v822
        %v824 = vmul.f32 %v819, %v823
        %vm825 = vweird.f32 %v766
        %vm826 = vweird.f32 %v819
        %vm827 = vmor %vm825, %vm826
        %v828 = vsel %vm827, %v819, %v824
        %v829 = vrsqrt.pop %v767
        %v830 = vmul.f32 %v829, %v767
        %v831 = vmul.f32 %v830, %v829
        %v832 = vmul.f32 0.5, %v831
        %v833 = vsub.f32 1.5, %v832
        %v834 = vmul.f32 %v829, %v833
        %vm835 = vweird.f32 %v767
        %vm836 = vweird.f32 %v829
        %vm837 = vmor %vm835, %vm836
        %v838 = vsel %vm837, %v829, %v834
        %v839 = vrsqrt.pop %v768
        %v840 = vmul.f32 %v839, %v768
        %v841 = vmul.f32 %v840, %v839
        %v842 = vmul.f32 0.5, %v841
        %v843 = vsub.f32 1.5, %v842
        %v844 = vmul.f32 %v839, %v843
        %vm845 = vweird.f32 %v768
        %vm846 = vweird.f32 %v839
        %vm847 = vmor %vm845, %vm846
        %v848 = vsel %vm847, %v839, %v844
        %v849 = vmul.f32 %v721, %v778
        %v850 = vmul.f32 %v722, %v788
        %v851 = vmul.f32 %v723, %v798
        %v852 = vmul.f32 %v724, %v808
        %v853 = vmul.f32 %v725, %v818
        %v854 = vmul.f32 %v726, %v828
        %v855 = vmul.f32 %v727, %v838
        %v856 = vmul.f32 %v728, %v848
        %v857 = vld [vmem:[#allocation7] sm:$0x1]
        %v859 = vperm.slane %v857, 0
        %v861 = vmul.f32 %v849, %v859
        %v862 = vmul.f32 %v850, %v859
        %v863 = vmul.f32 %v851, %v859
        %v864 = vmul.f32 %v852, %v859
        %v865 = vmul.f32 %v853, %v859
        %v866 = vmul.f32 %v854, %v859
        %v867 = vmul.f32 %v855, %v859
        %v868 = vmul.f32 %v856, %v859
        %v869 = vld [vmem:[#allocation8] sm:$0x1]
        %v871 = vperm.slane %v869, 0
        %v873 = vadd.f32 %v861, %v871
        %v874 = vadd.f32 %v862, %v871
        %v875 = vadd.f32 %v863, %v871
        %v876 = vadd.f32 %v864, %v871
        %v877 = vadd.f32 %v865, %v871
        %v878 = vadd.f32 %v866, %v871
        %v879 = vadd.f32 %v867, %v871
        %v880 = vadd.f32 %v868, %v871
        %v881 = vpack.c.bf16 %v874, %v873
        %v882 = vpack.c.bf16 %v876, %v875
        %v883 = vpack.c.bf16 %v878, %v877
        %v884 = vpack.c.bf16 %v880, %v879
        %v885 = vld [vmem:[#allocation10] sm:$0xff]
        %v886 = vld [vmem:[#allocation10 + $0x8] sm:$0xff]
        %v887 = vld [vmem:[#allocation10 + $0x10] sm:$0xff]
        %v888 = vld [vmem:[#allocation10 + $0x18] sm:$0xff]
        %v889 = vld [vmem:[#allocation10 + $0x20] sm:$0xff]
        %v890 = vld [vmem:[#allocation10 + $0x28] sm:$0xff]
        %v891 = vld [vmem:[#allocation10 + $0x30] sm:$0xff]
        %v892 = vld [vmem:[#allocation10 + $0x38] sm:$0xff]
        %v893 = vld [vmem:[#allocation10 + $0x40] sm:$0xff]
        %v894 = vld [vmem:[#allocation10 + $0x48] sm:$0xff]
        %v895 = vld [vmem:[#allocation10 + $0x50] sm:$0xff]
        %v896 = vld [vmem:[#allocation10 + $0x58] sm:$0xff]
        %v897 = vld [vmem:[#allocation10 + $0x60] sm:$0xff]
        %v898 = vld [vmem:[#allocation10 + $0x68] sm:$0xff]
        %v899 = vld [vmem:[#allocation10 + $0x70] sm:$0xff]
        %v900 = vld [vmem:[#allocation10 + $0x78] sm:$0xff]
        %v901 = vld [vmem:[#allocation10 + $0x80] sm:$0xff]
        %v902 = vld [vmem:[#allocation10 + $0x88] sm:$0xff]
        %v903 = vld [vmem:[#allocation10 + $0x90] sm:$0xff]
        %v904 = vld [vmem:[#allocation10 + $0x98] sm:$0xff]
        %v905 = vld [vmem:[#allocation10 + $0xa0] sm:$0xff]
        %v906 = vld [vmem:[#allocation10 + $0xa8] sm:$0xff]
        %v907 = vld [vmem:[#allocation10 + $0xb0] sm:$0xff]
        %v908 = vld [vmem:[#allocation10 + $0xb8] sm:$0xff]
        %v909 = vld [vmem:[#allocation10 + $0xc0] sm:$0xff]
        %v910 = vld [vmem:[#allocation10 + $0xc8] sm:$0xff]
        %v911 = vld [vmem:[#allocation10 + $0xd0] sm:$0xff]
        %v912 = vld [vmem:[#allocation10 + $0xd8] sm:$0xff]
        %v913 = vld [vmem:[#allocation10 + $0xe0] sm:$0xff]
        %v914 = vld [vmem:[#allocation10 + $0xe8] sm:$0xff]
        %v915 = vld [vmem:[#allocation10 + $0xf0] sm:$0xff]
        %v916 = vld [vmem:[#allocation10 + $0xf8] sm:$0xff]
        %v917 = vld [vmem:[%s6] sm:$0xf]
        %v919 = vperm.slane %v917, 0
        %v920 = vperm.slane %v917, 1
        %v921 = vperm.slane %v917, 2
        %v922 = vperm.slane %v917, 3
        %v959 = vunpack.c.l.b16 %v885
        %v960 = vunpack.c.h.b16 %v885
        %v961 = vunpack.c.l.b16 %v886
        %v962 = vunpack.c.h.b16 %v886
        %v963 = vunpack.c.l.b16 %v887
        %v964 = vunpack.c.h.b16 %v887
        %v965 = vunpack.c.l.b16 %v888
        %v966 = vunpack.c.h.b16 %v888
        %v967 = vunpack.c.l.b16 %v889
        %v968 = vunpack.c.h.b16 %v889
        %v969 = vunpack.c.l.b16 %v890
        %v970 = vunpack.c.h.b16 %v890
        %v971 = vunpack.c.l.b16 %v891
        %v972 = vunpack.c.h.b16 %v891
        %v973 = vunpack.c.l.b16 %v892
        %v974 = vunpack.c.h.b16 %v892
        %v975 = vunpack.c.l.b16 %v893
        %v976 = vunpack.c.h.b16 %v893
        %v977 = vunpack.c.l.b16 %v894
        %v978 = vunpack.c.h.b16 %v894
        %v979 = vunpack.c.l.b16 %v895
        %v980 = vunpack.c.h.b16 %v895
        %v981 = vunpack.c.l.b16 %v896
        %v982 = vunpack.c.h.b16 %v896
        %v983 = vunpack.c.l.b16 %v897
        %v984 = vunpack.c.h.b16 %v897
        %v985 = vunpack.c.l.b16 %v898
        %v986 = vunpack.c.h.b16 %v898
        %v987 = vunpack.c.l.b16 %v899
        %v988 = vunpack.c.h.b16 %v899
        %v989 = vunpack.c.l.b16 %v900
        %v990 = vunpack.c.h.b16 %v900
        %v991 = vunpack.c.l.b16 %v901
        %v992 = vunpack.c.h.b16 %v901
        %v993 = vunpack.c.l.b16 %v902
        %v994 = vunpack.c.h.b16 %v902
        %v995 = vunpack.c.l.b16 %v903
        %v996 = vunpack.c.h.b16 %v903
        %v997 = vunpack.c.l.b16 %v904
        %v998 = vunpack.c.h.b16 %v904
        %v999 = vunpack.c.l.b16 %v905
        %v1000 = vunpack.c.h.b16 %v905
        %v1001 = vunpack.c.l.b16 %v906
        %v1002 = vunpack.c.h.b16 %v906
        %v1003 = vunpack.c.l.b16 %v907
        %v1004 = vunpack.c.h.b16 %v907
        %v1005 = vunpack.c.l.b16 %v908
        %v1006 = vunpack.c.h.b16 %v908
        %v1007 = vunpack.c.l.b16 %v909
        %v1008 = vunpack.c.h.b16 %v909
        %v1009 = vunpack.c.l.b16 %v910
        %v1010 = vunpack.c.h.b16 %v910
        %v1011 = vunpack.c.l.b16 %v911
        %v1012 = vunpack.c.h.b16 %v911
        %v1013 = vunpack.c.l.b16 %v912
        %v1014 = vunpack.c.h.b16 %v912
        %v1015 = vunpack.c.l.b16 %v913
        %v1016 = vunpack.c.h.b16 %v913
        %v1017 = vunpack.c.l.b16 %v914
        %v1018 = vunpack.c.h.b16 %v914
        %v1019 = vunpack.c.l.b16 %v915
        %v1020 = vunpack.c.h.b16 %v915
        %v1021 = vunpack.c.l.b16 %v916
        %v1022 = vunpack.c.h.b16 %v916
        %v1023 = vpack.c.b16 %v963, %v959
        %v1024 = vpack.c.b16 %v964, %v960
        %v1025 = vpack.c.b16 %v965, %v961
        %v1026 = vpack.c.b16 %v966, %v962
        %v1027 = vpack.c.b16 %v971, %v967
        %v1028 = vpack.c.b16 %v972, %v968
        %v1029 = vpack.c.b16 %v973, %v969
        %v1030 = vpack.c.b16 %v974, %v970
        %v1031 = vpack.c.b16 %v979, %v975
        %v1032 = vpack.c.b16 %v980, %v976
        %v1033 = vpack.c.b16 %v981, %v977
        %v1034 = vpack.c.b16 %v982, %v978
        %v1035 = vpack.c.b16 %v987, %v983
        %v1036 = vpack.c.b16 %v988, %v984
        %v1037 = vpack.c.b16 %v989, %v985
        %v1038 = vpack.c.b16 %v990, %v986
        %v1039 = vpack.c.b16 %v995, %v991
        %v1040 = vpack.c.b16 %v996, %v992
        %v1041 = vpack.c.b16 %v997, %v993
        %v1042 = vpack.c.b16 %v998, %v994
        %v1043 = vpack.c.b16 %v1003, %v999
        %v1044 = vpack.c.b16 %v1004, %v1000
        %v1045 = vpack.c.b16 %v1005, %v1001
        %v1046 = vpack.c.b16 %v1006, %v1002
        %v1047 = vpack.c.b16 %v1011, %v1007
        %v1048 = vpack.c.b16 %v1012, %v1008
        %v1049 = vpack.c.b16 %v1013, %v1009
        %v1050 = vpack.c.b16 %v1014, %v1010
        %v1051 = vpack.c.b16 %v1019, %v1015
        %v1052 = vpack.c.b16 %v1020, %v1016
        %v1053 = vpack.c.b16 %v1021, %v1017
        %v1054 = vpack.c.b16 %v1022, %v1018
        %1087 = vmatpush.bf16.msra.mxu0 %v1051
        %1088 = vmatpush.bf16.msra.mxu0 %v1047
        %1089 = vmatpush.bf16.msra.mxu0 %v1043
        %1090 = vmatpush.bf16.msra.mxu0 %v1039
        %1091 = vmatpush.bf16.msra.mxu0 %v1035
        %1092 = vmatpush.bf16.msra.mxu0 %v1031
        %1093 = vmatpush.bf16.msra.mxu0 %v1027
        %1094 = vmatpush.bf16.msra.mxu0 %v1023
        %1095 = vmatmul.bf16.gmra.mxu0 %v881
        %v1096 = vpop.f32.mrf.mxu0
        %v1097 = vadd.f32 %v919, %v1096
        %v1098 = vpop.f32.mrf.mxu0
        %v1099 = vadd.f32 %v919, %v1098
        %1100 = vmatmul.bf16.gmra.mxu0 %v882
        %v1101 = vpop.f32.mrf.mxu0
        %v1102 = vadd.f32 %v919, %v1101
        %v1103 = vpop.f32.mrf.mxu0
        %v1104 = vadd.f32 %v919, %v1103
        %1105 = vmatmul.bf16.gmra.mxu0 %v883
        %v1106 = vpop.f32.mrf.mxu0
        %v1107 = vadd.f32 %v919, %v1106
        %v1108 = vpop.f32.mrf.mxu0
        %v1109 = vadd.f32 %v919, %v1108
        %1110 = vmatmul.bf16.gmra.mxu0 %v884
        %v1111 = vpop.f32.mrf.mxu0
        %v1112 = vadd.f32 %v919, %v1111
        %v1113 = vpop.f32.mrf.mxu0
        %v1114 = vadd.f32 %v919, %v1113
        %1115 = vdwg.mxu0
        %1116 = vmatpush.bf16.msra.mxu0 %v1052
        %1117 = vmatpush.bf16.msra.mxu0 %v1048
        %1118 = vmatpush.bf16.msra.mxu0 %v1044
        %1119 = vmatpush.bf16.msra.mxu0 %v1040
        %1120 = vmatpush.bf16.msra.mxu0 %v1036
        %1121 = vmatpush.bf16.msra.mxu0 %v1032
        %1122 = vmatpush.bf16.msra.mxu0 %v1028
        %1123 = vmatpush.bf16.msra.mxu0 %v1024
        %1124 = vmatmul.bf16.gmra.mxu0 %v881
        %v1125 = vpop.f32.mrf.mxu0
        %v1126 = vadd.f32 %v920, %v1125
        %v1127 = vpop.f32.mrf.mxu0
        %v1128 = vadd.f32 %v920, %v1127
        %1129 = vmatmul.bf16.gmra.mxu0 %v882
        %v1130 = vpop.f32.mrf.mxu0
        %v1131 = vadd.f32 %v920, %v1130
        %v1132 = vpop.f32.mrf.mxu0
        %v1133 = vadd.f32 %v920, %v1132
        %1134 = vmatmul.bf16.gmra.mxu0 %v883
        %v1135 = vpop.f32.mrf.mxu0
        %v1136 = vadd.f32 %v920, %v1135
        %v1137 = vpop.f32.mrf.mxu0
        %v1138 = vadd.f32 %v920, %v1137
        %1139 = vmatmul.bf16.gmra.mxu0 %v884
        %v1140 = vpop.f32.mrf.mxu0
        %v1141 = vadd.f32 %v920, %v1140
        %v1142 = vpop.f32.mrf.mxu0
        %v1143 = vadd.f32 %v920, %v1142
        %1144 = vdwg.mxu0
        %1145 = vmatpush.bf16.msra.mxu0 %v1053
        %1146 = vmatpush.bf16.msra.mxu0 %v1049
        %1147 = vmatpush.bf16.msra.mxu0 %v1045
        %1148 = vmatpush.bf16.msra.mxu0 %v1041
        %1149 = vmatpush.bf16.msra.mxu0 %v1037
        %1150 = vmatpush.bf16.msra.mxu0 %v1033
        %1151 = vmatpush.bf16.msra.mxu0 %v1029
        %1152 = vmatpush.bf16.msra.mxu0 %v1025
        %1153 = vmatmul.bf16.gmra.mxu0 %v881
        %v1154 = vpop.f32.mrf.mxu0
        %v1155 = vadd.f32 %v921, %v1154
        %v1156 = vpop.f32.mrf.mxu0
        %v1157 = vadd.f32 %v921, %v1156
        %1158 = vmatmul.bf16.gmra.mxu0 %v882
        %v1159 = vpop.f32.mrf.mxu0
        %v1160 = vadd.f32 %v921, %v1159
        %v1161 = vpop.f32.mrf.mxu0
        %v1162 = vadd.f32 %v921, %v1161
        %1163 = vmatmul.bf16.gmra.mxu0 %v883
        %v1164 = vpop.f32.mrf.mxu0
        %v1165 = vadd.f32 %v921, %v1164
        %v1166 = vpop.f32.mrf.mxu0
        %v1167 = vadd.f32 %v921, %v1166
        %1168 = vmatmul.bf16.gmra.mxu0 %v884
        %v1169 = vpop.f32.mrf.mxu0
        %v1170 = vadd.f32 %v921, %v1169
        %v1171 = vpop.f32.mrf.mxu0
        %v1172 = vadd.f32 %v921, %v1171
        %1173 = vdwg.mxu0
        %1174 = vmatpush.bf16.msra.mxu0 %v1054
        %1175 = vmatpush.bf16.msra.mxu0 %v1050
        %1176 = vmatpush.bf16.msra.mxu0 %v1046
        %1177 = vmatpush.bf16.msra.mxu0 %v1042
        %1178 = vmatpush.bf16.msra.mxu0 %v1038
        %1179 = vmatpush.bf16.msra.mxu0 %v1034
        %1180 = vmatpush.bf16.msra.mxu0 %v1030
        %1181 = vmatpush.bf16.msra.mxu0 %v1026
        %1182 = vmatmul.bf16.gmra.mxu0 %v881
        %v1183 = vpop.f32.mrf.mxu0
        %v1184 = vadd.f32 %v922, %v1183
        %v1185 = vpop.f32.mrf.mxu0
        %v1186 = vadd.f32 %v922, %v1185
        %1187 = vmatmul.bf16.gmra.mxu0 %v882
        %v1188 = vpop.f32.mrf.mxu0
        %v1189 = vadd.f32 %v922, %v1188
        %v1190 = vpop.f32.mrf.mxu0
        %v1191 = vadd.f32 %v922, %v1190
        %1192 = vmatmul.bf16.gmra.mxu0 %v883
        %v1193 = vpop.f32.mrf.mxu0
        %v1194 = vadd.f32 %v922, %v1193
        %v1195 = vpop.f32.mrf.mxu0
        %v1196 = vadd.f32 %v922, %v1195
        %1197 = vmatmul.bf16.gmra.mxu0 %v884
        %v1198 = vpop.f32.mrf.mxu0
        %v1199 = vadd.f32 %v922, %v1198
        %v1200 = vpop.f32.mrf.mxu0
        %v1201 = vadd.f32 %v922, %v1200
        %1202 = vdwg.mxu0
        %v1203 = vmul.f32 %v1097, 0.5
        %v1204 = vmul.f32 %v1126, 0.5
        %v1205 = vmul.f32 %v1155, 0.5
        %v1206 = vmul.f32 %v1184, 0.5
        %v1207 = vmul.f32 %v1099, 0.5
        %v1208 = vmul.f32 %v1128, 0.5
        %v1209 = vmul.f32 %v1157, 0.5
        %v1210 = vmul.f32 %v1186, 0.5
        %v1211 = vmul.f32 %v1102, 0.5
        %v1212 = vmul.f32 %v1131, 0.5
        %v1213 = vmul.f32 %v1160, 0.5
        %v1214 = vmul.f32 %v1189, 0.5
        %v1215 = vmul.f32 %v1104, 0.5
        %v1216 = vmul.f32 %v1133, 0.5
        %v1217 = vmul.f32 %v1162, 0.5
        %v1218 = vmul.f32 %v1191, 0.5
        %v1219 = vmul.f32 %v1107, 0.5
        %v1220 = vmul.f32 %v1136, 0.5
        %v1221 = vmul.f32 %v1165, 0.5
        %v1222 = vmul.f32 %v1194, 0.5
        %v1223 = vmul.f32 %v1109, 0.5
        %v1224 = vmul.f32 %v1138, 0.5
        %v1225 = vmul.f32 %v1167, 0.5
        %v1226 = vmul.f32 %v1196, 0.5
        %v1227 = vmul.f32 %v1112, 0.5
        %v1228 = vmul.f32 %v1141, 0.5
        %v1229 = vmul.f32 %v1170, 0.5
        %v1230 = vmul.f32 %v1199, 0.5
        %v1231 = vmul.f32 %v1114, 0.5
        %v1232 = vmul.f32 %v1143, 0.5
        %v1233 = vmul.f32 %v1172, 0.5
        %v1234 = vmul.f32 %v1201, 0.5
        %v1235 = vmul.f32 %v1097, 0.70710677
        %v1236 = vmul.f32 %v1126, 0.70710677
        %v1237 = vmul.f32 %v1155, 0.70710677
        %v1238 = vmul.f32 %v1184, 0.70710677
        %v1239 = vmul.f32 %v1099, 0.70710677
        %v1240 = vmul.f32 %v1128, 0.70710677
        %v1241 = vmul.f32 %v1157, 0.70710677
        %v1242 = vmul.f32 %v1186, 0.70710677
        %v1243 = vmul.f32 %v1102, 0.70710677
        %v1244 = vmul.f32 %v1131, 0.70710677
        %v1245 = vmul.f32 %v1160, 0.70710677
        %v1246 = vmul.f32 %v1189, 0.70710677
        %v1247 = vmul.f32 %v1104, 0.70710677
        %v1248 = vmul.f32 %v1133, 0.70710677
        %v1249 = vmul.f32 %v1162, 0.70710677
        %v1250 = vmul.f32 %v1191, 0.70710677
        %v1251 = vmul.f32 %v1107, 0.70710677
        %v1252 = vmul.f32 %v1136, 0.70710677
        %v1253 = vmul.f32 %v1165, 0.70710677
        %v1254 = vmul.f32 %v1194, 0.70710677
        %v1255 = vmul.f32 %v1109, 0.70710677
        %v1256 = vmul.f32 %v1138, 0.70710677
        %v1257 = vmul.f32 %v1167, 0.70710677
        %v1258 = vmul.f32 %v1196, 0.70710677
        %v1259 = vmul.f32 %v1112, 0.70710677
        %v1260 = vmul.f32 %v1141, 0.70710677
        %v1261 = vmul.f32 %v1170, 0.70710677
        %v1262 = vmul.f32 %v1199, 0.70710677
        %v1263 = vmul.f32 %v1114, 0.70710677
        %v1264 = vmul.f32 %v1143, 0.70710677
        %v1265 = vmul.f32 %v1172, 0.70710677
        %v1266 = vmul.f32 %v1201, 0.70710677
        %v1267 = vmul.f32 %v1235, %v1235
        %v1268 = vmin.f32 16.0, %v1267
        %v1269 = vmul.f32 %v1268, 2.1237322e-06
        %v1270 = vadd.f32 %v1269, 0.00028619796
        %v1271 = vmul.f32 %v1268, %v1270
        %v1272 = vadd.f32 %v1271, 0.0036580483
        %v1273 = vmul.f32 %v1268, %v1272
        %v1274 = vadd.f32 %v1273, 0.05243302
        %v1275 = vmul.f32 %v1268, %v1274
        %v1276 = vadd.f32 %v1275, 0.18741608
        %v1277 = vmul.f32 %v1268, %v1276
        %v1278 = vadd.f32 %v1277, 1.1283791
        %v1279 = vmul.f32 %v1235, %v1278
        %v1280 = vmul.f32 %v1268, 3.8918573e-05
        %v1281 = vadd.f32 %v1280, 0.001143296
        %v1282 = vmul.f32 %v1268, %v1281
        %v1283 = vadd.f32 %v1282, 0.014752088
        %v1284 = vmul.f32 %v1268, %v1283
        %v1285 = vadd.f32 %v1284, 0.112945676
        %v1286 = vmul.f32 %v1268, %v1285
        %v1287 = vadd.f32 %v1286, 0.4994258
        %v1288 = vmul.f32 %v1268, %v1287
        %v1289 = vadd.f32 %v1288, 1.0
        %v1290 = vrcp.pop %v1289
        %v1291 = vmul.f32 %v1289, %v1290
        %v1292 = vsub.f32 1.0, %v1291
        %v1293 = vmul.f32 %v1290, %v1292
        %v1294 = vadd.f32 %v1290, %v1293
        %vm1295 = vweird.f32 %v1289
        %vm1296 = vweird.f32 %v1290
        %vm1297 = vmor %vm1295, %vm1296
        %v1298 = vsel %vm1297, %v1290, %v1294
        %v1299 = vand.u32 2147483647, %v1289
        %vm1300 = vcmp.eq.f32.partialorder %v1299, 8.507059e+37
        %v1301 = vand.u32 %v1289, 2147483648
        %v1302 = vor.u32 1.1754944e-38, %v1301
        %v1303 = vsel %vm1300, %v1302, %v1298
        %v1304 = vmul.f32 %v1279, %v1303
        %v1305 = vmin.f32 %v1304, 1.0
        %v1306 = vmax.f32 %v1305, -1.0
        %v1307 = vmul.f32 %v1236, %v1236
        %v1308 = vmin.f32 16.0, %v1307
        %v1309 = vmul.f32 %v1308, 2.1237322e-06
        %v1310 = vadd.f32 %v1309, 0.00028619796
        %v1311 = vmul.f32 %v1308, %v1310
        %v1312 = vadd.f32 %v1311, 0.0036580483
        %v1313 = vmul.f32 %v1308, %v1312
        %v1314 = vadd.f32 %v1313, 0.05243302
        %v1315 = vmul.f32 %v1308, %v1314
        %v1316 = vadd.f32 %v1315, 0.18741608
        %v1317 = vmul.f32 %v1308, %v1316
        %v1318 = vadd.f32 %v1317, 1.1283791
        %v1319 = vmul.f32 %v1236, %v1318
        %v1320 = vmul.f32 %v1308, 3.8918573e-05
        %v1321 = vadd.f32 %v1320, 0.001143296
        %v1322 = vmul.f32 %v1308, %v1321
        %v1323 = vadd.f32 %v1322, 0.014752088
        %v1324 = vmul.f32 %v1308, %v1323
        %v1325 = vadd.f32 %v1324, 0.112945676
        %v1326 = vmul.f32 %v1308, %v1325
        %v1327 = vadd.f32 %v1326, 0.4994258
        %v1328 = vmul.f32 %v1308, %v1327
        %v1329 = vadd.f32 %v1328, 1.0
        %v1330 = vrcp.pop %v1329
        %v1331 = vmul.f32 %v1329, %v1330
        %v1332 = vsub.f32 1.0, %v1331
        %v1333 = vmul.f32 %v1330, %v1332
        %v1334 = vadd.f32 %v1330, %v1333
        %vm1335 = vweird.f32 %v1329
        %vm1336 = vweird.f32 %v1330
        %vm1337 = vmor %vm1335, %vm1336
        %v1338 = vsel %vm1337, %v1330, %v1334
        %v1339 = vand.u32 2147483647, %v1329
        %vm1340 = vcmp.eq.f32.partialorder %v1339, 8.507059e+37
        %v1341 = vand.u32 %v1329, 2147483648
        %v1342 = vor.u32 1.1754944e-38, %v1341
        %v1343 = vsel %vm1340, %v1342, %v1338
        %v1344 = vmul.f32 %v1319, %v1343
        %v1345 = vmin.f32 %v1344, 1.0
        %v1346 = vmax.f32 %v1345, -1.0
        %v1347 = vmul.f32 %v1237, %v1237
        %v1348 = vmin.f32 16.0, %v1347
        %v1349 = vmul.f32 %v1348, 2.1237322e-06
        %v1350 = vadd.f32 %v1349, 0.00028619796
        %v1351 = vmul.f32 %v1348, %v1350
        %v1352 = vadd.f32 %v1351, 0.0036580483
        %v1353 = vmul.f32 %v1348, %v1352
        %v1354 = vadd.f32 %v1353, 0.05243302
        %v1355 = vmul.f32 %v1348, %v1354
        %v1356 = vadd.f32 %v1355, 0.18741608
        %v1357 = vmul.f32 %v1348, %v1356
        %v1358 = vadd.f32 %v1357, 1.1283791
        %v1359 = vmul.f32 %v1237, %v1358
        %v1360 = vmul.f32 %v1348, 3.8918573e-05
        %v1361 = vadd.f32 %v1360, 0.001143296
        %v1362 = vmul.f32 %v1348, %v1361
        %v1363 = vadd.f32 %v1362, 0.014752088
        %v1364 = vmul.f32 %v1348, %v1363
        %v1365 = vadd.f32 %v1364, 0.112945676
        %v1366 = vmul.f32 %v1348, %v1365
        %v1367 = vadd.f32 %v1366, 0.4994258
        %v1368 = vmul.f32 %v1348, %v1367
        %v1369 = vadd.f32 %v1368, 1.0
        %v1370 = vrcp.pop %v1369
        %v1371 = vmul.f32 %v1369, %v1370
        %v1372 = vsub.f32 1.0, %v1371
        %v1373 = vmul.f32 %v1370, %v1372
        %v1374 = vadd.f32 %v1370, %v1373
        %vm1375 = vweird.f32 %v1369
        %vm1376 = vweird.f32 %v1370
        %vm1377 = vmor %vm1375, %vm1376
        %v1378 = vsel %vm1377, %v1370, %v1374
        %v1379 = vand.u32 2147483647, %v1369
        %vm1380 = vcmp.eq.f32.partialorder %v1379, 8.507059e+37
        %v1381 = vand.u32 %v1369, 2147483648
        %v1382 = vor.u32 1.1754944e-38, %v1381
        %v1383 = vsel %vm1380, %v1382, %v1378
        %v1384 = vmul.f32 %v1359, %v1383
        %v1385 = vmin.f32 %v1384, 1.0
        %v1386 = vmax.f32 %v1385, -1.0
        %v1387 = vmul.f32 %v1238, %v1238
        %v1388 = vmin.f32 16.0, %v1387
        %v1389 = vmul.f32 %v1388, 2.1237322e-06
        %v1390 = vadd.f32 %v1389, 0.00028619796
        %v1391 = vmul.f32 %v1388, %v1390
        %v1392 = vadd.f32 %v1391, 0.0036580483
        %v1393 = vmul.f32 %v1388, %v1392
        %v1394 = vadd.f32 %v1393, 0.05243302
        %v1395 = vmul.f32 %v1388, %v1394
        %v1396 = vadd.f32 %v1395, 0.18741608
        %v1397 = vmul.f32 %v1388, %v1396
        %v1398 = vadd.f32 %v1397, 1.1283791
        %v1399 = vmul.f32 %v1238, %v1398
        %v1400 = vmul.f32 %v1388, 3.8918573e-05
        %v1401 = vadd.f32 %v1400, 0.001143296
        %v1402 = vmul.f32 %v1388, %v1401
        %v1403 = vadd.f32 %v1402, 0.014752088
        %v1404 = vmul.f32 %v1388, %v1403
        %v1405 = vadd.f32 %v1404, 0.112945676
        %v1406 = vmul.f32 %v1388, %v1405
        %v1407 = vadd.f32 %v1406, 0.4994258
        %v1408 = vmul.f32 %v1388, %v1407
        %v1409 = vadd.f32 %v1408, 1.0
        %v1410 = vrcp.pop %v1409
        %v1411 = vmul.f32 %v1409, %v1410
        %v1412 = vsub.f32 1.0, %v1411
        %v1413 = vmul.f32 %v1410, %v1412
        %v1414 = vadd.f32 %v1410, %v1413
        %vm1415 = vweird.f32 %v1409
        %vm1416 = vweird.f32 %v1410
        %vm1417 = vmor %vm1415, %vm1416
        %v1418 = vsel %vm1417, %v1410, %v1414
        %v1419 = vand.u32 2147483647, %v1409
        %vm1420 = vcmp.eq.f32.partialorder %v1419, 8.507059e+37
        %v1421 = vand.u32 %v1409, 2147483648
        %v1422 = vor.u32 1.1754944e-38, %v1421
        %v1423 = vsel %vm1420, %v1422, %v1418
        %v1424 = vmul.f32 %v1399, %v1423
        %v1425 = vmin.f32 %v1424, 1.0
        %v1426 = vmax.f32 %v1425, -1.0
        %v1427 = vmul.f32 %v1239, %v1239
        %v1428 = vmin.f32 16.0, %v1427
        %v1429 = vmul.f32 %v1428, 2.1237322e-06
        %v1430 = vadd.f32 %v1429, 0.00028619796
        %v1431 = vmul.f32 %v1428, %v1430
        %v1432 = vadd.f32 %v1431, 0.0036580483
        %v1433 = vmul.f32 %v1428, %v1432
        %v1434 = vadd.f32 %v1433, 0.05243302
        %v1435 = vmul.f32 %v1428, %v1434
        %v1436 = vadd.f32 %v1435, 0.18741608
        %v1437 = vmul.f32 %v1428, %v1436
        %v1438 = vadd.f32 %v1437, 1.1283791
        %v1439 = vmul.f32 %v1239, %v1438
        %v1440 = vmul.f32 %v1428, 3.8918573e-05
        %v1441 = vadd.f32 %v1440, 0.001143296
        %v1442 = vmul.f32 %v1428, %v1441
        %v1443 = vadd.f32 %v1442, 0.014752088
        %v1444 = vmul.f32 %v1428, %v1443
        %v1445 = vadd.f32 %v1444, 0.112945676
        %v1446 = vmul.f32 %v1428, %v1445
        %v1447 = vadd.f32 %v1446, 0.4994258
        %v1448 = vmul.f32 %v1428, %v1447
        %v1449 = vadd.f32 %v1448, 1.0
        %v1450 = vrcp.pop %v1449
        %v1451 = vmul.f32 %v1449, %v1450
        %v1452 = vsub.f32 1.0, %v1451
        %v1453 = vmul.f32 %v1450, %v1452
        %v1454 = vadd.f32 %v1450, %v1453
        %vm1455 = vweird.f32 %v1449
        %vm1456 = vweird.f32 %v1450
        %vm1457 = vmor %vm1455, %vm1456
        %v1458 = vsel %vm1457, %v1450, %v1454
        %v1459 = vand.u32 2147483647, %v1449
        %vm1460 = vcmp.eq.f32.partialorder %v1459, 8.507059e+37
        %v1461 = vand.u32 %v1449, 2147483648
        %v1462 = vor.u32 1.1754944e-38, %v1461
        %v1463 = vsel %vm1460, %v1462, %v1458
        %v1464 = vmul.f32 %v1439, %v1463
        %v1465 = vmin.f32 %v1464, 1.0
        %v1466 = vmax.f32 %v1465, -1.0
        %v1467 = vmul.f32 %v1240, %v1240
        %v1468 = vmin.f32 16.0, %v1467
        %v1469 = vmul.f32 %v1468, 2.1237322e-06
        %v1470 = vadd.f32 %v1469, 0.00028619796
        %v1471 = vmul.f32 %v1468, %v1470
        %v1472 = vadd.f32 %v1471, 0.0036580483
        %v1473 = vmul.f32 %v1468, %v1472
        %v1474 = vadd.f32 %v1473, 0.05243302
        %v1475 = vmul.f32 %v1468, %v1474
        %v1476 = vadd.f32 %v1475, 0.18741608
        %v1477 = vmul.f32 %v1468, %v1476
        %v1478 = vadd.f32 %v1477, 1.1283791
        %v1479 = vmul.f32 %v1240, %v1478
        %v1480 = vmul.f32 %v1468, 3.8918573e-05
        %v1481 = vadd.f32 %v1480, 0.001143296
        %v1482 = vmul.f32 %v1468, %v1481
        %v1483 = vadd.f32 %v1482, 0.014752088
        %v1484 = vmul.f32 %v1468, %v1483
        %v1485 = vadd.f32 %v1484, 0.112945676
        %v1486 = vmul.f32 %v1468, %v1485
        %v1487 = vadd.f32 %v1486, 0.4994258
        %v1488 = vmul.f32 %v1468, %v1487
        %v1489 = vadd.f32 %v1488, 1.0
        %v1490 = vrcp.pop %v1489
        %v1491 = vmul.f32 %v1489, %v1490
        %v1492 = vsub.f32 1.0, %v1491
        %v1493 = vmul.f32 %v1490, %v1492
        %v1494 = vadd.f32 %v1490, %v1493
        %vm1495 = vweird.f32 %v1489
        %vm1496 = vweird.f32 %v1490
        %vm1497 = vmor %vm1495, %vm1496
        %v1498 = vsel %vm1497, %v1490, %v1494
        %v1499 = vand.u32 2147483647, %v1489
        %vm1500 = vcmp.eq.f32.partialorder %v1499, 8.507059e+37
        %v1501 = vand.u32 %v1489, 2147483648
        %v1502 = vor.u32 1.1754944e-38, %v1501
        %v1503 = vsel %vm1500, %v1502, %v1498
        %v1504 = vmul.f32 %v1479, %v1503
        %v1505 = vmin.f32 %v1504, 1.0
        %v1506 = vmax.f32 %v1505, -1.0
        %v1507 = vmul.f32 %v1241, %v1241
        %v1508 = vmin.f32 16.0, %v1507
        %v1509 = vmul.f32 %v1508, 2.1237322e-06
        %v1510 = vadd.f32 %v1509, 0.00028619796
        %v1511 = vmul.f32 %v1508, %v1510
        %v1512 = vadd.f32 %v1511, 0.0036580483
        %v1513 = vmul.f32 %v1508, %v1512
        %v1514 = vadd.f32 %v1513, 0.05243302
        %v1515 = vmul.f32 %v1508, %v1514
        %v1516 = vadd.f32 %v1515, 0.18741608
        %v1517 = vmul.f32 %v1508, %v1516
        %v1518 = vadd.f32 %v1517, 1.1283791
        %v1519 = vmul.f32 %v1241, %v1518
        %v1520 = vmul.f32 %v1508, 3.8918573e-05
        %v1521 = vadd.f32 %v1520, 0.001143296
        %v1522 = vmul.f32 %v1508, %v1521
        %v1523 = vadd.f32 %v1522, 0.014752088
        %v1524 = vmul.f32 %v1508, %v1523
        %v1525 = vadd.f32 %v1524, 0.112945676
        %v1526 = vmul.f32 %v1508, %v1525
        %v1527 = vadd.f32 %v1526, 0.4994258
        %v1528 = vmul.f32 %v1508, %v1527
        %v1529 = vadd.f32 %v1528, 1.0
        %v1530 = vrcp.pop %v1529
        %v1531 = vmul.f32 %v1529, %v1530
        %v1532 = vsub.f32 1.0, %v1531
        %v1533 = vmul.f32 %v1530, %v1532
        %v1534 = vadd.f32 %v1530, %v1533
        %vm1535 = vweird.f32 %v1529
        %vm1536 = vweird.f32 %v1530
        %vm1537 = vmor %vm1535, %vm1536
        %v1538 = vsel %vm1537, %v1530, %v1534
        %v1539 = vand.u32 2147483647, %v1529
        %vm1540 = vcmp.eq.f32.partialorder %v1539, 8.507059e+37
        %v1541 = vand.u32 %v1529, 2147483648
        %v1542 = vor.u32 1.1754944e-38, %v1541
        %v1543 = vsel %vm1540, %v1542, %v1538
        %v1544 = vmul.f32 %v1519, %v1543
        %v1545 = vmin.f32 %v1544, 1.0
        %v1546 = vmax.f32 %v1545, -1.0
        %v1547 = vmul.f32 %v1242, %v1242
        %v1548 = vmin.f32 16.0, %v1547
        %v1549 = vmul.f32 %v1548, 2.1237322e-06
        %v1550 = vadd.f32 %v1549, 0.00028619796
        %v1551 = vmul.f32 %v1548, %v1550
        %v1552 = vadd.f32 %v1551, 0.0036580483
        %v1553 = vmul.f32 %v1548, %v1552
        %v1554 = vadd.f32 %v1553, 0.05243302
        %v1555 = vmul.f32 %v1548, %v1554
        %v1556 = vadd.f32 %v1555, 0.18741608
        %v1557 = vmul.f32 %v1548, %v1556
        %v1558 = vadd.f32 %v1557, 1.1283791
        %v1559 = vmul.f32 %v1242, %v1558
        %v1560 = vmul.f32 %v1548, 3.8918573e-05
        %v1561 = vadd.f32 %v1560, 0.001143296
        %v1562 = vmul.f32 %v1548, %v1561
        %v1563 = vadd.f32 %v1562, 0.014752088
        %v1564 = vmul.f32 %v1548, %v1563
        %v1565 = vadd.f32 %v1564, 0.112945676
        %v1566 = vmul.f32 %v1548, %v1565
        %v1567 = vadd.f32 %v1566, 0.4994258
        %v1568 = vmul.f32 %v1548, %v1567
        %v1569 = vadd.f32 %v1568, 1.0
        %v1570 = vrcp.pop %v1569
        %v1571 = vmul.f32 %v1569, %v1570
        %v1572 = vsub.f32 1.0, %v1571
        %v1573 = vmul.f32 %v1570, %v1572
        %v1574 = vadd.f32 %v1570, %v1573
        %vm1575 = vweird.f32 %v1569
        %vm1576 = vweird.f32 %v1570
        %vm1577 = vmor %vm1575, %vm1576
        %v1578 = vsel %vm1577, %v1570, %v1574
        %v1579 = vand.u32 2147483647, %v1569
        %vm1580 = vcmp.eq.f32.partialorder %v1579, 8.507059e+37
        %v1581 = vand.u32 %v1569, 2147483648
        %v1582 = vor.u32 1.1754944e-38, %v1581
        %v1583 = vsel %vm1580, %v1582, %v1578
        %v1584 = vmul.f32 %v1559, %v1583
        %v1585 = vmin.f32 %v1584, 1.0
        %v1586 = vmax.f32 %v1585, -1.0
        %v1587 = vmul.f32 %v1243, %v1243
        %v1588 = vmin.f32 16.0, %v1587
        %v1589 = vmul.f32 %v1588, 2.1237322e-06
        %v1590 = vadd.f32 %v1589, 0.00028619796
        %v1591 = vmul.f32 %v1588, %v1590
        %v1592 = vadd.f32 %v1591, 0.0036580483
        %v1593 = vmul.f32 %v1588, %v1592
        %v1594 = vadd.f32 %v1593, 0.05243302
        %v1595 = vmul.f32 %v1588, %v1594
        %v1596 = vadd.f32 %v1595, 0.18741608
        %v1597 = vmul.f32 %v1588, %v1596
        %v1598 = vadd.f32 %v1597, 1.1283791
        %v1599 = vmul.f32 %v1243, %v1598
        %v1600 = vmul.f32 %v1588, 3.8918573e-05
        %v1601 = vadd.f32 %v1600, 0.001143296
        %v1602 = vmul.f32 %v1588, %v1601
        %v1603 = vadd.f32 %v1602, 0.014752088
        %v1604 = vmul.f32 %v1588, %v1603
        %v1605 = vadd.f32 %v1604, 0.112945676
        %v1606 = vmul.f32 %v1588, %v1605
        %v1607 = vadd.f32 %v1606, 0.4994258
        %v1608 = vmul.f32 %v1588, %v1607
        %v1609 = vadd.f32 %v1608, 1.0
        %v1610 = vrcp.pop %v1609
        %v1611 = vmul.f32 %v1609, %v1610
        %v1612 = vsub.f32 1.0, %v1611
        %v1613 = vmul.f32 %v1610, %v1612
        %v1614 = vadd.f32 %v1610, %v1613
        %vm1615 = vweird.f32 %v1609
        %vm1616 = vweird.f32 %v1610
        %vm1617 = vmor %vm1615, %vm1616
        %v1618 = vsel %vm1617, %v1610, %v1614
        %v1619 = vand.u32 2147483647, %v1609
        %vm1620 = vcmp.eq.f32.partialorder %v1619, 8.507059e+37
        %v1621 = vand.u32 %v1609, 2147483648
        %v1622 = vor.u32 1.1754944e-38, %v1621
        %v1623 = vsel %vm1620, %v1622, %v1618
        %v1624 = vmul.f32 %v1599, %v1623
        %v1625 = vmin.f32 %v1624, 1.0
        %v1626 = vmax.f32 %v1625, -1.0
        %v1627 = vmul.f32 %v1244, %v1244
        %v1628 = vmin.f32 16.0, %v1627
        %v1629 = vmul.f32 %v1628, 2.1237322e-06
        %v1630 = vadd.f32 %v1629, 0.00028619796
        %v1631 = vmul.f32 %v1628, %v1630
        %v1632 = vadd.f32 %v1631, 0.0036580483
        %v1633 = vmul.f32 %v1628, %v1632
        %v1634 = vadd.f32 %v1633, 0.05243302
        %v1635 = vmul.f32 %v1628, %v1634
        %v1636 = vadd.f32 %v1635, 0.18741608
        %v1637 = vmul.f32 %v1628, %v1636
        %v1638 = vadd.f32 %v1637, 1.1283791
        %v1639 = vmul.f32 %v1244, %v1638
        %v1640 = vmul.f32 %v1628, 3.8918573e-05
        %v1641 = vadd.f32 %v1640, 0.001143296
        %v1642 = vmul.f32 %v1628, %v1641
        %v1643 = vadd.f32 %v1642, 0.014752088
        %v1644 = vmul.f32 %v1628, %v1643
        %v1645 = vadd.f32 %v1644, 0.112945676
        %v1646 = vmul.f32 %v1628, %v1645
        %v1647 = vadd.f32 %v1646, 0.4994258
        %v1648 = vmul.f32 %v1628, %v1647
        %v1649 = vadd.f32 %v1648, 1.0
        %v1650 = vrcp.pop %v1649
        %v1651 = vmul.f32 %v1649, %v1650
        %v1652 = vsub.f32 1.0, %v1651
        %v1653 = vmul.f32 %v1650, %v1652
        %v1654 = vadd.f32 %v1650, %v1653
        %vm1655 = vweird.f32 %v1649
        %vm1656 = vweird.f32 %v1650
        %vm1657 = vmor %vm1655, %vm1656
        %v1658 = vsel %vm1657, %v1650, %v1654
        %v1659 = vand.u32 2147483647, %v1649
        %vm1660 = vcmp.eq.f32.partialorder %v1659, 8.507059e+37
        %v1661 = vand.u32 %v1649, 2147483648
        %v1662 = vor.u32 1.1754944e-38, %v1661
        %v1663 = vsel %vm1660, %v1662, %v1658
        %v1664 = vmul.f32 %v1639, %v1663
        %v1665 = vmin.f32 %v1664, 1.0
        %v1666 = vmax.f32 %v1665, -1.0
        %v1667 = vmul.f32 %v1245, %v1245
        %v1668 = vmin.f32 16.0, %v1667
        %v1669 = vmul.f32 %v1668, 2.1237322e-06
        %v1670 = vadd.f32 %v1669, 0.00028619796
        %v1671 = vmul.f32 %v1668, %v1670
        %v1672 = vadd.f32 %v1671, 0.0036580483
        %v1673 = vmul.f32 %v1668, %v1672
        %v1674 = vadd.f32 %v1673, 0.05243302
        %v1675 = vmul.f32 %v1668, %v1674
        %v1676 = vadd.f32 %v1675, 0.18741608
        %v1677 = vmul.f32 %v1668, %v1676
        %v1678 = vadd.f32 %v1677, 1.1283791
        %v1679 = vmul.f32 %v1245, %v1678
        %v1680 = vmul.f32 %v1668, 3.8918573e-05
        %v1681 = vadd.f32 %v1680, 0.001143296
        %v1682 = vmul.f32 %v1668, %v1681
        %v1683 = vadd.f32 %v1682, 0.014752088
        %v1684 = vmul.f32 %v1668, %v1683
        %v1685 = vadd.f32 %v1684, 0.112945676
        %v1686 = vmul.f32 %v1668, %v1685
        %v1687 = vadd.f32 %v1686, 0.4994258
        %v1688 = vmul.f32 %v1668, %v1687
        %v1689 = vadd.f32 %v1688, 1.0
        %v1690 = vrcp.pop %v1689
        %v1691 = vmul.f32 %v1689, %v1690
        %v1692 = vsub.f32 1.0, %v1691
        %v1693 = vmul.f32 %v1690, %v1692
        %v1694 = vadd.f32 %v1690, %v1693
        %vm1695 = vweird.f32 %v1689
        %vm1696 = vweird.f32 %v1690
        %vm1697 = vmor %vm1695, %vm1696
        %v1698 = vsel %vm1697, %v1690, %v1694
        %v1699 = vand.u32 2147483647, %v1689
        %vm1700 = vcmp.eq.f32.partialorder %v1699, 8.507059e+37
        %v1701 = vand.u32 %v1689, 2147483648
        %v1702 = vor.u32 1.1754944e-38, %v1701
        %v1703 = vsel %vm1700, %v1702, %v1698
        %v1704 = vmul.f32 %v1679, %v1703
        %v1705 = vmin.f32 %v1704, 1.0
        %v1706 = vmax.f32 %v1705, -1.0
        %v1707 = vmul.f32 %v1246, %v1246
        %v1708 = vmin.f32 16.0, %v1707
        %v1709 = vmul.f32 %v1708, 2.1237322e-06
        %v1710 = vadd.f32 %v1709, 0.00028619796
        %v1711 = vmul.f32 %v1708, %v1710
        %v1712 = vadd.f32 %v1711, 0.0036580483
        %v1713 = vmul.f32 %v1708, %v1712
        %v1714 = vadd.f32 %v1713, 0.05243302
        %v1715 = vmul.f32 %v1708, %v1714
        %v1716 = vadd.f32 %v1715, 0.18741608
        %v1717 = vmul.f32 %v1708, %v1716
        %v1718 = vadd.f32 %v1717, 1.1283791
        %v1719 = vmul.f32 %v1246, %v1718
        %v1720 = vmul.f32 %v1708, 3.8918573e-05
        %v1721 = vadd.f32 %v1720, 0.001143296
        %v1722 = vmul.f32 %v1708, %v1721
        %v1723 = vadd.f32 %v1722, 0.014752088
        %v1724 = vmul.f32 %v1708, %v1723
        %v1725 = vadd.f32 %v1724, 0.112945676
        %v1726 = vmul.f32 %v1708, %v1725
        %v1727 = vadd.f32 %v1726, 0.4994258
        %v1728 = vmul.f32 %v1708, %v1727
        %v1729 = vadd.f32 %v1728, 1.0
        %v1730 = vrcp.pop %v1729
        %v1731 = vmul.f32 %v1729, %v1730
        %v1732 = vsub.f32 1.0, %v1731
        %v1733 = vmul.f32 %v1730, %v1732
        %v1734 = vadd.f32 %v1730, %v1733
        %vm1735 = vweird.f32 %v1729
        %vm1736 = vweird.f32 %v1730
        %vm1737 = vmor %vm1735, %vm1736
        %v1738 = vsel %vm1737, %v1730, %v1734
        %v1739 = vand.u32 2147483647, %v1729
        %vm1740 = vcmp.eq.f32.partialorder %v1739, 8.507059e+37
        %v1741 = vand.u32 %v1729, 2147483648
        %v1742 = vor.u32 1.1754944e-38, %v1741
        %v1743 = vsel %vm1740, %v1742, %v1738
        %v1744 = vmul.f32 %v1719, %v1743
        %v1745 = vmin.f32 %v1744, 1.0
        %v1746 = vmax.f32 %v1745, -1.0
        %v1747 = vmul.f32 %v1247, %v1247
        %v1748 = vmin.f32 16.0, %v1747
        %v1749 = vmul.f32 %v1748, 2.1237322e-06
        %v1750 = vadd.f32 %v1749, 0.00028619796
        %v1751 = vmul.f32 %v1748, %v1750
        %v1752 = vadd.f32 %v1751, 0.0036580483
        %v1753 = vmul.f32 %v1748, %v1752
        %v1754 = vadd.f32 %v1753, 0.05243302
        %v1755 = vmul.f32 %v1748, %v1754
        %v1756 = vadd.f32 %v1755, 0.18741608
        %v1757 = vmul.f32 %v1748, %v1756
        %v1758 = vadd.f32 %v1757, 1.1283791
        %v1759 = vmul.f32 %v1247, %v1758
        %v1760 = vmul.f32 %v1748, 3.8918573e-05
        %v1761 = vadd.f32 %v1760, 0.001143296
        %v1762 = vmul.f32 %v1748, %v1761
        %v1763 = vadd.f32 %v1762, 0.014752088
        %v1764 = vmul.f32 %v1748, %v1763
        %v1765 = vadd.f32 %v1764, 0.112945676
        %v1766 = vmul.f32 %v1748, %v1765
        %v1767 = vadd.f32 %v1766, 0.4994258
        %v1768 = vmul.f32 %v1748, %v1767
        %v1769 = vadd.f32 %v1768, 1.0
        %v1770 = vrcp.pop %v1769
        %v1771 = vmul.f32 %v1769, %v1770
        %v1772 = vsub.f32 1.0, %v1771
        %v1773 = vmul.f32 %v1770, %v1772
        %v1774 = vadd.f32 %v1770, %v1773
        %vm1775 = vweird.f32 %v1769
        %vm1776 = vweird.f32 %v1770
        %vm1777 = vmor %vm1775, %vm1776
        %v1778 = vsel %vm1777, %v1770, %v1774
        %v1779 = vand.u32 2147483647, %v1769
        %vm1780 = vcmp.eq.f32.partialorder %v1779, 8.507059e+37
        %v1781 = vand.u32 %v1769, 2147483648
        %v1782 = vor.u32 1.1754944e-38, %v1781
        %v1783 = vsel %vm1780, %v1782, %v1778
        %v1784 = vmul.f32 %v1759, %v1783
        %v1785 = vmin.f32 %v1784, 1.0
        %v1786 = vmax.f32 %v1785, -1.0
        %v1787 = vmul.f32 %v1248, %v1248
        %v1788 = vmin.f32 16.0, %v1787
        %v1789 = vmul.f32 %v1788, 2.1237322e-06
        %v1790 = vadd.f32 %v1789, 0.00028619796
        %v1791 = vmul.f32 %v1788, %v1790
        %v1792 = vadd.f32 %v1791, 0.0036580483
        %v1793 = vmul.f32 %v1788, %v1792
        %v1794 = vadd.f32 %v1793, 0.05243302
        %v1795 = vmul.f32 %v1788, %v1794
        %v1796 = vadd.f32 %v1795, 0.18741608
        %v1797 = vmul.f32 %v1788, %v1796
        %v1798 = vadd.f32 %v1797, 1.1283791
        %v1799 = vmul.f32 %v1248, %v1798
        %v1800 = vmul.f32 %v1788, 3.8918573e-05
        %v1801 = vadd.f32 %v1800, 0.001143296
        %v1802 = vmul.f32 %v1788, %v1801
        %v1803 = vadd.f32 %v1802, 0.014752088
        %v1804 = vmul.f32 %v1788, %v1803
        %v1805 = vadd.f32 %v1804, 0.112945676
        %v1806 = vmul.f32 %v1788, %v1805
        %v1807 = vadd.f32 %v1806, 0.4994258
        %v1808 = vmul.f32 %v1788, %v1807
        %v1809 = vadd.f32 %v1808, 1.0
        %v1810 = vrcp.pop %v1809
        %v1811 = vmul.f32 %v1809, %v1810
        %v1812 = vsub.f32 1.0, %v1811
        %v1813 = vmul.f32 %v1810, %v1812
        %v1814 = vadd.f32 %v1810, %v1813
        %vm1815 = vweird.f32 %v1809
        %vm1816 = vweird.f32 %v1810
        %vm1817 = vmor %vm1815, %vm1816
        %v1818 = vsel %vm1817, %v1810, %v1814
        %v1819 = vand.u32 2147483647, %v1809
        %vm1820 = vcmp.eq.f32.partialorder %v1819, 8.507059e+37
        %v1821 = vand.u32 %v1809, 2147483648
        %v1822 = vor.u32 1.1754944e-38, %v1821
        %v1823 = vsel %vm1820, %v1822, %v1818
        %v1824 = vmul.f32 %v1799, %v1823
        %v1825 = vmin.f32 %v1824, 1.0
        %v1826 = vmax.f32 %v1825, -1.0
        %v1827 = vmul.f32 %v1249, %v1249
        %v1828 = vmin.f32 16.0, %v1827
        %v1829 = vmul.f32 %v1828, 2.1237322e-06
        %v1830 = vadd.f32 %v1829, 0.00028619796
        %v1831 = vmul.f32 %v1828, %v1830
        %v1832 = vadd.f32 %v1831, 0.0036580483
        %v1833 = vmul.f32 %v1828, %v1832
        %v1834 = vadd.f32 %v1833, 0.05243302
        %v1835 = vmul.f32 %v1828, %v1834
        %v1836 = vadd.f32 %v1835, 0.18741608
        %v1837 = vmul.f32 %v1828, %v1836
        %v1838 = vadd.f32 %v1837, 1.1283791
        %v1839 = vmul.f32 %v1249, %v1838
        %v1840 = vmul.f32 %v1828, 3.8918573e-05
        %v1841 = vadd.f32 %v1840, 0.001143296
        %v1842 = vmul.f32 %v1828, %v1841
        %v1843 = vadd.f32 %v1842, 0.014752088
        %v1844 = vmul.f32 %v1828, %v1843
        %v1845 = vadd.f32 %v1844, 0.112945676
        %v1846 = vmul.f32 %v1828, %v1845
        %v1847 = vadd.f32 %v1846, 0.4994258
        %v1848 = vmul.f32 %v1828, %v1847
        %v1849 = vadd.f32 %v1848, 1.0
        %v1850 = vrcp.pop %v1849
        %v1851 = vmul.f32 %v1849, %v1850
        %v1852 = vsub.f32 1.0, %v1851
        %v1853 = vmul.f32 %v1850, %v1852
        %v1854 = vadd.f32 %v1850, %v1853
        %vm1855 = vweird.f32 %v1849
        %vm1856 = vweird.f32 %v1850
        %vm1857 = vmor %vm1855, %vm1856
        %v1858 = vsel %vm1857, %v1850, %v1854
        %v1859 = vand.u32 2147483647, %v1849
        %vm1860 = vcmp.eq.f32.partialorder %v1859, 8.507059e+37
        %v1861 = vand.u32 %v1849, 2147483648
        %v1862 = vor.u32 1.1754944e-38, %v1861
        %v1863 = vsel %vm1860, %v1862, %v1858
        %v1864 = vmul.f32 %v1839, %v1863
        %v1865 = vmin.f32 %v1864, 1.0
        %v1866 = vmax.f32 %v1865, -1.0
        %v1867 = vmul.f32 %v1250, %v1250
        %v1868 = vmin.f32 16.0, %v1867
        %v1869 = vmul.f32 %v1868, 2.1237322e-06
        %v1870 = vadd.f32 %v1869, 0.00028619796
        %v1871 = vmul.f32 %v1868, %v1870
        %v1872 = vadd.f32 %v1871, 0.0036580483
        %v1873 = vmul.f32 %v1868, %v1872
        %v1874 = vadd.f32 %v1873, 0.05243302
        %v1875 = vmul.f32 %v1868, %v1874
        %v1876 = vadd.f32 %v1875, 0.18741608
        %v1877 = vmul.f32 %v1868, %v1876
        %v1878 = vadd.f32 %v1877, 1.1283791
        %v1879 = vmul.f32 %v1250, %v1878
        %v1880 = vmul.f32 %v1868, 3.8918573e-05
        %v1881 = vadd.f32 %v1880, 0.001143296
        %v1882 = vmul.f32 %v1868, %v1881
        %v1883 = vadd.f32 %v1882, 0.014752088
        %v1884 = vmul.f32 %v1868, %v1883
        %v1885 = vadd.f32 %v1884, 0.112945676
        %v1886 = vmul.f32 %v1868, %v1885
        %v1887 = vadd.f32 %v1886, 0.4994258
        %v1888 = vmul.f32 %v1868, %v1887
        %v1889 = vadd.f32 %v1888, 1.0
        %v1890 = vrcp.pop %v1889
        %v1891 = vmul.f32 %v1889, %v1890
        %v1892 = vsub.f32 1.0, %v1891
        %v1893 = vmul.f32 %v1890, %v1892
        %v1894 = vadd.f32 %v1890, %v1893
        %vm1895 = vweird.f32 %v1889
        %vm1896 = vweird.f32 %v1890
        %vm1897 = vmor %vm1895, %vm1896
        %v1898 = vsel %vm1897, %v1890, %v1894
        %v1899 = vand.u32 2147483647, %v1889
        %vm1900 = vcmp.eq.f32.partialorder %v1899, 8.507059e+37
        %v1901 = vand.u32 %v1889, 2147483648
        %v1902 = vor.u32 1.1754944e-38, %v1901
        %v1903 = vsel %vm1900, %v1902, %v1898
        %v1904 = vmul.f32 %v1879, %v1903
        %v1905 = vmin.f32 %v1904, 1.0
        %v1906 = vmax.f32 %v1905, -1.0
        %v1907 = vmul.f32 %v1251, %v1251
        %v1908 = vmin.f32 16.0, %v1907
        %v1909 = vmul.f32 %v1908, 2.1237322e-06
        %v1910 = vadd.f32 %v1909, 0.00028619796
        %v1911 = vmul.f32 %v1908, %v1910
        %v1912 = vadd.f32 %v1911, 0.0036580483
        %v1913 = vmul.f32 %v1908, %v1912
        %v1914 = vadd.f32 %v1913, 0.05243302
        %v1915 = vmul.f32 %v1908, %v1914
        %v1916 = vadd.f32 %v1915, 0.18741608
        %v1917 = vmul.f32 %v1908, %v1916
        %v1918 = vadd.f32 %v1917, 1.1283791
        %v1919 = vmul.f32 %v1251, %v1918
        %v1920 = vmul.f32 %v1908, 3.8918573e-05
        %v1921 = vadd.f32 %v1920, 0.001143296
        %v1922 = vmul.f32 %v1908, %v1921
        %v1923 = vadd.f32 %v1922, 0.014752088
        %v1924 = vmul.f32 %v1908, %v1923
        %v1925 = vadd.f32 %v1924, 0.112945676
        %v1926 = vmul.f32 %v1908, %v1925
        %v1927 = vadd.f32 %v1926, 0.4994258
        %v1928 = vmul.f32 %v1908, %v1927
        %v1929 = vadd.f32 %v1928, 1.0
        %v1930 = vrcp.pop %v1929
        %v1931 = vmul.f32 %v1929, %v1930
        %v1932 = vsub.f32 1.0, %v1931
        %v1933 = vmul.f32 %v1930, %v1932
        %v1934 = vadd.f32 %v1930, %v1933
        %vm1935 = vweird.f32 %v1929
        %vm1936 = vweird.f32 %v1930
        %vm1937 = vmor %vm1935, %vm1936
        %v1938 = vsel %vm1937, %v1930, %v1934
        %v1939 = vand.u32 2147483647, %v1929
        %vm1940 = vcmp.eq.f32.partialorder %v1939, 8.507059e+37
        %v1941 = vand.u32 %v1929, 2147483648
        %v1942 = vor.u32 1.1754944e-38, %v1941
        %v1943 = vsel %vm1940, %v1942, %v1938
        %v1944 = vmul.f32 %v1919, %v1943
        %v1945 = vmin.f32 %v1944, 1.0
        %v1946 = vmax.f32 %v1945, -1.0
        %v1947 = vmul.f32 %v1252, %v1252
        %v1948 = vmin.f32 16.0, %v1947
        %v1949 = vmul.f32 %v1948, 2.1237322e-06
        %v1950 = vadd.f32 %v1949, 0.00028619796
        %v1951 = vmul.f32 %v1948, %v1950
        %v1952 = vadd.f32 %v1951, 0.0036580483
        %v1953 = vmul.f32 %v1948, %v1952
        %v1954 = vadd.f32 %v1953, 0.05243302
        %v1955 = vmul.f32 %v1948, %v1954
        %v1956 = vadd.f32 %v1955, 0.18741608
        %v1957 = vmul.f32 %v1948, %v1956
        %v1958 = vadd.f32 %v1957, 1.1283791
        %v1959 = vmul.f32 %v1252, %v1958
        %v1960 = vmul.f32 %v1948, 3.8918573e-05
        %v1961 = vadd.f32 %v1960, 0.001143296
        %v1962 = vmul.f32 %v1948, %v1961
        %v1963 = vadd.f32 %v1962, 0.014752088
        %v1964 = vmul.f32 %v1948, %v1963
        %v1965 = vadd.f32 %v1964, 0.112945676
        %v1966 = vmul.f32 %v1948, %v1965
        %v1967 = vadd.f32 %v1966, 0.4994258
        %v1968 = vmul.f32 %v1948, %v1967
        %v1969 = vadd.f32 %v1968, 1.0
        %v1970 = vrcp.pop %v1969
        %v1971 = vmul.f32 %v1969, %v1970
        %v1972 = vsub.f32 1.0, %v1971
        %v1973 = vmul.f32 %v1970, %v1972
        %v1974 = vadd.f32 %v1970, %v1973
        %vm1975 = vweird.f32 %v1969
        %vm1976 = vweird.f32 %v1970
        %vm1977 = vmor %vm1975, %vm1976
        %v1978 = vsel %vm1977, %v1970, %v1974
        %v1979 = vand.u32 2147483647, %v1969
        %vm1980 = vcmp.eq.f32.partialorder %v1979, 8.507059e+37
        %v1981 = vand.u32 %v1969, 2147483648
        %v1982 = vor.u32 1.1754944e-38, %v1981
        %v1983 = vsel %vm1980, %v1982, %v1978
        %v1984 = vmul.f32 %v1959, %v1983
        %v1985 = vmin.f32 %v1984, 1.0
        %v1986 = vmax.f32 %v1985, -1.0
        %v1987 = vmul.f32 %v1253, %v1253
        %v1988 = vmin.f32 16.0, %v1987
        %v1989 = vmul.f32 %v1988, 2.1237322e-06
        %v1990 = vadd.f32 %v1989, 0.00028619796
        %v1991 = vmul.f32 %v1988, %v1990
        %v1992 = vadd.f32 %v1991, 0.0036580483
        %v1993 = vmul.f32 %v1988, %v1992
        %v1994 = vadd.f32 %v1993, 0.05243302
        %v1995 = vmul.f32 %v1988, %v1994
        %v1996 = vadd.f32 %v1995, 0.18741608
        %v1997 = vmul.f32 %v1988, %v1996
        %v1998 = vadd.f32 %v1997, 1.1283791
        %v1999 = vmul.f32 %v1253, %v1998
        %v2000 = vmul.f32 %v1988, 3.8918573e-05
        %v2001 = vadd.f32 %v2000, 0.001143296
        %v2002 = vmul.f32 %v1988, %v2001
        %v2003 = vadd.f32 %v2002, 0.014752088
        %v2004 = vmul.f32 %v1988, %v2003
        %v2005 = vadd.f32 %v2004, 0.112945676
        %v2006 = vmul.f32 %v1988, %v2005
        %v2007 = vadd.f32 %v2006, 0.4994258
        %v2008 = vmul.f32 %v1988, %v2007
        %v2009 = vadd.f32 %v2008, 1.0
        %v2010 = vrcp.pop %v2009
        %v2011 = vmul.f32 %v2009, %v2010
        %v2012 = vsub.f32 1.0, %v2011
        %v2013 = vmul.f32 %v2010, %v2012
        %v2014 = vadd.f32 %v2010, %v2013
        %vm2015 = vweird.f32 %v2009
        %vm2016 = vweird.f32 %v2010
        %vm2017 = vmor %vm2015, %vm2016
        %v2018 = vsel %vm2017, %v2010, %v2014
        %v2019 = vand.u32 2147483647, %v2009
        %vm2020 = vcmp.eq.f32.partialorder %v2019, 8.507059e+37
        %v2021 = vand.u32 %v2009, 2147483648
        %v2022 = vor.u32 1.1754944e-38, %v2021
        %v2023 = vsel %vm2020, %v2022, %v2018
        %v2024 = vmul.f32 %v1999, %v2023
        %v2025 = vmin.f32 %v2024, 1.0
        %v2026 = vmax.f32 %v2025, -1.0
        %v2027 = vmul.f32 %v1254, %v1254
        %v2028 = vmin.f32 16.0, %v2027
        %v2029 = vmul.f32 %v2028, 2.1237322e-06
        %v2030 = vadd.f32 %v2029, 0.00028619796
        %v2031 = vmul.f32 %v2028, %v2030
        %v2032 = vadd.f32 %v2031, 0.0036580483
        %v2033 = vmul.f32 %v2028, %v2032
        %v2034 = vadd.f32 %v2033, 0.05243302
        %v2035 = vmul.f32 %v2028, %v2034
        %v2036 = vadd.f32 %v2035, 0.18741608
        %v2037 = vmul.f32 %v2028, %v2036
        %v2038 = vadd.f32 %v2037, 1.1283791
        %v2039 = vmul.f32 %v1254, %v2038
        %v2040 = vmul.f32 %v2028, 3.8918573e-05
        %v2041 = vadd.f32 %v2040, 0.001143296
        %v2042 = vmul.f32 %v2028, %v2041
        %v2043 = vadd.f32 %v2042, 0.014752088
        %v2044 = vmul.f32 %v2028, %v2043
        %v2045 = vadd.f32 %v2044, 0.112945676
        %v2046 = vmul.f32 %v2028, %v2045
        %v2047 = vadd.f32 %v2046, 0.4994258
        %v2048 = vmul.f32 %v2028, %v2047
        %v2049 = vadd.f32 %v2048, 1.0
        %v2050 = vrcp.pop %v2049
        %v2051 = vmul.f32 %v2049, %v2050
        %v2052 = vsub.f32 1.0, %v2051
        %v2053 = vmul.f32 %v2050, %v2052
        %v2054 = vadd.f32 %v2050, %v2053
        %vm2055 = vweird.f32 %v2049
        %vm2056 = vweird.f32 %v2050
        %vm2057 = vmor %vm2055, %vm2056
        %v2058 = vsel %vm2057, %v2050, %v2054
        %v2059 = vand.u32 2147483647, %v2049
        %vm2060 = vcmp.eq.f32.partialorder %v2059, 8.507059e+37
        %v2061 = vand.u32 %v2049, 2147483648
        %v2062 = vor.u32 1.1754944e-38, %v2061
        %v2063 = vsel %vm2060, %v2062, %v2058
        %v2064 = vmul.f32 %v2039, %v2063
        %v2065 = vmin.f32 %v2064, 1.0
        %v2066 = vmax.f32 %v2065, -1.0
        %v2067 = vmul.f32 %v1255, %v1255
        %v2068 = vmin.f32 16.0, %v2067
        %v2069 = vmul.f32 %v2068, 2.1237322e-06
        %v2070 = vadd.f32 %v2069, 0.00028619796
        %v2071 = vmul.f32 %v2068, %v2070
        %v2072 = vadd.f32 %v2071, 0.0036580483
        %v2073 = vmul.f32 %v2068, %v2072
        %v2074 = vadd.f32 %v2073, 0.05243302
        %v2075 = vmul.f32 %v2068, %v2074
        %v2076 = vadd.f32 %v2075, 0.18741608
        %v2077 = vmul.f32 %v2068, %v2076
        %v2078 = vadd.f32 %v2077, 1.1283791
        %v2079 = vmul.f32 %v1255, %v2078
        %v2080 = vmul.f32 %v2068, 3.8918573e-05
        %v2081 = vadd.f32 %v2080, 0.001143296
        %v2082 = vmul.f32 %v2068, %v2081
        %v2083 = vadd.f32 %v2082, 0.014752088
        %v2084 = vmul.f32 %v2068, %v2083
        %v2085 = vadd.f32 %v2084, 0.112945676
        %v2086 = vmul.f32 %v2068, %v2085
        %v2087 = vadd.f32 %v2086, 0.4994258
        %v2088 = vmul.f32 %v2068, %v2087
        %v2089 = vadd.f32 %v2088, 1.0
        %v2090 = vrcp.pop %v2089
        %v2091 = vmul.f32 %v2089, %v2090
        %v2092 = vsub.f32 1.0, %v2091
        %v2093 = vmul.f32 %v2090, %v2092
        %v2094 = vadd.f32 %v2090, %v2093
        %vm2095 = vweird.f32 %v2089
        %vm2096 = vweird.f32 %v2090
        %vm2097 = vmor %vm2095, %vm2096
        %v2098 = vsel %vm2097, %v2090, %v2094
        %v2099 = vand.u32 2147483647, %v2089
        %vm2100 = vcmp.eq.f32.partialorder %v2099, 8.507059e+37
        %v2101 = vand.u32 %v2089, 2147483648
        %v2102 = vor.u32 1.1754944e-38, %v2101
        %v2103 = vsel %vm2100, %v2102, %v2098
        %v2104 = vmul.f32 %v2079, %v2103
        %v2105 = vmin.f32 %v2104, 1.0
        %v2106 = vmax.f32 %v2105, -1.0
        %v2107 = vmul.f32 %v1256, %v1256
        %v2108 = vmin.f32 16.0, %v2107
        %v2109 = vmul.f32 %v2108, 2.1237322e-06
        %v2110 = vadd.f32 %v2109, 0.00028619796
        %v2111 = vmul.f32 %v2108, %v2110
        %v2112 = vadd.f32 %v2111, 0.0036580483
        %v2113 = vmul.f32 %v2108, %v2112
        %v2114 = vadd.f32 %v2113, 0.05243302
        %v2115 = vmul.f32 %v2108, %v2114
        %v2116 = vadd.f32 %v2115, 0.18741608
        %v2117 = vmul.f32 %v2108, %v2116
        %v2118 = vadd.f32 %v2117, 1.1283791
        %v2119 = vmul.f32 %v1256, %v2118
        %v2120 = vmul.f32 %v2108, 3.8918573e-05
        %v2121 = vadd.f32 %v2120, 0.001143296
        %v2122 = vmul.f32 %v2108, %v2121
        %v2123 = vadd.f32 %v2122, 0.014752088
        %v2124 = vmul.f32 %v2108, %v2123
        %v2125 = vadd.f32 %v2124, 0.112945676
        %v2126 = vmul.f32 %v2108, %v2125
        %v2127 = vadd.f32 %v2126, 0.4994258
        %v2128 = vmul.f32 %v2108, %v2127
        %v2129 = vadd.f32 %v2128, 1.0
        %v2130 = vrcp.pop %v2129
        %v2131 = vmul.f32 %v2129, %v2130
        %v2132 = vsub.f32 1.0, %v2131
        %v2133 = vmul.f32 %v2130, %v2132
        %v2134 = vadd.f32 %v2130, %v2133
        %vm2135 = vweird.f32 %v2129
        %vm2136 = vweird.f32 %v2130
        %vm2137 = vmor %vm2135, %vm2136
        %v2138 = vsel %vm2137, %v2130, %v2134
        %v2139 = vand.u32 2147483647, %v2129
        %vm2140 = vcmp.eq.f32.partialorder %v2139, 8.507059e+37
        %v2141 = vand.u32 %v2129, 2147483648
        %v2142 = vor.u32 1.1754944e-38, %v2141
        %v2143 = vsel %vm2140, %v2142, %v2138
        %v2144 = vmul.f32 %v2119, %v2143
        %v2145 = vmin.f32 %v2144, 1.0
        %v2146 = vmax.f32 %v2145, -1.0
        %v2147 = vmul.f32 %v1257, %v1257
        %v2148 = vmin.f32 16.0, %v2147
        %v2149 = vmul.f32 %v2148, 2.1237322e-06
        %v2150 = vadd.f32 %v2149, 0.00028619796
        %v2151 = vmul.f32 %v2148, %v2150
        %v2152 = vadd.f32 %v2151, 0.0036580483
        %v2153 = vmul.f32 %v2148, %v2152
        %v2154 = vadd.f32 %v2153, 0.05243302
        %v2155 = vmul.f32 %v2148, %v2154
        %v2156 = vadd.f32 %v2155, 0.18741608
        %v2157 = vmul.f32 %v2148, %v2156
        %v2158 = vadd.f32 %v2157, 1.1283791
        %v2159 = vmul.f32 %v1257, %v2158
        %v2160 = vmul.f32 %v2148, 3.8918573e-05
        %v2161 = vadd.f32 %v2160, 0.001143296
        %v2162 = vmul.f32 %v2148, %v2161
        %v2163 = vadd.f32 %v2162, 0.014752088
        %v2164 = vmul.f32 %v2148, %v2163
        %v2165 = vadd.f32 %v2164, 0.112945676
        %v2166 = vmul.f32 %v2148, %v2165
        %v2167 = vadd.f32 %v2166, 0.4994258
        %v2168 = vmul.f32 %v2148, %v2167
        %v2169 = vadd.f32 %v2168, 1.0
        %v2170 = vrcp.pop %v2169
        %v2171 = vmul.f32 %v2169, %v2170
        %v2172 = vsub.f32 1.0, %v2171
        %v2173 = vmul.f32 %v2170, %v2172
        %v2174 = vadd.f32 %v2170, %v2173
        %vm2175 = vweird.f32 %v2169
        %vm2176 = vweird.f32 %v2170
        %vm2177 = vmor %vm2175, %vm2176
        %v2178 = vsel %vm2177, %v2170, %v2174
        %v2179 = vand.u32 2147483647, %v2169
        %vm2180 = vcmp.eq.f32.partialorder %v2179, 8.507059e+37
        %v2181 = vand.u32 %v2169, 2147483648
        %v2182 = vor.u32 1.1754944e-38, %v2181
        %v2183 = vsel %vm2180, %v2182, %v2178
        %v2184 = vmul.f32 %v2159, %v2183
        %v2185 = vmin.f32 %v2184, 1.0
        %v2186 = vmax.f32 %v2185, -1.0
        %v2187 = vmul.f32 %v1258, %v1258
        %v2188 = vmin.f32 16.0, %v2187
        %v2189 = vmul.f32 %v2188, 2.1237322e-06
        %v2190 = vadd.f32 %v2189, 0.00028619796
        %v2191 = vmul.f32 %v2188, %v2190
        %v2192 = vadd.f32 %v2191, 0.0036580483
        %v2193 = vmul.f32 %v2188, %v2192
        %v2194 = vadd.f32 %v2193, 0.05243302
        %v2195 = vmul.f32 %v2188, %v2194
        %v2196 = vadd.f32 %v2195, 0.18741608
        %v2197 = vmul.f32 %v2188, %v2196
        %v2198 = vadd.f32 %v2197, 1.1283791
        %v2199 = vmul.f32 %v1258, %v2198
        %v2200 = vmul.f32 %v2188, 3.8918573e-05
        %v2201 = vadd.f32 %v2200, 0.001143296
        %v2202 = vmul.f32 %v2188, %v2201
        %v2203 = vadd.f32 %v2202, 0.014752088
        %v2204 = vmul.f32 %v2188, %v2203
        %v2205 = vadd.f32 %v2204, 0.112945676
        %v2206 = vmul.f32 %v2188, %v2205
        %v2207 = vadd.f32 %v2206, 0.4994258
        %v2208 = vmul.f32 %v2188, %v2207
        %v2209 = vadd.f32 %v2208, 1.0
        %v2210 = vrcp.pop %v2209
        %v2211 = vmul.f32 %v2209, %v2210
        %v2212 = vsub.f32 1.0, %v2211
        %v2213 = vmul.f32 %v2210, %v2212
        %v2214 = vadd.f32 %v2210, %v2213
        %vm2215 = vweird.f32 %v2209
        %vm2216 = vweird.f32 %v2210
        %vm2217 = vmor %vm2215, %vm2216
        %v2218 = vsel %vm2217, %v2210, %v2214
        %v2219 = vand.u32 2147483647, %v2209
        %vm2220 = vcmp.eq.f32.partialorder %v2219, 8.507059e+37
        %v2221 = vand.u32 %v2209, 2147483648
        %v2222 = vor.u32 1.1754944e-38, %v2221
        %v2223 = vsel %vm2220, %v2222, %v2218
        %v2224 = vmul.f32 %v2199, %v2223
        %v2225 = vmin.f32 %v2224, 1.0
        %v2226 = vmax.f32 %v2225, -1.0
        %v2227 = vmul.f32 %v1259, %v1259
        %v2228 = vmin.f32 16.0, %v2227
        %v2229 = vmul.f32 %v2228, 2.1237322e-06
        %v2230 = vadd.f32 %v2229, 0.00028619796
        %v2231 = vmul.f32 %v2228, %v2230
        %v2232 = vadd.f32 %v2231, 0.0036580483
        %v2233 = vmul.f32 %v2228, %v2232
        %v2234 = vadd.f32 %v2233, 0.05243302
        %v2235 = vmul.f32 %v2228, %v2234
        %v2236 = vadd.f32 %v2235, 0.18741608
        %v2237 = vmul.f32 %v2228, %v2236
        %v2238 = vadd.f32 %v2237, 1.1283791
        %v2239 = vmul.f32 %v1259, %v2238
        %v2240 = vmul.f32 %v2228, 3.8918573e-05
        %v2241 = vadd.f32 %v2240, 0.001143296
        %v2242 = vmul.f32 %v2228, %v2241
        %v2243 = vadd.f32 %v2242, 0.014752088
        %v2244 = vmul.f32 %v2228, %v2243
        %v2245 = vadd.f32 %v2244, 0.112945676
        %v2246 = vmul.f32 %v2228, %v2245
        %v2247 = vadd.f32 %v2246, 0.4994258
        %v2248 = vmul.f32 %v2228, %v2247
        %v2249 = vadd.f32 %v2248, 1.0
        %v2250 = vrcp.pop %v2249
        %v2251 = vmul.f32 %v2249, %v2250
        %v2252 = vsub.f32 1.0, %v2251
        %v2253 = vmul.f32 %v2250, %v2252
        %v2254 = vadd.f32 %v2250, %v2253
        %vm2255 = vweird.f32 %v2249
        %vm2256 = vweird.f32 %v2250
        %vm2257 = vmor %vm2255, %vm2256
        %v2258 = vsel %vm2257, %v2250, %v2254
        %v2259 = vand.u32 2147483647, %v2249
        %vm2260 = vcmp.eq.f32.partialorder %v2259, 8.507059e+37
        %v2261 = vand.u32 %v2249, 2147483648
        %v2262 = vor.u32 1.1754944e-38, %v2261
        %v2263 = vsel %vm2260, %v2262, %v2258
        %v2264 = vmul.f32 %v2239, %v2263
        %v2265 = vmin.f32 %v2264, 1.0
        %v2266 = vmax.f32 %v2265, -1.0
        %v2267 = vmul.f32 %v1260, %v1260
        %v2268 = vmin.f32 16.0, %v2267
        %v2269 = vmul.f32 %v2268, 2.1237322e-06
        %v2270 = vadd.f32 %v2269, 0.00028619796
        %v2271 = vmul.f32 %v2268, %v2270
        %v2272 = vadd.f32 %v2271, 0.0036580483
        %v2273 = vmul.f32 %v2268, %v2272
        %v2274 = vadd.f32 %v2273, 0.05243302
        %v2275 = vmul.f32 %v2268, %v2274
        %v2276 = vadd.f32 %v2275, 0.18741608
        %v2277 = vmul.f32 %v2268, %v2276
        %v2278 = vadd.f32 %v2277, 1.1283791
        %v2279 = vmul.f32 %v1260, %v2278
        %v2280 = vmul.f32 %v2268, 3.8918573e-05
        %v2281 = vadd.f32 %v2280, 0.001143296
        %v2282 = vmul.f32 %v2268, %v2281
        %v2283 = vadd.f32 %v2282, 0.014752088
        %v2284 = vmul.f32 %v2268, %v2283
        %v2285 = vadd.f32 %v2284, 0.112945676
        %v2286 = vmul.f32 %v2268, %v2285
        %v2287 = vadd.f32 %v2286, 0.4994258
        %v2288 = vmul.f32 %v2268, %v2287
        %v2289 = vadd.f32 %v2288, 1.0
        %v2290 = vrcp.pop %v2289
        %v2291 = vmul.f32 %v2289, %v2290
        %v2292 = vsub.f32 1.0, %v2291
        %v2293 = vmul.f32 %v2290, %v2292
        %v2294 = vadd.f32 %v2290, %v2293
        %vm2295 = vweird.f32 %v2289
        %vm2296 = vweird.f32 %v2290
        %vm2297 = vmor %vm2295, %vm2296
        %v2298 = vsel %vm2297, %v2290, %v2294
        %v2299 = vand.u32 2147483647, %v2289
        %vm2300 = vcmp.eq.f32.partialorder %v2299, 8.507059e+37
        %v2301 = vand.u32 %v2289, 2147483648
        %v2302 = vor.u32 1.1754944e-38, %v2301
        %v2303 = vsel %vm2300, %v2302, %v2298
        %v2304 = vmul.f32 %v2279, %v2303
        %v2305 = vmin.f32 %v2304, 1.0
        %v2306 = vmax.f32 %v2305, -1.0
        %v2307 = vmul.f32 %v1261, %v1261
        %v2308 = vmin.f32 16.0, %v2307
        %v2309 = vmul.f32 %v2308, 2.1237322e-06
        %v2310 = vadd.f32 %v2309, 0.00028619796
        %v2311 = vmul.f32 %v2308, %v2310
        %v2312 = vadd.f32 %v2311, 0.0036580483
        %v2313 = vmul.f32 %v2308, %v2312
        %v2314 = vadd.f32 %v2313, 0.05243302
        %v2315 = vmul.f32 %v2308, %v2314
        %v2316 = vadd.f32 %v2315, 0.18741608
        %v2317 = vmul.f32 %v2308, %v2316
        %v2318 = vadd.f32 %v2317, 1.1283791
        %v2319 = vmul.f32 %v1261, %v2318
        %v2320 = vmul.f32 %v2308, 3.8918573e-05
        %v2321 = vadd.f32 %v2320, 0.001143296
        %v2322 = vmul.f32 %v2308, %v2321
        %v2323 = vadd.f32 %v2322, 0.014752088
        %v2324 = vmul.f32 %v2308, %v2323
        %v2325 = vadd.f32 %v2324, 0.112945676
        %v2326 = vmul.f32 %v2308, %v2325
        %v2327 = vadd.f32 %v2326, 0.4994258
        %v2328 = vmul.f32 %v2308, %v2327
        %v2329 = vadd.f32 %v2328, 1.0
        %v2330 = vrcp.pop %v2329
        %v2331 = vmul.f32 %v2329, %v2330
        %v2332 = vsub.f32 1.0, %v2331
        %v2333 = vmul.f32 %v2330, %v2332
        %v2334 = vadd.f32 %v2330, %v2333
        %vm2335 = vweird.f32 %v2329
        %vm2336 = vweird.f32 %v2330
        %vm2337 = vmor %vm2335, %vm2336
        %v2338 = vsel %vm2337, %v2330, %v2334
        %v2339 = vand.u32 2147483647, %v2329
        %vm2340 = vcmp.eq.f32.partialorder %v2339, 8.507059e+37
        %v2341 = vand.u32 %v2329, 2147483648
        %v2342 = vor.u32 1.1754944e-38, %v2341
        %v2343 = vsel %vm2340, %v2342, %v2338
        %v2344 = vmul.f32 %v2319, %v2343
        %v2345 = vmin.f32 %v2344, 1.0
        %v2346 = vmax.f32 %v2345, -1.0
        %v2347 = vmul.f32 %v1262, %v1262
        %v2348 = vmin.f32 16.0, %v2347
        %v2349 = vmul.f32 %v2348, 2.1237322e-06
        %v2350 = vadd.f32 %v2349, 0.00028619796
        %v2351 = vmul.f32 %v2348, %v2350
        %v2352 = vadd.f32 %v2351, 0.0036580483
        %v2353 = vmul.f32 %v2348, %v2352
        %v2354 = vadd.f32 %v2353, 0.05243302
        %v2355 = vmul.f32 %v2348, %v2354
        %v2356 = vadd.f32 %v2355, 0.18741608
        %v2357 = vmul.f32 %v2348, %v2356
        %v2358 = vadd.f32 %v2357, 1.1283791
        %v2359 = vmul.f32 %v1262, %v2358
        %v2360 = vmul.f32 %v2348, 3.8918573e-05
        %v2361 = vadd.f32 %v2360, 0.001143296
        %v2362 = vmul.f32 %v2348, %v2361
        %v2363 = vadd.f32 %v2362, 0.014752088
        %v2364 = vmul.f32 %v2348, %v2363
        %v2365 = vadd.f32 %v2364, 0.112945676
        %v2366 = vmul.f32 %v2348, %v2365
        %v2367 = vadd.f32 %v2366, 0.4994258
        %v2368 = vmul.f32 %v2348, %v2367
        %v2369 = vadd.f32 %v2368, 1.0
        %v2370 = vrcp.pop %v2369
        %v2371 = vmul.f32 %v2369, %v2370
        %v2372 = vsub.f32 1.0, %v2371
        %v2373 = vmul.f32 %v2370, %v2372
        %v2374 = vadd.f32 %v2370, %v2373
        %vm2375 = vweird.f32 %v2369
        %vm2376 = vweird.f32 %v2370
        %vm2377 = vmor %vm2375, %vm2376
        %v2378 = vsel %vm2377, %v2370, %v2374
        %v2379 = vand.u32 2147483647, %v2369
        %vm2380 = vcmp.eq.f32.partialorder %v2379, 8.507059e+37
        %v2381 = vand.u32 %v2369, 2147483648
        %v2382 = vor.u32 1.1754944e-38, %v2381
        %v2383 = vsel %vm2380, %v2382, %v2378
        %v2384 = vmul.f32 %v2359, %v2383
        %v2385 = vmin.f32 %v2384, 1.0
        %v2386 = vmax.f32 %v2385, -1.0
        %v2387 = vmul.f32 %v1263, %v1263
        %v2388 = vmin.f32 16.0, %v2387
        %v2389 = vmul.f32 %v2388, 2.1237322e-06
        %v2390 = vadd.f32 %v2389, 0.00028619796
        %v2391 = vmul.f32 %v2388, %v2390
        %v2392 = vadd.f32 %v2391, 0.0036580483
        %v2393 = vmul.f32 %v2388, %v2392
        %v2394 = vadd.f32 %v2393, 0.05243302
        %v2395 = vmul.f32 %v2388, %v2394
        %v2396 = vadd.f32 %v2395, 0.18741608
        %v2397 = vmul.f32 %v2388, %v2396
        %v2398 = vadd.f32 %v2397, 1.1283791
        %v2399 = vmul.f32 %v1263, %v2398
        %v2400 = vmul.f32 %v2388, 3.8918573e-05
        %v2401 = vadd.f32 %v2400, 0.001143296
        %v2402 = vmul.f32 %v2388, %v2401
        %v2403 = vadd.f32 %v2402, 0.014752088
        %v2404 = vmul.f32 %v2388, %v2403
        %v2405 = vadd.f32 %v2404, 0.112945676
        %v2406 = vmul.f32 %v2388, %v2405
        %v2407 = vadd.f32 %v2406, 0.4994258
        %v2408 = vmul.f32 %v2388, %v2407
        %v2409 = vadd.f32 %v2408, 1.0
        %v2410 = vrcp.pop %v2409
        %v2411 = vmul.f32 %v2409, %v2410
        %v2412 = vsub.f32 1.0, %v2411
        %v2413 = vmul.f32 %v2410, %v2412
        %v2414 = vadd.f32 %v2410, %v2413
        %vm2415 = vweird.f32 %v2409
        %vm2416 = vweird.f32 %v2410
        %vm2417 = vmor %vm2415, %vm2416
        %v2418 = vsel %vm2417, %v2410, %v2414
        %v2419 = vand.u32 2147483647, %v2409
        %vm2420 = vcmp.eq.f32.partialorder %v2419, 8.507059e+37
        %v2421 = vand.u32 %v2409, 2147483648
        %v2422 = vor.u32 1.1754944e-38, %v2421
        %v2423 = vsel %vm2420, %v2422, %v2418
        %v2424 = vmul.f32 %v2399, %v2423
        %v2425 = vmin.f32 %v2424, 1.0
        %v2426 = vmax.f32 %v2425, -1.0
        %v2427 = vmul.f32 %v1264, %v1264
        %v2428 = vmin.f32 16.0, %v2427
        %v2429 = vmul.f32 %v2428, 2.1237322e-06
        %v2430 = vadd.f32 %v2429, 0.00028619796
        %v2431 = vmul.f32 %v2428, %v2430
        %v2432 = vadd.f32 %v2431, 0.0036580483
        %v2433 = vmul.f32 %v2428, %v2432
        %v2434 = vadd.f32 %v2433, 0.05243302
        %v2435 = vmul.f32 %v2428, %v2434
        %v2436 = vadd.f32 %v2435, 0.18741608
        %v2437 = vmul.f32 %v2428, %v2436
        %v2438 = vadd.f32 %v2437, 1.1283791
        %v2439 = vmul.f32 %v1264, %v2438
        %v2440 = vmul.f32 %v2428, 3.8918573e-05
        %v2441 = vadd.f32 %v2440, 0.001143296
        %v2442 = vmul.f32 %v2428, %v2441
        %v2443 = vadd.f32 %v2442, 0.014752088
        %v2444 = vmul.f32 %v2428, %v2443
        %v2445 = vadd.f32 %v2444, 0.112945676
        %v2446 = vmul.f32 %v2428, %v2445
        %v2447 = vadd.f32 %v2446, 0.4994258
        %v2448 = vmul.f32 %v2428, %v2447
        %v2449 = vadd.f32 %v2448, 1.0
        %v2450 = vrcp.pop %v2449
        %v2451 = vmul.f32 %v2449, %v2450
        %v2452 = vsub.f32 1.0, %v2451
        %v2453 = vmul.f32 %v2450, %v2452
        %v2454 = vadd.f32 %v2450, %v2453
        %vm2455 = vweird.f32 %v2449
        %vm2456 = vweird.f32 %v2450
        %vm2457 = vmor %vm2455, %vm2456
        %v2458 = vsel %vm2457, %v2450, %v2454
        %v2459 = vand.u32 2147483647, %v2449
        %vm2460 = vcmp.eq.f32.partialorder %v2459, 8.507059e+37
        %v2461 = vand.u32 %v2449, 2147483648
        %v2462 = vor.u32 1.1754944e-38, %v2461
        %v2463 = vsel %vm2460, %v2462, %v2458
        %v2464 = vmul.f32 %v2439, %v2463
        %v2465 = vmin.f32 %v2464, 1.0
        %v2466 = vmax.f32 %v2465, -1.0
        %v2467 = vmul.f32 %v1265, %v1265
        %v2468 = vmin.f32 16.0, %v2467
        %v2469 = vmul.f32 %v2468, 2.1237322e-06
        %v2470 = vadd.f32 %v2469, 0.00028619796
        %v2471 = vmul.f32 %v2468, %v2470
        %v2472 = vadd.f32 %v2471, 0.0036580483
        %v2473 = vmul.f32 %v2468, %v2472
        %v2474 = vadd.f32 %v2473, 0.05243302
        %v2475 = vmul.f32 %v2468, %v2474
        %v2476 = vadd.f32 %v2475, 0.18741608
        %v2477 = vmul.f32 %v2468, %v2476
        %v2478 = vadd.f32 %v2477, 1.1283791
        %v2479 = vmul.f32 %v1265, %v2478
        %v2480 = vmul.f32 %v2468, 3.8918573e-05
        %v2481 = vadd.f32 %v2480, 0.001143296
        %v2482 = vmul.f32 %v2468, %v2481
        %v2483 = vadd.f32 %v2482, 0.014752088
        %v2484 = vmul.f32 %v2468, %v2483
        %v2485 = vadd.f32 %v2484, 0.112945676
        %v2486 = vmul.f32 %v2468, %v2485
        %v2487 = vadd.f32 %v2486, 0.4994258
        %v2488 = vmul.f32 %v2468, %v2487
        %v2489 = vadd.f32 %v2488, 1.0
        %v2490 = vrcp.pop %v2489
        %v2491 = vmul.f32 %v2489, %v2490
        %v2492 = vsub.f32 1.0, %v2491
        %v2493 = vmul.f32 %v2490, %v2492
        %v2494 = vadd.f32 %v2490, %v2493
        %vm2495 = vweird.f32 %v2489
        %vm2496 = vweird.f32 %v2490
        %vm2497 = vmor %vm2495, %vm2496
        %v2498 = vsel %vm2497, %v2490, %v2494
        %v2499 = vand.u32 2147483647, %v2489
        %vm2500 = vcmp.eq.f32.partialorder %v2499, 8.507059e+37
        %v2501 = vand.u32 %v2489, 2147483648
        %v2502 = vor.u32 1.1754944e-38, %v2501
        %v2503 = vsel %vm2500, %v2502, %v2498
        %v2504 = vmul.f32 %v2479, %v2503
        %v2505 = vmin.f32 %v2504, 1.0
        %v2506 = vmax.f32 %v2505, -1.0
        %v2507 = vmul.f32 %v1266, %v1266
        %v2508 = vmin.f32 16.0, %v2507
        %v2509 = vmul.f32 %v2508, 2.1237322e-06
        %v2510 = vadd.f32 %v2509, 0.00028619796
        %v2511 = vmul.f32 %v2508, %v2510
        %v2512 = vadd.f32 %v2511, 0.0036580483
        %v2513 = vmul.f32 %v2508, %v2512
        %v2514 = vadd.f32 %v2513, 0.05243302
        %v2515 = vmul.f32 %v2508, %v2514
        %v2516 = vadd.f32 %v2515, 0.18741608
        %v2517 = vmul.f32 %v2508, %v2516
        %v2518 = vadd.f32 %v2517, 1.1283791
        %v2519 = vmul.f32 %v1266, %v2518
        %v2520 = vmul.f32 %v2508, 3.8918573e-05
        %v2521 = vadd.f32 %v2520, 0.001143296
        %v2522 = vmul.f32 %v2508, %v2521
        %v2523 = vadd.f32 %v2522, 0.014752088
        %v2524 = vmul.f32 %v2508, %v2523
        %v2525 = vadd.f32 %v2524, 0.112945676
        %v2526 = vmul.f32 %v2508, %v2525
        %v2527 = vadd.f32 %v2526, 0.4994258
        %v2528 = vmul.f32 %v2508, %v2527
        %v2529 = vadd.f32 %v2528, 1.0
        %v2530 = vrcp.pop %v2529
        %v2531 = vmul.f32 %v2529, %v2530
        %v2532 = vsub.f32 1.0, %v2531
        %v2533 = vmul.f32 %v2530, %v2532
        %v2534 = vadd.f32 %v2530, %v2533
        %vm2535 = vweird.f32 %v2529
        %vm2536 = vweird.f32 %v2530
        %vm2537 = vmor %vm2535, %vm2536
        %v2538 = vsel %vm2537, %v2530, %v2534
        %v2539 = vand.u32 2147483647, %v2529
        %vm2540 = vcmp.eq.f32.partialorder %v2539, 8.507059e+37
        %v2541 = vand.u32 %v2529, 2147483648
        %v2542 = vor.u32 1.1754944e-38, %v2541
        %v2543 = vsel %vm2540, %v2542, %v2538
        %v2544 = vmul.f32 %v2519, %v2543
        %v2545 = vmin.f32 %v2544, 1.0
        %v2546 = vmax.f32 %v2545, -1.0
        %v2547 = vadd.f32 %v1306, 1.0
        %v2548 = vadd.f32 %v1346, 1.0
        %v2549 = vadd.f32 %v1386, 1.0
        %v2550 = vadd.f32 %v1426, 1.0
        %v2551 = vadd.f32 %v1466, 1.0
        %v2552 = vadd.f32 %v1506, 1.0
        %v2553 = vadd.f32 %v1546, 1.0
        %v2554 = vadd.f32 %v1586, 1.0
        %v2555 = vadd.f32 %v1626, 1.0
        %v2556 = vadd.f32 %v1666, 1.0
        %v2557 = vadd.f32 %v1706, 1.0
        %v2558 = vadd.f32 %v1746, 1.0
        %v2559 = vadd.f32 %v1786, 1.0
        %v2560 = vadd.f32 %v1826, 1.0
        %v2561 = vadd.f32 %v1866, 1.0
        %v2562 = vadd.f32 %v1906, 1.0
        %v2563 = vadd.f32 %v1946, 1.0
        %v2564 = vadd.f32 %v1986, 1.0
        %v2565 = vadd.f32 %v2026, 1.0
        %v2566 = vadd.f32 %v2066, 1.0
        %v2567 = vadd.f32 %v2106, 1.0
        %v2568 = vadd.f32 %v2146, 1.0
        %v2569 = vadd.f32 %v2186, 1.0
        %v2570 = vadd.f32 %v2226, 1.0
        %v2571 = vadd.f32 %v2266, 1.0
        %v2572 = vadd.f32 %v2306, 1.0
        %v2573 = vadd.f32 %v2346, 1.0
        %v2574 = vadd.f32 %v2386, 1.0
        %v2575 = vadd.f32 %v2426, 1.0
        %v2576 = vadd.f32 %v2466, 1.0
        %v2577 = vadd.f32 %v2506, 1.0
        %v2578 = vadd.f32 %v2546, 1.0
        %v2579 = vmul.f32 %v1203, %v2547
        %v2580 = vmul.f32 %v1204, %v2548
        %v2581 = vmul.f32 %v1205, %v2549
        %v2582 = vmul.f32 %v1206, %v2550
        %v2583 = vmul.f32 %v1207, %v2551
        %v2584 = vmul.f32 %v1208, %v2552
        %v2585 = vmul.f32 %v1209, %v2553
        %v2586 = vmul.f32 %v1210, %v2554
        %v2587 = vmul.f32 %v1211, %v2555
        %v2588 = vmul.f32 %v1212, %v2556
        %v2589 = vmul.f32 %v1213, %v2557
        %v2590 = vmul.f32 %v1214, %v2558
        %v2591 = vmul.f32 %v1215, %v2559
        %v2592 = vmul.f32 %v1216, %v2560
        %v2593 = vmul.f32 %v1217, %v2561
        %v2594 = vmul.f32 %v1218, %v2562
        %v2595 = vmul.f32 %v1219, %v2563
        %v2596 = vmul.f32 %v1220, %v2564
        %v2597 = vmul.f32 %v1221, %v2565
        %v2598 = vmul.f32 %v1222, %v2566
        %v2599 = vmul.f32 %v1223, %v2567
        %v2600 = vmul.f32 %v1224, %v2568
        %v2601 = vmul.f32 %v1225, %v2569
        %v2602 = vmul.f32 %v1226, %v2570
        %v2603 = vmul.f32 %v1227, %v2571
        %v2604 = vmul.f32 %v1228, %v2572
        %v2605 = vmul.f32 %v1229, %v2573
        %v2606 = vmul.f32 %v1230, %v2574
        %v2607 = vmul.f32 %v1231, %v2575
        %v2608 = vmul.f32 %v1232, %v2576
        %v2609 = vmul.f32 %v1233, %v2577
        %v2610 = vmul.f32 %v1234, %v2578
        %v2611 = vpack.c.bf16 %v2583, %v2579
        %v2612 = vpack.c.bf16 %v2584, %v2580
        %v2613 = vpack.c.bf16 %v2585, %v2581
        %v2614 = vpack.c.bf16 %v2586, %v2582
        %v2615 = vpack.c.bf16 %v2591, %v2587
        %v2616 = vpack.c.bf16 %v2592, %v2588
        %v2617 = vpack.c.bf16 %v2593, %v2589
        %v2618 = vpack.c.bf16 %v2594, %v2590
        %v2619 = vpack.c.bf16 %v2599, %v2595
        %v2620 = vpack.c.bf16 %v2600, %v2596
        %v2621 = vpack.c.bf16 %v2601, %v2597
        %v2622 = vpack.c.bf16 %v2602, %v2598
        %v2623 = vpack.c.bf16 %v2607, %v2603
        %v2624 = vpack.c.bf16 %v2608, %v2604
        %v2625 = vpack.c.bf16 %v2609, %v2605
        %v2626 = vpack.c.bf16 %v2610, %v2606
        %v2627 = vld [vmem:[#allocation11] sm:$0xf]
        %v2628 = vld [vmem:[#allocation11 + $0x4] sm:$0xf]
        %v2629 = vld [vmem:[#allocation11 + $0x8] sm:$0xf]
        %v2630 = vld [vmem:[#allocation11 + $0xc] sm:$0xf]
        %v2631 = vld [vmem:[#allocation11 + $0x10] sm:$0xf]
        %v2632 = vld [vmem:[#allocation11 + $0x14] sm:$0xf]
        %v2633 = vld [vmem:[#allocation11 + $0x18] sm:$0xf]
        %v2634 = vld [vmem:[#allocation11 + $0x1c] sm:$0xf]
        %v2635 = vld [vmem:[#allocation11 + $0x20] sm:$0xf]
        %v2636 = vld [vmem:[#allocation11 + $0x24] sm:$0xf]
        %v2637 = vld [vmem:[#allocation11 + $0x28] sm:$0xf]
        %v2638 = vld [vmem:[#allocation11 + $0x2c] sm:$0xf]
        %v2639 = vld [vmem:[#allocation11 + $0x30] sm:$0xf]
        %v2640 = vld [vmem:[#allocation11 + $0x34] sm:$0xf]
        %v2641 = vld [vmem:[#allocation11 + $0x38] sm:$0xf]
        %v2642 = vld [vmem:[#allocation11 + $0x3c] sm:$0xf]
        %v2643 = vld [vmem:[#allocation11 + $0x40] sm:$0xf]
        %v2644 = vld [vmem:[#allocation11 + $0x44] sm:$0xf]
        %v2645 = vld [vmem:[#allocation11 + $0x48] sm:$0xf]
        %v2646 = vld [vmem:[#allocation11 + $0x4c] sm:$0xf]
        %v2647 = vld [vmem:[#allocation11 + $0x50] sm:$0xf]
        %v2648 = vld [vmem:[#allocation11 + $0x54] sm:$0xf]
        %v2649 = vld [vmem:[#allocation11 + $0x58] sm:$0xf]
        %v2650 = vld [vmem:[#allocation11 + $0x5c] sm:$0xf]
        %v2651 = vld [vmem:[#allocation11 + $0x60] sm:$0xf]
        %v2652 = vld [vmem:[#allocation11 + $0x64] sm:$0xf]
        %v2653 = vld [vmem:[#allocation11 + $0x68] sm:$0xf]
        %v2654 = vld [vmem:[#allocation11 + $0x6c] sm:$0xf]
        %v2655 = vld [vmem:[#allocation11 + $0x70] sm:$0xf]
        %v2656 = vld [vmem:[#allocation11 + $0x74] sm:$0xf]
        %v2657 = vld [vmem:[#allocation11 + $0x78] sm:$0xf]
        %v2658 = vld [vmem:[#allocation11 + $0x7c] sm:$0xf]
        %v2659 = vld [vmem:[#allocation11 + $0x80] sm:$0xf]
        %v2660 = vld [vmem:[#allocation11 + $0x84] sm:$0xf]
        %v2661 = vld [vmem:[#allocation11 + $0x88] sm:$0xf]
        %v2662 = vld [vmem:[#allocation11 + $0x8c] sm:$0xf]
        %v2663 = vld [vmem:[#allocation11 + $0x90] sm:$0xf]
        %v2664 = vld [vmem:[#allocation11 + $0x94] sm:$0xf]
        %v2665 = vld [vmem:[#allocation11 + $0x98] sm:$0xf]
        %v2666 = vld [vmem:[#allocation11 + $0x9c] sm:$0xf]
        %v2667 = vld [vmem:[#allocation11 + $0xa0] sm:$0xf]
        %v2668 = vld [vmem:[#allocation11 + $0xa4] sm:$0xf]
        %v2669 = vld [vmem:[#allocation11 + $0xa8] sm:$0xf]
        %v2670 = vld [vmem:[#allocation11 + $0xac] sm:$0xf]
        %v2671 = vld [vmem:[#allocation11 + $0xb0] sm:$0xf]
        %v2672 = vld [vmem:[#allocation11 + $0xb4] sm:$0xf]
        %v2673 = vld [vmem:[#allocation11 + $0xb8] sm:$0xf]
        %v2674 = vld [vmem:[#allocation11 + $0xbc] sm:$0xf]
        %v2675 = vld [vmem:[#allocation11 + $0xc0] sm:$0xf]
        %v2676 = vld [vmem:[#allocation11 + $0xc4] sm:$0xf]
        %v2677 = vld [vmem:[#allocation11 + $0xc8] sm:$0xf]
        %v2678 = vld [vmem:[#allocation11 + $0xcc] sm:$0xf]
        %v2679 = vld [vmem:[#allocation11 + $0xd0] sm:$0xf]
        %v2680 = vld [vmem:[#allocation11 + $0xd4] sm:$0xf]
        %v2681 = vld [vmem:[#allocation11 + $0xd8] sm:$0xf]
        %v2682 = vld [vmem:[#allocation11 + $0xdc] sm:$0xf]
        %v2683 = vld [vmem:[#allocation11 + $0xe0] sm:$0xf]
        %v2684 = vld [vmem:[#allocation11 + $0xe4] sm:$0xf]
        %v2685 = vld [vmem:[#allocation11 + $0xe8] sm:$0xf]
        %v2686 = vld [vmem:[#allocation11 + $0xec] sm:$0xf]
        %v2687 = vld [vmem:[#allocation11 + $0xf0] sm:$0xf]
        %v2688 = vld [vmem:[#allocation11 + $0xf4] sm:$0xf]
        %v2689 = vld [vmem:[#allocation11 + $0xf8] sm:$0xf]
        %v2690 = vld [vmem:[#allocation11 + $0xfc] sm:$0xf]
        %v2691 = vld [vmem:[%s8] sm:$0x1]
        %v2693 = vperm.slane %v2691, 0
        %v2759 = vunpack.c.l.b16 %v2627
        %v2760 = vunpack.c.l.b16 %v2628
        %v2761 = vunpack.c.l.b16 %v2629
        %v2762 = vunpack.c.l.b16 %v2630
        %v2763 = vunpack.c.l.b16 %v2631
        %v2764 = vunpack.c.l.b16 %v2632
        %v2765 = vunpack.c.l.b16 %v2633
        %v2766 = vunpack.c.l.b16 %v2634
        %v2767 = vunpack.c.l.b16 %v2635
        %v2768 = vunpack.c.l.b16 %v2636
        %v2769 = vunpack.c.l.b16 %v2637
        %v2770 = vunpack.c.l.b16 %v2638
        %v2771 = vunpack.c.l.b16 %v2639
        %v2772 = vunpack.c.l.b16 %v2640
        %v2773 = vunpack.c.l.b16 %v2641
        %v2774 = vunpack.c.l.b16 %v2642
        %v2775 = vunpack.c.l.b16 %v2643
        %v2776 = vunpack.c.l.b16 %v2644
        %v2777 = vunpack.c.l.b16 %v2645
        %v2778 = vunpack.c.l.b16 %v2646
        %v2779 = vunpack.c.l.b16 %v2647
        %v2780 = vunpack.c.l.b16 %v2648
        %v2781 = vunpack.c.l.b16 %v2649
        %v2782 = vunpack.c.l.b16 %v2650
        %v2783 = vunpack.c.l.b16 %v2651
        %v2784 = vunpack.c.l.b16 %v2652
        %v2785 = vunpack.c.l.b16 %v2653
        %v2786 = vunpack.c.l.b16 %v2654
        %v2787 = vunpack.c.l.b16 %v2655
        %v2788 = vunpack.c.l.b16 %v2656
        %v2789 = vunpack.c.l.b16 %v2657
        %v2790 = vunpack.c.l.b16 %v2658
        %v2791 = vunpack.c.l.b16 %v2659
        %v2792 = vunpack.c.l.b16 %v2660
        %v2793 = vunpack.c.l.b16 %v2661
        %v2794 = vunpack.c.l.b16 %v2662
        %v2795 = vunpack.c.l.b16 %v2663
        %v2796 = vunpack.c.l.b16 %v2664
        %v2797 = vunpack.c.l.b16 %v2665
        %v2798 = vunpack.c.l.b16 %v2666
        %v2799 = vunpack.c.l.b16 %v2667
        %v2800 = vunpack.c.l.b16 %v2668
        %v2801 = vunpack.c.l.b16 %v2669
        %v2802 = vunpack.c.l.b16 %v2670
        %v2803 = vunpack.c.l.b16 %v2671
        %v2804 = vunpack.c.l.b16 %v2672
        %v2805 = vunpack.c.l.b16 %v2673
        %v2806 = vunpack.c.l.b16 %v2674
        %v2807 = vunpack.c.l.b16 %v2675
        %v2808 = vunpack.c.l.b16 %v2676
        %v2809 = vunpack.c.l.b16 %v2677
        %v2810 = vunpack.c.l.b16 %v2678
        %v2811 = vunpack.c.l.b16 %v2679
        %v2812 = vunpack.c.l.b16 %v2680
        %v2813 = vunpack.c.l.b16 %v2681
        %v2814 = vunpack.c.l.b16 %v2682
        %v2815 = vunpack.c.l.b16 %v2683
        %v2816 = vunpack.c.l.b16 %v2684
        %v2817 = vunpack.c.l.b16 %v2685
        %v2818 = vunpack.c.l.b16 %v2686
        %v2819 = vunpack.c.l.b16 %v2687
        %v2820 = vunpack.c.l.b16 %v2688
        %v2821 = vunpack.c.l.b16 %v2689
        %v2822 = vunpack.c.l.b16 %v2690
        %v2823 = vpack.c.b16 %v2760, %v2759
        %v2824 = vpack.c.b16 %v2762, %v2761
        %v2825 = vpack.c.b16 %v2764, %v2763
        %v2826 = vpack.c.b16 %v2766, %v2765
        %v2827 = vpack.c.b16 %v2768, %v2767
        %v2828 = vpack.c.b16 %v2770, %v2769
        %v2829 = vpack.c.b16 %v2772, %v2771
        %v2830 = vpack.c.b16 %v2774, %v2773
        %v2831 = vpack.c.b16 %v2776, %v2775
        %v2832 = vpack.c.b16 %v2778, %v2777
        %v2833 = vpack.c.b16 %v2780, %v2779
        %v2834 = vpack.c.b16 %v2782, %v2781
        %v2835 = vpack.c.b16 %v2784, %v2783
        %v2836 = vpack.c.b16 %v2786, %v2785
        %v2837 = vpack.c.b16 %v2788, %v2787
        %v2838 = vpack.c.b16 %v2790, %v2789
        %v2839 = vpack.c.b16 %v2792, %v2791
        %v2840 = vpack.c.b16 %v2794, %v2793
        %v2841 = vpack.c.b16 %v2796, %v2795
        %v2842 = vpack.c.b16 %v2798, %v2797
        %v2843 = vpack.c.b16 %v2800, %v2799
        %v2844 = vpack.c.b16 %v2802, %v2801
        %v2845 = vpack.c.b16 %v2804, %v2803
        %v2846 = vpack.c.b16 %v2806, %v2805
        %v2847 = vpack.c.b16 %v2808, %v2807
        %v2848 = vpack.c.b16 %v2810, %v2809
        %v2849 = vpack.c.b16 %v2812, %v2811
        %v2850 = vpack.c.b16 %v2814, %v2813
        %v2851 = vpack.c.b16 %v2816, %v2815
        %v2852 = vpack.c.b16 %v2818, %v2817
        %v2853 = vpack.c.b16 %v2820, %v2819
        %v2854 = vpack.c.b16 %v2822, %v2821
        %2887 = vmatpush.bf16.msra.mxu0 %v2830
        %2888 = vmatpush.bf16.msra.mxu0 %v2829
        %2889 = vmatpush.bf16.msra.mxu0 %v2828
        %2890 = vmatpush.bf16.msra.mxu0 %v2827
        %2891 = vmatpush.bf16.msra.mxu0 %v2826
        %2892 = vmatpush.bf16.msra.mxu0 %v2825
        %2893 = vmatpush.bf16.msra.mxu0 %v2824
        %2894 = vmatpush.bf16.msra.mxu0 %v2823
        %2895 = vmatmul.bf16.gmra.mxu0 %v2611
        %v2896 = vpop.f32.mrf.mxu0
        %v2897 = vadd.f32 %v2693, %v2896
        %v2898 = vpop.f32.mrf.mxu0
        %v2899 = vadd.f32 %v2693, %v2898
        %2900 = vmatmul.bf16.gmra.mxu0 %v2615
        %v2901 = vpop.f32.mrf.mxu0
        %v2902 = vadd.f32 %v2693, %v2901
        %v2903 = vpop.f32.mrf.mxu0
        %v2904 = vadd.f32 %v2693, %v2903
        %2905 = vmatmul.bf16.gmra.mxu0 %v2619
        %v2906 = vpop.f32.mrf.mxu0
        %v2907 = vadd.f32 %v2693, %v2906
        %v2908 = vpop.f32.mrf.mxu0
        %v2909 = vadd.f32 %v2693, %v2908
        %2910 = vmatmul.bf16.gmra.mxu0 %v2623
        %v2911 = vpop.f32.mrf.mxu0
        %v2912 = vadd.f32 %v2693, %v2911
        %v2913 = vpop.f32.mrf.mxu0
        %v2914 = vadd.f32 %v2693, %v2913
        %2915 = vdwg.mxu0
        %2916 = vmatpush.bf16.msra.mxu0 %v2838
        %2917 = vmatpush.bf16.msra.mxu0 %v2837
        %2918 = vmatpush.bf16.msra.mxu0 %v2836
        %2919 = vmatpush.bf16.msra.mxu0 %v2835
        %2920 = vmatpush.bf16.msra.mxu0 %v2834
        %2921 = vmatpush.bf16.msra.mxu0 %v2833
        %2922 = vmatpush.bf16.msra.mxu0 %v2832
        %2923 = vmatpush.bf16.msra.mxu0 %v2831
        %2924 = vmatmul.bf16.gmra.mxu0 %v2612
        %v2925 = vpop.f32.mrf.mxu0
        %v2926 = vadd.f32 %v2897, %v2925
        %v2927 = vpop.f32.mrf.mxu0
        %v2928 = vadd.f32 %v2899, %v2927
        %2929 = vmatmul.bf16.gmra.mxu0 %v2616
        %v2930 = vpop.f32.mrf.mxu0
        %v2931 = vadd.f32 %v2902, %v2930
        %v2932 = vpop.f32.mrf.mxu0
        %v2933 = vadd.f32 %v2904, %v2932
        %2934 = vmatmul.bf16.gmra.mxu0 %v2620
        %v2935 = vpop.f32.mrf.mxu0
        %v2936 = vadd.f32 %v2907, %v2935
        %v2937 = vpop.f32.mrf.mxu0
        %v2938 = vadd.f32 %v2909, %v2937
        %2939 = vmatmul.bf16.gmra.mxu0 %v2624
        %v2940 = vpop.f32.mrf.mxu0
        %v2941 = vadd.f32 %v2912, %v2940
        %v2942 = vpop.f32.mrf.mxu0
        %v2943 = vadd.f32 %v2914, %v2942
        %2944 = vdwg.mxu0
        %2945 = vmatpush.bf16.msra.mxu0 %v2846
        %2946 = vmatpush.bf16.msra.mxu0 %v2845
        %2947 = vmatpush.bf16.msra.mxu0 %v2844
        %2948 = vmatpush.bf16.msra.mxu0 %v2843
        %2949 = vmatpush.bf16.msra.mxu0 %v2842
        %2950 = vmatpush.bf16.msra.mxu0 %v2841
        %2951 = vmatpush.bf16.msra.mxu0 %v2840
        %2952 = vmatpush.bf16.msra.mxu0 %v2839
        %2953 = vmatmul.bf16.gmra.mxu0 %v2613
        %v2954 = vpop.f32.mrf.mxu0
        %v2955 = vadd.f32 %v2926, %v2954
        %v2956 = vpop.f32.mrf.mxu0
        %v2957 = vadd.f32 %v2928, %v2956
        %2958 = vmatmul.bf16.gmra.mxu0 %v2617
        %v2959 = vpop.f32.mrf.mxu0
        %v2960 = vadd.f32 %v2931, %v2959
        %v2961 = vpop.f32.mrf.mxu0
        %v2962 = vadd.f32 %v2933, %v2961
        %2963 = vmatmul.bf16.gmra.mxu0 %v2621
        %v2964 = vpop.f32.mrf.mxu0
        %v2965 = vadd.f32 %v2936, %v2964
        %v2966 = vpop.f32.mrf.mxu0
        %v2967 = vadd.f32 %v2938, %v2966
        %2968 = vmatmul.bf16.gmra.mxu0 %v2625
        %v2969 = vpop.f32.mrf.mxu0
        %v2970 = vadd.f32 %v2941, %v2969
        %v2971 = vpop.f32.mrf.mxu0
        %v2972 = vadd.f32 %v2943, %v2971
        %2973 = vdwg.mxu0
        %2974 = vmatpush.bf16.msra.mxu0 %v2854
        %2975 = vmatpush.bf16.msra.mxu0 %v2853
        %2976 = vmatpush.bf16.msra.mxu0 %v2852
        %2977 = vmatpush.bf16.msra.mxu0 %v2851
        %2978 = vmatpush.bf16.msra.mxu0 %v2850
        %2979 = vmatpush.bf16.msra.mxu0 %v2849
        %2980 = vmatpush.bf16.msra.mxu0 %v2848
        %2981 = vmatpush.bf16.msra.mxu0 %v2847
        %2982 = vmatmul.bf16.gmra.mxu0 %v2614
        %v2983 = vpop.f32.mrf.mxu0
        %v2984 = vadd.f32 %v2955, %v2983
        %v2985 = vpop.f32.mrf.mxu0
        %v2986 = vadd.f32 %v2957, %v2985
        %2987 = vmatmul.bf16.gmra.mxu0 %v2618
        %v2988 = vpop.f32.mrf.mxu0
        %v2989 = vadd.f32 %v2960, %v2988
        %v2990 = vpop.f32.mrf.mxu0
        %v2991 = vadd.f32 %v2962, %v2990
        %2992 = vmatmul.bf16.gmra.mxu0 %v2622
        %v2993 = vpop.f32.mrf.mxu0
        %v2994 = vadd.f32 %v2965, %v2993
        %v2995 = vpop.f32.mrf.mxu0
        %v2996 = vadd.f32 %v2967, %v2995
        %2997 = vmatmul.bf16.gmra.mxu0 %v2626
        %v2998 = vpop.f32.mrf.mxu0
        %v2999 = vadd.f32 %v2970, %v2998
        %v3000 = vpop.f32.mrf.mxu0
        %v3001 = vadd.f32 %v2972, %v3000
        %3002 = vdwg.mxu0
        %v3003 = vadd.f32 %v567, %v2984
        %v3004 = vadd.f32 %v566, %v2986
        %v3005 = vadd.f32 %v565, %v2989
        %v3006 = vadd.f32 %v564, %v2991
        %v3007 = vadd.f32 %v563, %v2994
        %v3008 = vadd.f32 %v562, %v2996
        %v3009 = vadd.f32 %v561, %v2999
        %v3010 = vadd.f32 %v560, %v3001
        %3011 = vst [vmem:[%s443] sm:$0xff] %v3003
        %3012 = vst [vmem:[%s443 + $0x8] sm:$0xff] %v3004
        %3013 = vst [vmem:[%s443 + $0x10] sm:$0xff] %v3005
        %3014 = vst [vmem:[%s443 + $0x18] sm:$0xff] %v3006
        %3015 = vst [vmem:[%s443 + $0x20] sm:$0xff] %v3007
        %3016 = vst [vmem:[%s443 + $0x28] sm:$0xff] %v3008
        %3017 = vst [vmem:[%s443 + $0x30] sm:$0xff] %v3009
        %3018 = vst [vmem:[%s443 + $0x38] sm:$0xff] %v3010
        %s3019 = sand.u32 %s245, 1
        %s3020 = scalar_lea.sflag [#allocation4], %s3019
        %s3021 = sand.u32 %s245, 1
        %s3022 = smul.addr %s3021, 64
        %s3023 = scalar_lea.vmem [#allocation13], %s3022
        // Predicated region
        $region81: #{tpu_custom_call.1} parent=55 // pred_check
          %p3024 = pneg %p255
        $region82: #{tpu_custom_call.1} parent=55 // pred_check_branch
          %3026 = sbr.rel (%p3024) target = $region84
        $region83: #{tpu_custom_call.1} parent=55 // pred_region
          %s3027 = smul.u32 8, %s34
          %3029 = vsyncadd %s3020, 0
          %s3030 = smul.addr %s33, 16
          %s3031 = sadd.s32 %s3027, %s3030
          %s3032 = smul.addr %s3031, 8
          %s3033 = scalar_lea.hbm %s9, %s3032
          %s3034 = sshll.u32 %s3023, 4
          %s3035 = int_to_ptr.vmem [resolvable:$true] %s3034
          %s3036 = sshll.u32 %s3033, 4
          %s3037 = int_to_ptr.hbm [resolvable:$true] %s3036
          %3042 = dma.vmem_to_hbm [thread:$0]  %s3035, 1024, %s3037, %s3020, 128, 128, 8
        $region84: #{tpu_custom_call.1} parent=55 // pred_fallthru
          _
      $region56: #{tpu_custom_call.1} parent=5 // pred_fallthru
        _
      %p3043 = scmp.le.s32.totalorder 2, %s24
      // Predicated region
      $region85: #{tpu_custom_call.1} parent=5 // pred_check
        %p3044 = pneg %p3043
      $region86: #{tpu_custom_call.1} parent=5 // pred_check_branch
        %3046 = sbr.rel (%p3044) target = $region88
      $region87: #{tpu_custom_call.1} parent=5 // pred_region
        %s3047 = ssub.s32 %s24, 2
        // Predicated region
        $region89: #{tpu_custom_call.1} parent=87 // pred_check
          %p3048 = pneg %p261
        $region90: #{tpu_custom_call.1} parent=87 // pred_check_branch
          %3050 = sbr.rel (%p3048) target = $region92
        $region91: #{tpu_custom_call.1} parent=87 // pred_region
          %s3051 = sand.u32 %s246, 1
          %s3052 = scalar_lea.sflag [#allocation4], %s3051
          %s3053 = sand.u32 %s246, 1
          %s3054 = smul.addr %s3053, 64
          %s3055 = scalar_lea.vmem [#allocation13], %s3054
          %3057 = dma.done %s3052, 1024
        $region92: #{tpu_custom_call.1} parent=87 // pred_fallthru
          _
      $region88: #{tpu_custom_call.1} parent=5 // pred_fallthru
        _
    $region6: #{tpu_custom_call.1} parent=1 // loop_footer
      %s28 = sadd.s32 1, %s24
    $region7: #{tpu_custom_call.1} parent=1 // loop_footer_branch
      %23 = sbr.rel target = $region3
    $region8: #{tpu_custom_call.1} parent=1 // loop_exit
      _
    %3058 = vsyncpa [#allocation3], 1
    %s3059 = scalar_lea.sflag [#allocation3], 1
    %3060 = vsyncpa %s3059, 1
    %3061 = vsyncpa [#allocation6], 1
    %3062 = vsyncpa [#allocation9], 1
    %3063 = vsyncpa [#allocation12], 1
    %3064 = vsyncpa [#allocation4], 1
    %s3065 = scalar_lea.sflag [#allocation4], 1
    %3066 = vsyncpa %s3065, 1

</llo_original>
